<compile_context>
chip_gen: v7x
topology: tpu7x:2x2x1
jax: 0.10.0
libtpu: 0.0.40
codegen_flags: <defaults>
</compile_context>

<pallas_src>
import functools

import jax
import jax.numpy as jnp
from jax.experimental import pallas as pl
from jax.experimental.pallas import tpu as pltpu

INPUT_SIZE = 4096


def _round_up(n, m):
    return ((n + m - 1) // m) * m


# ---------------------------------------------------------------------------
# Pallas recurrence kernel: one LSTM layer, input projection already applied.
# ---------------------------------------------------------------------------
def _lstm_recurrence_kernel(gx_ref, whh_ref, out_ref, hN_ref, cN_ref,
                            h_sc, c_sc, *, seq_len, unroll):
    """Grid axis 0 walks the sequence in chunks of T timesteps (sequential).

    gx_ref : (T, Bp, 4*Hp) bf16  precomputed x_t @ W_ih + bias (time-major)
    whh_ref: (Hp, 4*Hp)    bf16  recurrent weights (whole array resident in VMEM)
    out_ref: (T, Bp, Hp)   bf16/f32  per-step hidden states
    hN/cN  : (Bp, Hp)      f32   final state (written on last grid step)
    h_sc/c_sc: (Bp, Hp)    f32   carries, persist across grid steps
    """
    s = pl.program_id(0)
    last = pl.num_programs(0) - 1
    T = gx_ref.shape[0]
    Hp = h_sc.shape[-1]

    @pl.when(s == 0)
    def _():
        h_sc[...] = jnp.zeros_like(h_sc)
        c_sc[...] = jnp.zeros_like(c_sc)

    def make_step(masked):
        def step(i, carry):
            h, c = carry                               # (Bp, Hp) f32
            # W_hh read inside the step body: short vreg live range, MXU reads
            # it straight from VMEM (avoids holding ~Hp*4Hp bf16 across the
            # unrolled body -> no spill pressure).
            gates = (gx_ref[i].astype(jnp.float32)
                     + jnp.dot(h.astype(jnp.bfloat16), whh_ref[...],
                               preferred_element_type=jnp.float32))
            # PyTorch gate order [i, f, g, o]; each gate is a 128-aligned
            # block of Hp lanes -> full-width VPU/EUP work, no relayouts.
            i_g = jax.nn.sigmoid(gates[:, 0 * Hp:1 * Hp])
            f_g = jax.nn.sigmoid(gates[:, 1 * Hp:2 * Hp])
            g_g = jnp.tanh(gates[:, 2 * Hp:3 * Hp])
            o_g = jax.nn.sigmoid(gates[:, 3 * Hp:4 * Hp])
            c_new = f_g * c + i_g * g_g
            h_new = o_g * jnp.tanh(c_new)
            out_ref[i] = h_new.astype(out_ref.dtype)
            if masked:
                # Only the last chunk contains padded timesteps; they must not
                # advance the carried state.
                keep = ((s * T + i) < seq_len).astype(jnp.float32)
                h_new = keep * h_new + (1.0 - keep) * h
                c_new = keep * c_new + (1.0 - keep) * c
            return (h_new, c_new)
        return step

    def run(masked):
        h_fin, c_fin = jax.lax.fori_loop(
            0, T, make_step(masked), (h_sc[...], c_sc[...]), unroll=unroll)
        h_sc[...] = h_fin
        c_sc[...] = c_fin
        return h_fin, c_fin

    if seq_len is None:
        # No sequence padding anywhere: single unmasked body for every chunk.
        h_fin, c_fin = run(False)

        @pl.when(s == last)
        def _():
            hN_ref[...] = h_fin
            cN_ref[...] = c_fin
    else:
        # Mask only on the last chunk; full chunks take the lean body.
        @pl.when(s != last)
        def _():
            run(False)

        @pl.when(s == last)
        def _():
            h_fin, c_fin = run(True)
            hN_ref[...] = h_fin
            cN_ref[...] = c_fin


def _lstm_recurrence(gates_tm, w_hh_p, *, seq_len, chunk, out_dtype):
    """gates_tm: (Sp, Bp, 4*Hp) bf16 time-major; w_hh_p: (Hp, 4*Hp) bf16."""
    Sp, Bp, Gp = gates_tm.shape
    Hp = Gp // 4
    assert Sp % chunk == 0
    n_chunks = Sp // chunk

    kernel = functools.partial(
        _lstm_recurrence_kernel,
        seq_len=(seq_len if Sp != seq_len else None),
        unroll=min(8, chunk))

    gx_bytes = jnp.dtype(gates_tm.dtype).itemsize
    out_bytes = jnp.dtype(out_dtype).itemsize
    whh_bytes = jnp.dtype(w_hh_p.dtype).itemsize
    # Computed VMEM budget (review item): double-buffered gx + out chunks,
    # one resident W_hh copy, small final-state blocks and carries, + headroom.
    vmem_need = (2 * chunk * Bp * Gp * gx_bytes
                 + 2 * chunk * Bp * Hp * out_bytes
                 + Hp * Gp * whh_bytes
                 + 6 * Bp * Hp * 4)
    vmem_limit = min(int(vmem_need * 1.25) + (4 << 20), 128 << 20)

    grid_spec = pltpu.PrefetchScalarGridSpec(
        num_scalar_prefetch=0,
        grid=(n_chunks,),
        in_specs=[
            # Streamed bf16 gates chunk (double-buffered by the pipeline).
            pl.BlockSpec((chunk, Bp, Gp), lambda s: (s, 0, 0)),
            # Whole W_hh resident in VMEM: one copy, no pipeline double-buffer
            # (equivalent VMEM saving to pipeline_mode=pl.Buffered(1)).
            pl.BlockSpec(memory_space=pltpu.MemorySpace.VMEM),
        ],
        out_specs=[
            pl.BlockSpec((chunk, Bp, Hp), lambda s: (s, 0, 0)),  # hidden states
            pl.BlockSpec((Bp, Hp), lambda s: (0, 0)),            # final h
            pl.BlockSpec((Bp, Hp), lambda s: (0, 0)),            # final c
        ],
        scratch_shapes=[
            pltpu.VMEM((Bp, Hp), jnp.float32),                   # h carry
            pltpu.VMEM((Bp, Hp), jnp.float32),                   # c carry
        ],
    )

    cost = pl.CostEstimate(
        flops=2 * Sp * Bp * Hp * Gp + 10 * Sp * Bp * Gp,
        transcendentals=5 * Sp * Bp * Hp,
        bytes_accessed=(Sp * Bp * Gp * gx_bytes + Hp * Gp * whh_bytes
                        + Sp * Bp * Hp * out_bytes + 2 * Bp * Hp * 4),
    )

    out_tm, h_n, c_n = pl.pallas_call(
        kernel,
        out_shape=(
            jax.ShapeDtypeStruct((Sp, Bp, Hp), out_dtype),
            jax.ShapeDtypeStruct((Bp, Hp), jnp.float32),
            jax.ShapeDtypeStruct((Bp, Hp), jnp.float32),
        ),
        grid_spec=grid_spec,
        compiler_params=pltpu.CompilerParams(
            dimension_semantics=("arbitrary",),   # sequential recurrence
            vmem_limit_bytes=vmem_limit,
        ),
        cost_estimate=cost,
    )(gates_tm, w_hh_p)
    return out_tm, h_n, c_n


# ---------------------------------------------------------------------------
# Parameter preparation (gate-block padding H -> Hp, bf16 cast).
# ---------------------------------------------------------------------------
def _prepare_layer(w_ih, w_hh, bias, H, Hp, in_dim_pad):
    """Pad each gate block H -> Hp (PyTorch gate order [i,f,g,o]) with zeros
    and cast matmul operands to bf16.  Zero padding keeps padded hidden
    columns exactly zero through the recurrence."""
    in_dim = w_ih.shape[0]
    w_ih_p = jnp.pad(w_ih.reshape(in_dim, 4, H),
                     ((0, in_dim_pad - in_dim), (0, 0), (0, Hp - H)))
    w_ih_p = w_ih_p.reshape(in_dim_pad, 4 * Hp).astype(jnp.bfloat16)
    w_hh_p = jnp.pad(w_hh.reshape(H, 4, H),
                     ((0, Hp - H), (0, 0), (0, Hp - H)))
    w_hh_p = w_hh_p.reshape(Hp, 4 * Hp).astype(jnp.bfloat16)
    bias_p = jnp.pad(bias.reshape(4, H), ((0, 0), (0, Hp - H))).reshape(4 * Hp)
    return w_ih_p, w_hh_p, bias_p


def init_encoder_params(key, hidden_size, n_layers, input_size=INPUT_SIZE):
    """PyTorch-style LSTM init: U(-1/sqrt(H), 1/sqrt(H)).  Weights stored
    transposed relative to torch ((in, 4H) / (H, 4H)); gate order [i,f,g,o]."""
    params = []
    bound = 1.0 / float(hidden_size) ** 0.5
    for layer in range(n_layers):
        in_dim = input_size if layer == 0 else hidden_size
        key, k1, k2, k3, k4 = jax.random.split(key, 5)
        w_ih = jax.random.uniform(k1, (in_dim, 4 * hidden_size),
                                  jnp.float32, -bound, bound)
        w_hh = jax.random.uniform(k2, (hidden_size, 4 * hidden_size),
                                  jnp.float32, -bound, bound)
        b_ih = jax.random.uniform(k3, (4 * hidden_size,), jnp.float32, -bound, bound)
        b_hh = jax.random.uniform(k4, (4 * hidden_size,), jnp.float32, -bound, bound)
        params.append((w_ih, w_hh, b_ih + b_hh))
    return params


# ---------------------------------------------------------------------------
# Forward pass (mirrors Encoder.forward, eval mode).
# ---------------------------------------------------------------------------
@functools.partial(jax.jit, static_argnames=("chunk",))
def encoder_forward(x, params, *, chunk=32):
    """x: (B, S, 4096) batch-first -> (output (B,S,H), (h_n, c_n))."""
    B, S, _ = x.shape
    H = params[0][1].shape[0]
    Hp = _round_up(H, 128)
    Bp = _round_up(B, 8)
    T = min(S, chunk)
    Sp = _round_up(S, T)
    n_layers = len(params)

    # Pad batch/seq once with zeros (padded rows never contaminate real rows)
    # and pre-transpose ONCE to time-major bf16, so every projection einsum
    # already emits the gates in the layout the kernel streams.
    x_p = jnp.pad(x, ((0, Bp - B), (0, Sp - S), (0, 0))).astype(jnp.bfloat16)
    layer_in = jnp.transpose(x_p, (1, 0, 2))          # (Sp, Bp, IN) time-major

    h_list, c_list = [], []
    out_tm = None
    for li, (w_ih, w_hh, bias) in enumerate(params):
        w_ih_p, w_hh_p, bias_p = _prepare_layer(
            w_ih, w_hh, bias, H, Hp, layer_in.shape[-1])
        # Hoisted input projection: one large parallel bf16 matmul with f32
        # accumulation, bias folded in, then cast to bf16 for streaming.
        gates = (jnp.einsum("tbi,ig->tbg", layer_in, w_ih_p,
                            preferred_element_type=jnp.float32)
                 + bias_p).astype(jnp.bfloat16)
        is_last_layer = li == n_layers - 1
        out_tm, h_n, c_n = _lstm_recurrence(
            gates, w_hh_p, seq_len=S, chunk=T,
            out_dtype=jnp.float32 if is_last_layer else jnp.bfloat16)
        layer_in = out_tm                              # bf16 time-major feed
        h_list.append(h_n[:B, :H])
        c_list.append(c_n[:B, :H])

    # Only the small final output goes back to batch-first layout.
    output = jnp.transpose(out_tm[:S, :B, :H].astype(jnp.float32), (1, 0, 2))
    return output, (jnp.stack(h_list), jnp.stack(c_list))


# ---------------- pure-JAX reference (mirrors the kernel's dtype strategy) --
def encoder_forward_ref(x, params):
    """Independent lax.scan reference with the same numerical format choices
    as the kernel (bf16 weights, bf16 streamed gates / intermediate hidden
    states, f32 gate math and carries).  NOTE: a true f32 PyTorch nn.LSTM
    deviates from both by the bf16 rounding."""
    B, S, _ = x.shape
    H = params[0][1].shape[0]
    x_tm = jnp.transpose(x, (1, 0, 2)).astype(jnp.bfloat16)    # (S, B, IN)
    h_list, c_list = [], []
    out_tm = None
    for (w_ih, w_hh, bias) in params:
        w_ih_b = w_ih.astype(jnp.bfloat16)
        w_hh_b = w_hh.astype(jnp.bfloat16)
        gx = (jnp.einsum("tbi,ig->tbg", x_tm, w_ih_b,
                         preferred_element_type=jnp.float32)
              + bias).astype(jnp.bfloat16)

        def step(carry, g_t, w_hh_b=w_hh_b):
            h, c = carry
            gates = (g_t.astype(jnp.float32)
                     + jnp.dot(h.astype(jnp.bfloat16), w_hh_b,
                               preferred_element_type=jnp.float32))
            i_g = jax.nn.sigmoid(gates[:, 0 * H:1 * H])
            f_g = jax.nn.sigmoid(gates[:, 1 * H:2 * H])
            g_g = jnp.tanh(gates[:, 2 * H:3 * H])
            o_g = jax.nn.sigmoid(gates[:, 3 * H:4 * H])
            c = f_g * c + i_g * g_g
            h = o_g * jnp.tanh(c)
            return (h, c), h

        init = (jnp.zeros((B, H), jnp.float32), jnp.zeros((B, H), jnp.float32))
        (h_n, c_n), out_tm = jax.lax.scan(step, init, gx)
        x_tm = out_tm.astype(jnp.bfloat16)
        h_list.append(h_n)
        c_list.append(c_n)
    output = jnp.transpose(out_tm, (1, 0, 2))
    return output, (jnp.stack(h_list), jnp.stack(c_list))


def _check(x, params, chunk, hidden_size, n_layers, tol):
    batch, seq, _ = x.shape
    output, (h_n, c_n) = encoder_forward(x, params, chunk=chunk)
    jax.block_until_ready((output, h_n, c_n))

    out_ref, (h_ref, c_ref) = encoder_forward_ref(x, params)

    assert output.shape == (batch, seq, hidden_size)
    assert h_n.shape == (n_layers, batch, hidden_size)
    assert c_n.shape == (n_layers, batch, hidden_size)

    err_o = float(jnp.max(jnp.abs(output - out_ref)))
    err_h = float(jnp.max(jnp.abs(h_n - h_ref)))
    err_c = float(jnp.max(jnp.abs(c_n - c_ref)))
    # Tolerance covers rare bf16 rounding-boundary flips from different f32
    # accumulation orders; real kernel bugs produce O(0.3+) errors.
    assert err_o < tol, err_o
    assert err_h < tol, err_h
    assert err_c < tol, err_c


if __name__ == "__main__":
    hidden_size = 32
    n_layers = 2
    batch = 2

    key = jax.random.PRNGKey(0)
    key, kx, kx2, kp = jax.random.split(key, 4)
    params = init_encoder_params(kp, hidden_size, n_layers)

    # Main check: small shapes, single chunk (no sequence padding).
    x = jax.random.normal(kx, (batch, 8, INPUT_SIZE), jnp.float32)
    _check(x, params, chunk=32, hidden_size=hidden_size, n_layers=n_layers,
           tol=5e-2)

    # Second check: multi-chunk path with a padded last chunk (masked carry).
    x2 = jax.random.normal(kx2, (batch, 40, INPUT_SIZE), jnp.float32)
    _check(x2, params, chunk=16, hidden_size=hidden_size, n_layers=n_layers,
           tol=5e-2)

    print("KERNEL_OK")
</pallas_src>

<mosaic_0001>
module attributes {stable_mosaic.version = 11 : i64} {
  func.func @_lstm_recurrence_kernel(%arg0: i32, %arg1: memref<8x8x512xbf16, #tpu.memory_space<vmem>>, %arg2: memref<128x512xbf16, #tpu.memory_space<vmem>>, %arg3: memref<8x8x128xbf16, #tpu.memory_space<vmem>>, %arg4: memref<8x128xf32, #tpu.memory_space<vmem>>, %arg5: memref<8x128xf32, #tpu.memory_space<vmem>>, %arg6: memref<8x128xf32, #tpu.memory_space<vmem>>, %arg7: memref<8x128xf32, #tpu.memory_space<vmem>>) attributes {dimension_semantics = [#tpu.dimension_semantics<arbitrary>], iteration_bounds = array<i64: 1>, scalar_prefetch = 0 : i64, scratch_operands = 2 : i64, tpu.core_type = #tpu.core_type<tc>, window_params = [{transform_indices = @transform_0, window_bounds = array<i64: 8, 8, 512>}, {pipeline_mode = #tpu.pipeline_mode<synchronous>, transform_indices = @transform_1, window_bounds = array<i64: 128, 512>}, {transform_indices = @transform_2, window_bounds = array<i64: 8, 8, 128>}, {pipeline_mode = #tpu.pipeline_mode<synchronous>, transform_indices = @transform_3, window_bounds = array<i64: 8, 128>}, {pipeline_mode = #tpu.pipeline_mode<synchronous>, transform_indices = @transform_4, window_bounds = array<i64: 8, 128>}]} {
    %c0_i32 = arith.constant 0 : i32
    %0 = arith.cmpi eq, %arg0, %c0_i32 : i32
    %1 = arith.extui %0 : i1 to i32
    %c0_i32_0 = arith.constant 0 : i32
    %2 = arith.cmpi ne, %1, %c0_i32_0 : i32
    scf.if %2 {
      %cst_90 = arith.constant 0.000000e+00 : f32
      %314 = vector.broadcast %cst_90 : f32 to vector<8x128xf32>
      %c0_91 = arith.constant 0 : index
      %c0_92 = arith.constant 0 : index
      %315 = vector.load %arg6[%c0_91, %c0_92] : memref<8x128xf32, #tpu.memory_space<vmem>>, vector<8x128xf32>
      tpu.vector_store %arg6[%c0_91, %c0_92], %314 {strides = array<i32>} : memref<8x128xf32, #tpu.memory_space<vmem>>, vector<8x128xf32>,
      %cst_93 = arith.constant 0.000000e+00 : f32
      %316 = vector.broadcast %cst_93 : f32 to vector<8x128xf32>
      %c0_94 = arith.constant 0 : index
      %c0_95 = arith.constant 0 : index
      %317 = vector.load %arg7[%c0_94, %c0_95] : memref<8x128xf32, #tpu.memory_space<vmem>>, vector<8x128xf32>
      tpu.vector_store %arg7[%c0_94, %c0_95], %316 {strides = array<i32>} : memref<8x128xf32, #tpu.memory_space<vmem>>, vector<8x128xf32>,
    } else {
    }
    %c0 = arith.constant 0 : index
    %c0_1 = arith.constant 0 : index
    %3 = vector.load %arg6[%c0, %c0_1] : memref<8x128xf32, #tpu.memory_space<vmem>>, vector<8x128xf32>
    %c0_2 = arith.constant 0 : index
    %c0_3 = arith.constant 0 : index
    %4 = vector.load %arg7[%c0_2, %c0_3] : memref<8x128xf32, #tpu.memory_space<vmem>>, vector<8x128xf32>
    %c0_i32_4 = arith.constant 0 : i32
    %5 = arith.index_cast %c0_i32_4 : i32 to index
    %c0_5 = arith.constant 0 : index
    %c0_6 = arith.constant 0 : index
    %6 = vector.load %arg1[%5, %c0_5, %c0_6] : memref<8x8x512xbf16, #tpu.memory_space<vmem>>, vector<1x8x512xbf16>
    %7 = vector.shape_cast %6 : vector<1x8x512xbf16> to vector<8x512xbf16>
    %8 = arith.extf %7 : vector<8x512xbf16> to vector<8x512xf32>
    %9 = arith.truncf %3 : vector<8x128xf32> to vector<8x128xbf16>
    %c0_7 = arith.constant 0 : index
    %c0_8 = arith.constant 0 : index
    %10 = vector.load %arg2[%c0_7, %c0_8] : memref<128x512xbf16, #tpu.memory_space<vmem>>, vector<128x512xbf16>
    %cst = arith.constant dense<0.000000e+00> : vector<8x512xf32>
    %11 = tpu.matmul %9, %10, %cst {dimension_numbers = #tpu.dot_dimension_numbers<[1], [0], [0], [1], [0, 0, 1, 1], [], []>} : vector<8x128xbf16>, vector<128x512xbf16>, vector<8x512xf32> -> vector<8x512xf32>
    %12 = arith.addf %8, %11 : vector<8x512xf32>
    %13 = vector.extract_strided_slice %12 {offsets = [0, 0], sizes = [8, 128], strides = [1, 1]} : vector<8x512xf32> to vector<8x128xf32>
    %14 = arith.negf %13 : vector<8x128xf32>
    %15 = math.exp %14 : vector<8x128xf32>
    %cst_9 = arith.constant 1.000000e+00 : f32
    %16 = vector.broadcast %cst_9 : f32 to vector<8x128xf32>
    %17 = arith.addf %16, %15 : vector<8x128xf32>
    %18 = arith.divf %16, %17 : vector<8x128xf32>
    %19 = vector.extract_strided_slice %12 {offsets = [0, 128], sizes = [8, 128], strides = [1, 1]} : vector<8x512xf32> to vector<8x128xf32>
    %20 = arith.negf %19 : vector<8x128xf32>
    %21 = math.exp %20 : vector<8x128xf32>
    %cst_10 = arith.constant 1.000000e+00 : f32
    %22 = vector.broadcast %cst_10 : f32 to vector<8x128xf32>
    %23 = arith.addf %22, %21 : vector<8x128xf32>
    %24 = arith.divf %22, %23 : vector<8x128xf32>
    %25 = vector.extract_strided_slice %12 {offsets = [0, 256], sizes = [8, 128], strides = [1, 1]} : vector<8x512xf32> to vector<8x128xf32>
    %26 = math.tanh %25 : vector<8x128xf32>
    %27 = vector.extract_strided_slice %12 {offsets = [0, 384], sizes = [8, 128], strides = [1, 1]} : vector<8x512xf32> to vector<8x128xf32>
    %28 = arith.negf %27 : vector<8x128xf32>
    %29 = math.exp %28 : vector<8x128xf32>
    %cst_11 = arith.constant 1.000000e+00 : f32
    %30 = vector.broadcast %cst_11 : f32 to vector<8x128xf32>
    %31 = arith.addf %30, %29 : vector<8x128xf32>
    %32 = arith.divf %30, %31 : vector<8x128xf32>
    %33 = arith.mulf %24, %4 : vector<8x128xf32>
    %34 = arith.mulf %18, %26 : vector<8x128xf32>
    %35 = arith.addf %33, %34 : vector<8x128xf32>
    %36 = math.tanh %35 : vector<8x128xf32>
    %37 = arith.mulf %32, %36 : vector<8x128xf32>
    %38 = arith.truncf %37 : vector<8x128xf32> to vector<8x128xbf16>
    %39 = arith.index_cast %c0_i32_4 : i32 to index
    %c0_12 = arith.constant 0 : index
    %c0_13 = arith.constant 0 : index
    %40 = vector.load %arg3[%39, %c0_12, %c0_13] : memref<8x8x128xbf16, #tpu.memory_space<vmem>>, vector<1x8x128xbf16>
    %41 = vector.shape_cast %40 : vector<1x8x128xbf16> to vector<8x128xbf16>
    %42 = vector.shape_cast %38 : vector<8x128xbf16> to vector<1x8x128xbf16>
    tpu.vector_store %arg3[%39, %c0_12, %c0_13], %42 {strides = array<i32>} : memref<8x8x128xbf16, #tpu.memory_space<vmem>>, vector<1x8x128xbf16>,
    %c1_i32 = arith.constant 1 : i32
    %43 = arith.index_cast %c1_i32 : i32 to index
    %c0_14 = arith.constant 0 : index
    %c0_15 = arith.constant 0 : index
    %44 = vector.load %arg1[%43, %c0_14, %c0_15] : memref<8x8x512xbf16, #tpu.memory_space<vmem>>, vector<1x8x512xbf16>
    %45 = vector.shape_cast %44 : vector<1x8x512xbf16> to vector<8x512xbf16>
    %46 = arith.extf %45 : vector<8x512xbf16> to vector<8x512xf32>
    %47 = arith.truncf %37 : vector<8x128xf32> to vector<8x128xbf16>
    %c0_16 = arith.constant 0 : index
    %c0_17 = arith.constant 0 : index
    %48 = vector.load %arg2[%c0_16, %c0_17] : memref<128x512xbf16, #tpu.memory_space<vmem>>, vector<128x512xbf16>
    %cst_18 = arith.constant dense<0.000000e+00> : vector<8x512xf32>
    %49 = tpu.matmul %47, %48, %cst_18 {dimension_numbers = #tpu.dot_dimension_numbers<[1], [0], [0], [1], [0, 0, 1, 1], [], []>} : vector<8x128xbf16>, vector<128x512xbf16>, vector<8x512xf32> -> vector<8x512xf32>
    %50 = arith.addf %46, %49 : vector<8x512xf32>
    %51 = vector.extract_strided_slice %50 {offsets = [0, 0], sizes = [8, 128], strides = [1, 1]} : vector<8x512xf32> to vector<8x128xf32>
    %52 = arith.negf %51 : vector<8x128xf32>
    %53 = math.exp %52 : vector<8x128xf32>
    %cst_19 = arith.constant 1.000000e+00 : f32
    %54 = vector.broadcast %cst_19 : f32 to vector<8x128xf32>
    %55 = arith.addf %54, %53 : vector<8x128xf32>
    %56 = arith.divf %54, %55 : vector<8x128xf32>
    %57 = vector.extract_strided_slice %50 {offsets = [0, 128], sizes = [8, 128], strides = [1, 1]} : vector<8x512xf32> to vector<8x128xf32>
    %58 = arith.negf %57 : vector<8x128xf32>
    %59 = math.exp %58 : vector<8x128xf32>
    %cst_20 = arith.constant 1.000000e+00 : f32
    %60 = vector.broadcast %cst_20 : f32 to vector<8x128xf32>
    %61 = arith.addf %60, %59 : vector<8x128xf32>
    %62 = arith.divf %60, %61 : vector<8x128xf32>
    %63 = vector.extract_strided_slice %50 {offsets = [0, 256], sizes = [8, 128], strides = [1, 1]} : vector<8x512xf32> to vector<8x128xf32>
    %64 = math.tanh %63 : vector<8x128xf32>
    %65 = vector.extract_strided_slice %50 {offsets = [0, 384], sizes = [8, 128], strides = [1, 1]} : vector<8x512xf32> to vector<8x128xf32>
    %66 = arith.negf %65 : vector<8x128xf32>
    %67 = math.exp %66 : vector<8x128xf32>
    %cst_21 = arith.constant 1.000000e+00 : f32
    %68 = vector.broadcast %cst_21 : f32 to vector<8x128xf32>
    %69 = arith.addf %68, %67 : vector<8x128xf32>
    %70 = arith.divf %68, %69 : vector<8x128xf32>
    %71 = arith.mulf %62, %35 : vector<8x128xf32>
    %72 = arith.mulf %56, %64 : vector<8x128xf32>
    %73 = arith.addf %71, %72 : vector<8x128xf32>
    %74 = math.tanh %73 : vector<8x128xf32>
    %75 = arith.mulf %70, %74 : vector<8x128xf32>
    %76 = arith.truncf %75 : vector<8x128xf32> to vector<8x128xbf16>
    %77 = arith.index_cast %c1_i32 : i32 to index
    %c0_22 = arith.constant 0 : index
    %c0_23 = arith.constant 0 : index
    %78 = vector.load %arg3[%77, %c0_22, %c0_23] : memref<8x8x128xbf16, #tpu.memory_space<vmem>>, vector<1x8x128xbf16>
    %79 = vector.shape_cast %78 : vector<1x8x128xbf16> to vector<8x128xbf16>
    %80 = vector.shape_cast %76 : vector<8x128xbf16> to vector<1x8x128xbf16>
    tpu.vector_store %arg3[%77, %c0_22, %c0_23], %80 {strides = array<i32>} : memref<8x8x128xbf16, #tpu.memory_space<vmem>>, vector<1x8x128xbf16>,
    %c2_i32 = arith.constant 2 : i32
    %81 = arith.index_cast %c2_i32 : i32 to index
    %c0_24 = arith.constant 0 : index
    %c0_25 = arith.constant 0 : index
    %82 = vector.load %arg1[%81, %c0_24, %c0_25] : memref<8x8x512xbf16, #tpu.memory_space<vmem>>, vector<1x8x512xbf16>
    %83 = vector.shape_cast %82 : vector<1x8x512xbf16> to vector<8x512xbf16>
    %84 = arith.extf %83 : vector<8x512xbf16> to vector<8x512xf32>
    %85 = arith.truncf %75 : vector<8x128xf32> to vector<8x128xbf16>
    %c0_26 = arith.constant 0 : index
    %c0_27 = arith.constant 0 : index
    %86 = vector.load %arg2[%c0_26, %c0_27] : memref<128x512xbf16, #tpu.memory_space<vmem>>, vector<128x512xbf16>
    %cst_28 = arith.constant dense<0.000000e+00> : vector<8x512xf32>
    %87 = tpu.matmul %85, %86, %cst_28 {dimension_numbers = #tpu.dot_dimension_numbers<[1], [0], [0], [1], [0, 0, 1, 1], [], []>} : vector<8x128xbf16>, vector<128x512xbf16>, vector<8x512xf32> -> vector<8x512xf32>
    %88 = arith.addf %84, %87 : vector<8x512xf32>
    %89 = vector.extract_strided_slice %88 {offsets = [0, 0], sizes = [8, 128], strides = [1, 1]} : vector<8x512xf32> to vector<8x128xf32>
    %90 = arith.negf %89 : vector<8x128xf32>
    %91 = math.exp %90 : vector<8x128xf32>
    %cst_29 = arith.constant 1.000000e+00 : f32
    %92 = vector.broadcast %cst_29 : f32 to vector<8x128xf32>
    %93 = arith.addf %92, %91 : vector<8x128xf32>
    %94 = arith.divf %92, %93 : vector<8x128xf32>
    %95 = vector.extract_strided_slice %88 {offsets = [0, 128], sizes = [8, 128], strides = [1, 1]} : vector<8x512xf32> to vector<8x128xf32>
    %96 = arith.negf %95 : vector<8x128xf32>
    %97 = math.exp %96 : vector<8x128xf32>
    %cst_30 = arith.constant 1.000000e+00 : f32
    %98 = vector.broadcast %cst_30 : f32 to vector<8x128xf32>
    %99 = arith.addf %98, %97 : vector<8x128xf32>
    %100 = arith.divf %98, %99 : vector<8x128xf32>
    %101 = vector.extract_strided_slice %88 {offsets = [0, 256], sizes = [8, 128], strides = [1, 1]} : vector<8x512xf32> to vector<8x128xf32>
    %102 = math.tanh %101 : vector<8x128xf32>
    %103 = vector.extract_strided_slice %88 {offsets = [0, 384], sizes = [8, 128], strides = [1, 1]} : vector<8x512xf32> to vector<8x128xf32>
    %104 = arith.negf %103 : vector<8x128xf32>
    %105 = math.exp %104 : vector<8x128xf32>
    %cst_31 = arith.constant 1.000000e+00 : f32
    %106 = vector.broadcast %cst_31 : f32 to vector<8x128xf32>
    %107 = arith.addf %106, %105 : vector<8x128xf32>
    %108 = arith.divf %106, %107 : vector<8x128xf32>
    %109 = arith.mulf %100, %73 : vector<8x128xf32>
    %110 = arith.mulf %94, %102 : vector<8x128xf32>
    %111 = arith.addf %109, %110 : vector<8x128xf32>
    %112 = math.tanh %111 : vector<8x128xf32>
    %113 = arith.mulf %108, %112 : vector<8x128xf32>
    %114 = arith.truncf %113 : vector<8x128xf32> to vector<8x128xbf16>
    %115 = arith.index_cast %c2_i32 : i32 to index
    %c0_32 = arith.constant 0 : index
    %c0_33 = arith.constant 0 : index
    %116 = vector.load %arg3[%115, %c0_32, %c0_33] : memref<8x8x128xbf16, #tpu.memory_space<vmem>>, vector<1x8x128xbf16>
    %117 = vector.shape_cast %116 : vector<1x8x128xbf16> to vector<8x128xbf16>
    %118 = vector.shape_cast %114 : vector<8x128xbf16> to vector<1x8x128xbf16>
    tpu.vector_store %arg3[%115, %c0_32, %c0_33], %118 {strides = array<i32>} : memref<8x8x128xbf16, #tpu.memory_space<vmem>>, vector<1x8x128xbf16>,
    %c3_i32 = arith.constant 3 : i32
    %119 = arith.index_cast %c3_i32 : i32 to index
    %c0_34 = arith.constant 0 : index
    %c0_35 = arith.constant 0 : index
    %120 = vector.load %arg1[%119, %c0_34, %c0_35] : memref<8x8x512xbf16, #tpu.memory_space<vmem>>, vector<1x8x512xbf16>
    %121 = vector.shape_cast %120 : vector<1x8x512xbf16> to vector<8x512xbf16>
    %122 = arith.extf %121 : vector<8x512xbf16> to vector<8x512xf32>
    %123 = arith.truncf %113 : vector<8x128xf32> to vector<8x128xbf16>
    %c0_36 = arith.constant 0 : index
    %c0_37 = arith.constant 0 : index
    %124 = vector.load %arg2[%c0_36, %c0_37] : memref<128x512xbf16, #tpu.memory_space<vmem>>, vector<128x512xbf16>
    %cst_38 = arith.constant dense<0.000000e+00> : vector<8x512xf32>
    %125 = tpu.matmul %123, %124, %cst_38 {dimension_numbers = #tpu.dot_dimension_numbers<[1], [0], [0], [1], [0, 0, 1, 1], [], []>} : vector<8x128xbf16>, vector<128x512xbf16>, vector<8x512xf32> -> vector<8x512xf32>
    %126 = arith.addf %122, %125 : vector<8x512xf32>
    %127 = vector.extract_strided_slice %126 {offsets = [0, 0], sizes = [8, 128], strides = [1, 1]} : vector<8x512xf32> to vector<8x128xf32>
    %128 = arith.negf %127 : vector<8x128xf32>
    %129 = math.exp %128 : vector<8x128xf32>
    %cst_39 = arith.constant 1.000000e+00 : f32
    %130 = vector.broadcast %cst_39 : f32 to vector<8x128xf32>
    %131 = arith.addf %130, %129 : vector<8x128xf32>
    %132 = arith.divf %130, %131 : vector<8x128xf32>
    %133 = vector.extract_strided_slice %126 {offsets = [0, 128], sizes = [8, 128], strides = [1, 1]} : vector<8x512xf32> to vector<8x128xf32>
    %134 = arith.negf %133 : vector<8x128xf32>
    %135 = math.exp %134 : vector<8x128xf32>
    %cst_40 = arith.constant 1.000000e+00 : f32
    %136 = vector.broadcast %cst_40 : f32 to vector<8x128xf32>
    %137 = arith.addf %136, %135 : vector<8x128xf32>
    %138 = arith.divf %136, %137 : vector<8x128xf32>
    %139 = vector.extract_strided_slice %126 {offsets = [0, 256], sizes = [8, 128], strides = [1, 1]} : vector<8x512xf32> to vector<8x128xf32>
    %140 = math.tanh %139 : vector<8x128xf32>
    %141 = vector.extract_strided_slice %126 {offsets = [0, 384], sizes = [8, 128], strides = [1, 1]} : vector<8x512xf32> to vector<8x128xf32>
    %142 = arith.negf %141 : vector<8x128xf32>
    %143 = math.exp %142 : vector<8x128xf32>
    %cst_41 = arith.constant 1.000000e+00 : f32
    %144 = vector.broadcast %cst_41 : f32 to vector<8x128xf32>
    %145 = arith.addf %144, %143 : vector<8x128xf32>
    %146 = arith.divf %144, %145 : vector<8x128xf32>
    %147 = arith.mulf %138, %111 : vector<8x128xf32>
    %148 = arith.mulf %132, %140 : vector<8x128xf32>
    %149 = arith.addf %147, %148 : vector<8x128xf32>
    %150 = math.tanh %149 : vector<8x128xf32>
    %151 = arith.mulf %146, %150 : vector<8x128xf32>
    %152 = arith.truncf %151 : vector<8x128xf32> to vector<8x128xbf16>
    %153 = arith.index_cast %c3_i32 : i32 to index
    %c0_42 = arith.constant 0 : index
    %c0_43 = arith.constant 0 : index
    %154 = vector.load %arg3[%153, %c0_42, %c0_43] : memref<8x8x128xbf16, #tpu.memory_space<vmem>>, vector<1x8x128xbf16>
    %155 = vector.shape_cast %154 : vector<1x8x128xbf16> to vector<8x128xbf16>
    %156 = vector.shape_cast %152 : vector<8x128xbf16> to vector<1x8x128xbf16>
    tpu.vector_store %arg3[%153, %c0_42, %c0_43], %156 {strides = array<i32>} : memref<8x8x128xbf16, #tpu.memory_space<vmem>>, vector<1x8x128xbf16>,
    %c4_i32 = arith.constant 4 : i32
    %157 = arith.index_cast %c4_i32 : i32 to index
    %c0_44 = arith.constant 0 : index
    %c0_45 = arith.constant 0 : index
    %158 = vector.load %arg1[%157, %c0_44, %c0_45] : memref<8x8x512xbf16, #tpu.memory_space<vmem>>, vector<1x8x512xbf16>
    %159 = vector.shape_cast %158 : vector<1x8x512xbf16> to vector<8x512xbf16>
    %160 = arith.extf %159 : vector<8x512xbf16> to vector<8x512xf32>
    %161 = arith.truncf %151 : vector<8x128xf32> to vector<8x128xbf16>
    %c0_46 = arith.constant 0 : index
    %c0_47 = arith.constant 0 : index
    %162 = vector.load %arg2[%c0_46, %c0_47] : memref<128x512xbf16, #tpu.memory_space<vmem>>, vector<128x512xbf16>
    %cst_48 = arith.constant dense<0.000000e+00> : vector<8x512xf32>
    %163 = tpu.matmul %161, %162, %cst_48 {dimension_numbers = #tpu.dot_dimension_numbers<[1], [0], [0], [1], [0, 0, 1, 1], [], []>} : vector<8x128xbf16>, vector<128x512xbf16>, vector<8x512xf32> -> vector<8x512xf32>
    %164 = arith.addf %160, %163 : vector<8x512xf32>
    %165 = vector.extract_strided_slice %164 {offsets = [0, 0], sizes = [8, 128], strides = [1, 1]} : vector<8x512xf32> to vector<8x128xf32>
    %166 = arith.negf %165 : vector<8x128xf32>
    %167 = math.exp %166 : vector<8x128xf32>
    %cst_49 = arith.constant 1.000000e+00 : f32
    %168 = vector.broadcast %cst_49 : f32 to vector<8x128xf32>
    %169 = arith.addf %168, %167 : vector<8x128xf32>
    %170 = arith.divf %168, %169 : vector<8x128xf32>
    %171 = vector.extract_strided_slice %164 {offsets = [0, 128], sizes = [8, 128], strides = [1, 1]} : vector<8x512xf32> to vector<8x128xf32>
    %172 = arith.negf %171 : vector<8x128xf32>
    %173 = math.exp %172 : vector<8x128xf32>
    %cst_50 = arith.constant 1.000000e+00 : f32
    %174 = vector.broadcast %cst_50 : f32 to vector<8x128xf32>
    %175 = arith.addf %174, %173 : vector<8x128xf32>
    %176 = arith.divf %174, %175 : vector<8x128xf32>
    %177 = vector.extract_strided_slice %164 {offsets = [0, 256], sizes = [8, 128], strides = [1, 1]} : vector<8x512xf32> to vector<8x128xf32>
    %178 = math.tanh %177 : vector<8x128xf32>
    %179 = vector.extract_strided_slice %164 {offsets = [0, 384], sizes = [8, 128], strides = [1, 1]} : vector<8x512xf32> to vector<8x128xf32>
    %180 = arith.negf %179 : vector<8x128xf32>
    %181 = math.exp %180 : vector<8x128xf32>
    %cst_51 = arith.constant 1.000000e+00 : f32
    %182 = vector.broadcast %cst_51 : f32 to vector<8x128xf32>
    %183 = arith.addf %182, %181 : vector<8x128xf32>
    %184 = arith.divf %182, %183 : vector<8x128xf32>
    %185 = arith.mulf %176, %149 : vector<8x128xf32>
    %186 = arith.mulf %170, %178 : vector<8x128xf32>
    %187 = arith.addf %185, %186 : vector<8x128xf32>
    %188 = math.tanh %187 : vector<8x128xf32>
    %189 = arith.mulf %184, %188 : vector<8x128xf32>
    %190 = arith.truncf %189 : vector<8x128xf32> to vector<8x128xbf16>
    %191 = arith.index_cast %c4_i32 : i32 to index
    %c0_52 = arith.constant 0 : index
    %c0_53 = arith.constant 0 : index
    %192 = vector.load %arg3[%191, %c0_52, %c0_53] : memref<8x8x128xbf16, #tpu.memory_space<vmem>>, vector<1x8x128xbf16>
    %193 = vector.shape_cast %192 : vector<1x8x128xbf16> to vector<8x128xbf16>
    %194 = vector.shape_cast %190 : vector<8x128xbf16> to vector<1x8x128xbf16>
    tpu.vector_store %arg3[%191, %c0_52, %c0_53], %194 {strides = array<i32>} : memref<8x8x128xbf16, #tpu.memory_space<vmem>>, vector<1x8x128xbf16>,
    %c5_i32 = arith.constant 5 : i32
    %195 = arith.index_cast %c5_i32 : i32 to index
    %c0_54 = arith.constant 0 : index
    %c0_55 = arith.constant 0 : index
    %196 = vector.load %arg1[%195, %c0_54, %c0_55] : memref<8x8x512xbf16, #tpu.memory_space<vmem>>, vector<1x8x512xbf16>
    %197 = vector.shape_cast %196 : vector<1x8x512xbf16> to vector<8x512xbf16>
    %198 = arith.extf %197 : vector<8x512xbf16> to vector<8x512xf32>
    %199 = arith.truncf %189 : vector<8x128xf32> to vector<8x128xbf16>
    %c0_56 = arith.constant 0 : index
    %c0_57 = arith.constant 0 : index
    %200 = vector.load %arg2[%c0_56, %c0_57] : memref<128x512xbf16, #tpu.memory_space<vmem>>, vector<128x512xbf16>
    %cst_58 = arith.constant dense<0.000000e+00> : vector<8x512xf32>
    %201 = tpu.matmul %199, %200, %cst_58 {dimension_numbers = #tpu.dot_dimension_numbers<[1], [0], [0], [1], [0, 0, 1, 1], [], []>} : vector<8x128xbf16>, vector<128x512xbf16>, vector<8x512xf32> -> vector<8x512xf32>
    %202 = arith.addf %198, %201 : vector<8x512xf32>
    %203 = vector.extract_strided_slice %202 {offsets = [0, 0], sizes = [8, 128], strides = [1, 1]} : vector<8x512xf32> to vector<8x128xf32>
    %204 = arith.negf %203 : vector<8x128xf32>
    %205 = math.exp %204 : vector<8x128xf32>
    %cst_59 = arith.constant 1.000000e+00 : f32
    %206 = vector.broadcast %cst_59 : f32 to vector<8x128xf32>
    %207 = arith.addf %206, %205 : vector<8x128xf32>
    %208 = arith.divf %206, %207 : vector<8x128xf32>
    %209 = vector.extract_strided_slice %202 {offsets = [0, 128], sizes = [8, 128], strides = [1, 1]} : vector<8x512xf32> to vector<8x128xf32>
    %210 = arith.negf %209 : vector<8x128xf32>
    %211 = math.exp %210 : vector<8x128xf32>
    %cst_60 = arith.constant 1.000000e+00 : f32
    %212 = vector.broadcast %cst_60 : f32 to vector<8x128xf32>
    %213 = arith.addf %212, %211 : vector<8x128xf32>
    %214 = arith.divf %212, %213 : vector<8x128xf32>
    %215 = vector.extract_strided_slice %202 {offsets = [0, 256], sizes = [8, 128], strides = [1, 1]} : vector<8x512xf32> to vector<8x128xf32>
    %216 = math.tanh %215 : vector<8x128xf32>
    %217 = vector.extract_strided_slice %202 {offsets = [0, 384], sizes = [8, 128], strides = [1, 1]} : vector<8x512xf32> to vector<8x128xf32>
    %218 = arith.negf %217 : vector<8x128xf32>
    %219 = math.exp %218 : vector<8x128xf32>
    %cst_61 = arith.constant 1.000000e+00 : f32
    %220 = vector.broadcast %cst_61 : f32 to vector<8x128xf32>
    %221 = arith.addf %220, %219 : vector<8x128xf32>
    %222 = arith.divf %220, %221 : vector<8x128xf32>
    %223 = arith.mulf %214, %187 : vector<8x128xf32>
    %224 = arith.mulf %208, %216 : vector<8x128xf32>
    %225 = arith.addf %223, %224 : vector<8x128xf32>
    %226 = math.tanh %225 : vector<8x128xf32>
    %227 = arith.mulf %222, %226 : vector<8x128xf32>
    %228 = arith.truncf %227 : vector<8x128xf32> to vector<8x128xbf16>
    %229 = arith.index_cast %c5_i32 : i32 to index
    %c0_62 = arith.constant 0 : index
    %c0_63 = arith.constant 0 : index
    %230 = vector.load %arg3[%229, %c0_62, %c0_63] : memref<8x8x128xbf16, #tpu.memory_space<vmem>>, vector<1x8x128xbf16>
    %231 = vector.shape_cast %230 : vector<1x8x128xbf16> to vector<8x128xbf16>
    %232 = vector.shape_cast %228 : vector<8x128xbf16> to vector<1x8x128xbf16>
    tpu.vector_store %arg3[%229, %c0_62, %c0_63], %232 {strides = array<i32>} : memref<8x8x128xbf16, #tpu.memory_space<vmem>>, vector<1x8x128xbf16>,
    %c6_i32 = arith.constant 6 : i32
    %233 = arith.index_cast %c6_i32 : i32 to index
    %c0_64 = arith.constant 0 : index
    %c0_65 = arith.constant 0 : index
    %234 = vector.load %arg1[%233, %c0_64, %c0_65] : memref<8x8x512xbf16, #tpu.memory_space<vmem>>, vector<1x8x512xbf16>
    %235 = vector.shape_cast %234 : vector<1x8x512xbf16> to vector<8x512xbf16>
    %236 = arith.extf %235 : vector<8x512xbf16> to vector<8x512xf32>
    %237 = arith.truncf %227 : vector<8x128xf32> to vector<8x128xbf16>
    %c0_66 = arith.constant 0 : index
    %c0_67 = arith.constant 0 : index
    %238 = vector.load %arg2[%c0_66, %c0_67] : memref<128x512xbf16, #tpu.memory_space<vmem>>, vector<128x512xbf16>
    %cst_68 = arith.constant dense<0.000000e+00> : vector<8x512xf32>
    %239 = tpu.matmul %237, %238, %cst_68 {dimension_numbers = #tpu.dot_dimension_numbers<[1], [0], [0], [1], [0, 0, 1, 1], [], []>} : vector<8x128xbf16>, vector<128x512xbf16>, vector<8x512xf32> -> vector<8x512xf32>
    %240 = arith.addf %236, %239 : vector<8x512xf32>
    %241 = vector.extract_strided_slice %240 {offsets = [0, 0], sizes = [8, 128], strides = [1, 1]} : vector<8x512xf32> to vector<8x128xf32>
    %242 = arith.negf %241 : vector<8x128xf32>
    %243 = math.exp %242 : vector<8x128xf32>
    %cst_69 = arith.constant 1.000000e+00 : f32
    %244 = vector.broadcast %cst_69 : f32 to vector<8x128xf32>
    %245 = arith.addf %244, %243 : vector<8x128xf32>
    %246 = arith.divf %244, %245 : vector<8x128xf32>
    %247 = vector.extract_strided_slice %240 {offsets = [0, 128], sizes = [8, 128], strides = [1, 1]} : vector<8x512xf32> to vector<8x128xf32>
    %248 = arith.negf %247 : vector<8x128xf32>
    %249 = math.exp %248 : vector<8x128xf32>
    %cst_70 = arith.constant 1.000000e+00 : f32
    %250 = vector.broadcast %cst_70 : f32 to vector<8x128xf32>
    %251 = arith.addf %250, %249 : vector<8x128xf32>
    %252 = arith.divf %250, %251 : vector<8x128xf32>
    %253 = vector.extract_strided_slice %240 {offsets = [0, 256], sizes = [8, 128], strides = [1, 1]} : vector<8x512xf32> to vector<8x128xf32>
    %254 = math.tanh %253 : vector<8x128xf32>
    %255 = vector.extract_strided_slice %240 {offsets = [0, 384], sizes = [8, 128], strides = [1, 1]} : vector<8x512xf32> to vector<8x128xf32>
    %256 = arith.negf %255 : vector<8x128xf32>
    %257 = math.exp %256 : vector<8x128xf32>
    %cst_71 = arith.constant 1.000000e+00 : f32
    %258 = vector.broadcast %cst_71 : f32 to vector<8x128xf32>
    %259 = arith.addf %258, %257 : vector<8x128xf32>
    %260 = arith.divf %258, %259 : vector<8x128xf32>
    %261 = arith.mulf %252, %225 : vector<8x128xf32>
    %262 = arith.mulf %246, %254 : vector<8x128xf32>
    %263 = arith.addf %261, %262 : vector<8x128xf32>
    %264 = math.tanh %263 : vector<8x128xf32>
    %265 = arith.mulf %260, %264 : vector<8x128xf32>
    %266 = arith.truncf %265 : vector<8x128xf32> to vector<8x128xbf16>
    %267 = arith.index_cast %c6_i32 : i32 to index
    %c0_72 = arith.constant 0 : index
    %c0_73 = arith.constant 0 : index
    %268 = vector.load %arg3[%267, %c0_72, %c0_73] : memref<8x8x128xbf16, #tpu.memory_space<vmem>>, vector<1x8x128xbf16>
    %269 = vector.shape_cast %268 : vector<1x8x128xbf16> to vector<8x128xbf16>
    %270 = vector.shape_cast %266 : vector<8x128xbf16> to vector<1x8x128xbf16>
    tpu.vector_store %arg3[%267, %c0_72, %c0_73], %270 {strides = array<i32>} : memref<8x8x128xbf16, #tpu.memory_space<vmem>>, vector<1x8x128xbf16>,
    %c7_i32 = arith.constant 7 : i32
    %271 = arith.index_cast %c7_i32 : i32 to index
    %c0_74 = arith.constant 0 : index
    %c0_75 = arith.constant 0 : index
    %272 = vector.load %arg1[%271, %c0_74, %c0_75] : memref<8x8x512xbf16, #tpu.memory_space<vmem>>, vector<1x8x512xbf16>
    %273 = vector.shape_cast %272 : vector<1x8x512xbf16> to vector<8x512xbf16>
    %274 = arith.extf %273 : vector<8x512xbf16> to vector<8x512xf32>
    %275 = arith.truncf %265 : vector<8x128xf32> to vector<8x128xbf16>
    %c0_76 = arith.constant 0 : index
    %c0_77 = arith.constant 0 : index
    %276 = vector.load %arg2[%c0_76, %c0_77] : memref<128x512xbf16, #tpu.memory_space<vmem>>, vector<128x512xbf16>
    %cst_78 = arith.constant dense<0.000000e+00> : vector<8x512xf32>
    %277 = tpu.matmul %275, %276, %cst_78 {dimension_numbers = #tpu.dot_dimension_numbers<[1], [0], [0], [1], [0, 0, 1, 1], [], []>} : vector<8x128xbf16>, vector<128x512xbf16>, vector<8x512xf32> -> vector<8x512xf32>
    %278 = arith.addf %274, %277 : vector<8x512xf32>
    %279 = vector.extract_strided_slice %278 {offsets = [0, 0], sizes = [8, 128], strides = [1, 1]} : vector<8x512xf32> to vector<8x128xf32>
    %280 = arith.negf %279 : vector<8x128xf32>
    %281 = math.exp %280 : vector<8x128xf32>
    %cst_79 = arith.constant 1.000000e+00 : f32
    %282 = vector.broadcast %cst_79 : f32 to vector<8x128xf32>
    %283 = arith.addf %282, %281 : vector<8x128xf32>
    %284 = arith.divf %282, %283 : vector<8x128xf32>
    %285 = vector.extract_strided_slice %278 {offsets = [0, 128], sizes = [8, 128], strides = [1, 1]} : vector<8x512xf32> to vector<8x128xf32>
    %286 = arith.negf %285 : vector<8x128xf32>
    %287 = math.exp %286 : vector<8x128xf32>
    %cst_80 = arith.constant 1.000000e+00 : f32
    %288 = vector.broadcast %cst_80 : f32 to vector<8x128xf32>
    %289 = arith.addf %288, %287 : vector<8x128xf32>
    %290 = arith.divf %288, %289 : vector<8x128xf32>
    %291 = vector.extract_strided_slice %278 {offsets = [0, 256], sizes = [8, 128], strides = [1, 1]} : vector<8x512xf32> to vector<8x128xf32>
    %292 = math.tanh %291 : vector<8x128xf32>
    %293 = vector.extract_strided_slice %278 {offsets = [0, 384], sizes = [8, 128], strides = [1, 1]} : vector<8x512xf32> to vector<8x128xf32>
    %294 = arith.negf %293 : vector<8x128xf32>
    %295 = math.exp %294 : vector<8x128xf32>
    %cst_81 = arith.constant 1.000000e+00 : f32
    %296 = vector.broadcast %cst_81 : f32 to vector<8x128xf32>
    %297 = arith.addf %296, %295 : vector<8x128xf32>
    %298 = arith.divf %296, %297 : vector<8x128xf32>
    %299 = arith.mulf %290, %263 : vector<8x128xf32>
    %300 = arith.mulf %284, %292 : vector<8x128xf32>
    %301 = arith.addf %299, %300 : vector<8x128xf32>
    %302 = math.tanh %301 : vector<8x128xf32>
    %303 = arith.mulf %298, %302 : vector<8x128xf32>
    %304 = arith.truncf %303 : vector<8x128xf32> to vector<8x128xbf16>
    %305 = arith.index_cast %c7_i32 : i32 to index
    %c0_82 = arith.constant 0 : index
    %c0_83 = arith.constant 0 : index
    %306 = vector.load %arg3[%305, %c0_82, %c0_83] : memref<8x8x128xbf16, #tpu.memory_space<vmem>>, vector<1x8x128xbf16>
    %307 = vector.shape_cast %306 : vector<1x8x128xbf16> to vector<8x128xbf16>
    %308 = vector.shape_cast %304 : vector<8x128xbf16> to vector<1x8x128xbf16>
    tpu.vector_store %arg3[%305, %c0_82, %c0_83], %308 {strides = array<i32>} : memref<8x8x128xbf16, #tpu.memory_space<vmem>>, vector<1x8x128xbf16>,
    %c8_i32 = arith.constant 8 : i32
    %c0_84 = arith.constant 0 : index
    %c0_85 = arith.constant 0 : index
    %309 = vector.load %arg6[%c0_84, %c0_85] : memref<8x128xf32, #tpu.memory_space<vmem>>, vector<8x128xf32>
    tpu.vector_store %arg6[%c0_84, %c0_85], %303 {strides = array<i32>} : memref<8x128xf32, #tpu.memory_space<vmem>>, vector<8x128xf32>,
    %c0_86 = arith.constant 0 : index
    %c0_87 = arith.constant 0 : index
    %310 = vector.load %arg7[%c0_86, %c0_87] : memref<8x128xf32, #tpu.memory_space<vmem>>, vector<8x128xf32>
    tpu.vector_store %arg7[%c0_86, %c0_87], %301 {strides = array<i32>} : memref<8x128xf32, #tpu.memory_space<vmem>>, vector<8x128xf32>,
    %c0_i32_88 = arith.constant 0 : i32
    %311 = arith.cmpi eq, %arg0, %c0_i32_88 : i32
    %312 = arith.extui %311 : i1 to i32
    %c0_i32_89 = arith.constant 0 : i32
    %313 = arith.cmpi ne, %312, %c0_i32_89 : i32
    scf.if %313 {
      %c0_90 = arith.constant 0 : index
      %c0_91 = arith.constant 0 : index
      %314 = vector.load %arg4[%c0_90, %c0_91] : memref<8x128xf32, #tpu.memory_space<vmem>>, vector<8x128xf32>
      tpu.vector_store %arg4[%c0_90, %c0_91], %303 {strides = array<i32>} : memref<8x128xf32, #tpu.memory_space<vmem>>, vector<8x128xf32>,
      %c0_92 = arith.constant 0 : index
      %c0_93 = arith.constant 0 : index
      %315 = vector.load %arg5[%c0_92, %c0_93] : memref<8x128xf32, #tpu.memory_space<vmem>>, vector<8x128xf32>
      tpu.vector_store %arg5[%c0_92, %c0_93], %301 {strides = array<i32>} : memref<8x128xf32, #tpu.memory_space<vmem>>, vector<8x128xf32>,
    } else {
    }
    return
  }
  func.func @transform_0(%arg0: i32) -> (i32, i32, i32) {
    %c0_i32 = arith.constant 0 : i32
    %c0_i32_0 = arith.constant 0 : i32
    %c0_i32_1 = arith.constant 0 : i32
    return %arg0, %c0_i32, %c0_i32_0 : i32, i32, i32
  }
  func.func @transform_1(%arg0: i32) -> (i32, i32) {
    %c0_i32 = arith.constant 0 : i32
    %c0_i32_0 = arith.constant 0 : i32
    %c0_i32_1 = arith.constant 0 : i32
    return %c0_i32, %c0_i32_0 : i32, i32
  }
  func.func @transform_2(%arg0: i32) -> (i32, i32, i32) {
    %c0_i32 = arith.constant 0 : i32
    %c0_i32_0 = arith.constant 0 : i32
    %c0_i32_1 = arith.constant 0 : i32
    return %arg0, %c0_i32, %c0_i32_0 : i32, i32, i32
  }
  func.func @transform_3(%arg0: i32) -> (i32, i32) {
    %c0_i32 = arith.constant 0 : i32
    %c0_i32_0 = arith.constant 0 : i32
    %c0_i32_1 = arith.constant 0 : i32
    return %c0_i32, %c0_i32_0 : i32, i32
  }
  func.func @transform_4(%arg0: i32) -> (i32, i32) {
    %c0_i32 = arith.constant 0 : i32
    %c0_i32_0 = arith.constant 0 : i32
    %c0_i32_1 = arith.constant 0 : i32
    return %c0_i32, %c0_i32_0 : i32, i32
  }
}

module attributes {stable_mosaic.version = 11 : i64} {
  func.func @_lstm_recurrence_kernel(%arg0: i32, %arg1: memref<8x8x512xbf16, #tpu.memory_space<vmem>>, %arg2: memref<128x512xbf16, #tpu.memory_space<vmem>>, %arg3: memref<8x8x128xf32, #tpu.memory_space<vmem>>, %arg4: memref<8x128xf32, #tpu.memory_space<vmem>>, %arg5: memref<8x128xf32, #tpu.memory_space<vmem>>, %arg6: memref<8x128xf32, #tpu.memory_space<vmem>>, %arg7: memref<8x128xf32, #tpu.memory_space<vmem>>) attributes {dimension_semantics = [#tpu.dimension_semantics<arbitrary>], iteration_bounds = array<i64: 1>, scalar_prefetch = 0 : i64, scratch_operands = 2 : i64, tpu.core_type = #tpu.core_type<tc>, window_params = [{transform_indices = @transform_0, window_bounds = array<i64: 8, 8, 512>}, {pipeline_mode = #tpu.pipeline_mode<synchronous>, transform_indices = @transform_1, window_bounds = array<i64: 128, 512>}, {transform_indices = @transform_2, window_bounds = array<i64: 8, 8, 128>}, {pipeline_mode = #tpu.pipeline_mode<synchronous>, transform_indices = @transform_3, window_bounds = array<i64: 8, 128>}, {pipeline_mode = #tpu.pipeline_mode<synchronous>, transform_indices = @transform_4, window_bounds = array<i64: 8, 128>}]} {
    %c0_i32 = arith.constant 0 : i32
    %0 = arith.cmpi eq, %arg0, %c0_i32 : i32
    %1 = arith.extui %0 : i1 to i32
    %c0_i32_0 = arith.constant 0 : i32
    %2 = arith.cmpi ne, %1, %c0_i32_0 : i32
    scf.if %2 {
      %cst_90 = arith.constant 0.000000e+00 : f32
      %306 = vector.broadcast %cst_90 : f32 to vector<8x128xf32>
      %c0_91 = arith.constant 0 : index
      %c0_92 = arith.constant 0 : index
      %307 = vector.load %arg6[%c0_91, %c0_92] : memref<8x128xf32, #tpu.memory_space<vmem>>, vector<8x128xf32>
      tpu.vector_store %arg6[%c0_91, %c0_92], %306 {strides = array<i32>} : memref<8x128xf32, #tpu.memory_space<vmem>>, vector<8x128xf32>,
      %cst_93 = arith.constant 0.000000e+00 : f32
      %308 = vector.broadcast %cst_93 : f32 to vector<8x128xf32>
      %c0_94 = arith.constant 0 : index
      %c0_95 = arith.constant 0 : index
      %309 = vector.load %arg7[%c0_94, %c0_95] : memref<8x128xf32, #tpu.memory_space<vmem>>, vector<8x128xf32>
      tpu.vector_store %arg7[%c0_94, %c0_95], %308 {strides = array<i32>} : memref<8x128xf32, #tpu.memory_space<vmem>>, vector<8x128xf32>,
    } else {
    }
    %c0 = arith.constant 0 : index
    %c0_1 = arith.constant 0 : index
    %3 = vector.load %arg6[%c0, %c0_1] : memref<8x128xf32, #tpu.memory_space<vmem>>, vector<8x128xf32>
    %c0_2 = arith.constant 0 : index
    %c0_3 = arith.constant 0 : index
    %4 = vector.load %arg7[%c0_2, %c0_3] : memref<8x128xf32, #tpu.memory_space<vmem>>, vector<8x128xf32>
    %c0_i32_4 = arith.constant 0 : i32
    %5 = arith.index_cast %c0_i32_4 : i32 to index
    %c0_5 = arith.constant 0 : index
    %c0_6 = arith.constant 0 : index
    %6 = vector.load %arg1[%5, %c0_5, %c0_6] : memref<8x8x512xbf16, #tpu.memory_space<vmem>>, vector<1x8x512xbf16>
    %7 = vector.shape_cast %6 : vector<1x8x512xbf16> to vector<8x512xbf16>
    %8 = arith.extf %7 : vector<8x512xbf16> to vector<8x512xf32>
    %9 = arith.truncf %3 : vector<8x128xf32> to vector<8x128xbf16>
    %c0_7 = arith.constant 0 : index
    %c0_8 = arith.constant 0 : index
    %10 = vector.load %arg2[%c0_7, %c0_8] : memref<128x512xbf16, #tpu.memory_space<vmem>>, vector<128x512xbf16>
    %cst = arith.constant dense<0.000000e+00> : vector<8x512xf32>
    %11 = tpu.matmul %9, %10, %cst {dimension_numbers = #tpu.dot_dimension_numbers<[1], [0], [0], [1], [0, 0, 1, 1], [], []>} : vector<8x128xbf16>, vector<128x512xbf16>, vector<8x512xf32> -> vector<8x512xf32>
    %12 = arith.addf %8, %11 : vector<8x512xf32>
    %13 = vector.extract_strided_slice %12 {offsets = [0, 0], sizes = [8, 128], strides = [1, 1]} : vector<8x512xf32> to vector<8x128xf32>
    %14 = arith.negf %13 : vector<8x128xf32>
    %15 = math.exp %14 : vector<8x128xf32>
    %cst_9 = arith.constant 1.000000e+00 : f32
    %16 = vector.broadcast %cst_9 : f32 to vector<8x128xf32>
    %17 = arith.addf %16, %15 : vector<8x128xf32>
    %18 = arith.divf %16, %17 : vector<8x128xf32>
    %19 = vector.extract_strided_slice %12 {offsets = [0, 128], sizes = [8, 128], strides = [1, 1]} : vector<8x512xf32> to vector<8x128xf32>
    %20 = arith.negf %19 : vector<8x128xf32>
    %21 = math.exp %20 : vector<8x128xf32>
    %cst_10 = arith.constant 1.000000e+00 : f32
    %22 = vector.broadcast %cst_10 : f32 to vector<8x128xf32>
    %23 = arith.addf %22, %21 : vector<8x128xf32>
    %24 = arith.divf %22, %23 : vector<8x128xf32>
    %25 = vector.extract_strided_slice %12 {offsets = [0, 256], sizes = [8, 128], strides = [1, 1]} : vector<8x512xf32> to vector<8x128xf32>
    %26 = math.tanh %25 : vector<8x128xf32>
    %27 = vector.extract_strided_slice %12 {offsets = [0, 384], sizes = [8, 128], strides = [1, 1]} : vector<8x512xf32> to vector<8x128xf32>
    %28 = arith.negf %27 : vector<8x128xf32>
    %29 = math.exp %28 : vector<8x128xf32>
    %cst_11 = arith.constant 1.000000e+00 : f32
    %30 = vector.broadcast %cst_11 : f32 to vector<8x128xf32>
    %31 = arith.addf %30, %29 : vector<8x128xf32>
    %32 = arith.divf %30, %31 : vector<8x128xf32>
    %33 = arith.mulf %24, %4 : vector<8x128xf32>
    %34 = arith.mulf %18, %26 : vector<8x128xf32>
    %35 = arith.addf %33, %34 : vector<8x128xf32>
    %36 = math.tanh %35 : vector<8x128xf32>
    %37 = arith.mulf %32, %36 : vector<8x128xf32>
    %38 = arith.index_cast %c0_i32_4 : i32 to index
    %c0_12 = arith.constant 0 : index
    %c0_13 = arith.constant 0 : index
    %39 = vector.load %arg3[%38, %c0_12, %c0_13] : memref<8x8x128xf32, #tpu.memory_space<vmem>>, vector<1x8x128xf32>
    %40 = vector.shape_cast %39 : vector<1x8x128xf32> to vector<8x128xf32>
    %41 = vector.shape_cast %37 : vector<8x128xf32> to vector<1x8x128xf32>
    tpu.vector_store %arg3[%38, %c0_12, %c0_13], %41 {strides = array<i32>} : memref<8x8x128xf32, #tpu.memory_space<vmem>>, vector<1x8x128xf32>,
    %c1_i32 = arith.constant 1 : i32
    %42 = arith.index_cast %c1_i32 : i32 to index
    %c0_14 = arith.constant 0 : index
    %c0_15 = arith.constant 0 : index
    %43 = vector.load %arg1[%42, %c0_14, %c0_15] : memref<8x8x512xbf16, #tpu.memory_space<vmem>>, vector<1x8x512xbf16>
    %44 = vector.shape_cast %43 : vector<1x8x512xbf16> to vector<8x512xbf16>
    %45 = arith.extf %44 : vector<8x512xbf16> to vector<8x512xf32>
    %46 = arith.truncf %37 : vector<8x128xf32> to vector<8x128xbf16>
    %c0_16 = arith.constant 0 : index
    %c0_17 = arith.constant 0 : index
    %47 = vector.load %arg2[%c0_16, %c0_17] : memref<128x512xbf16, #tpu.memory_space<vmem>>, vector<128x512xbf16>
    %cst_18 = arith.constant dense<0.000000e+00> : vector<8x512xf32>
    %48 = tpu.matmul %46, %47, %cst_18 {dimension_numbers = #tpu.dot_dimension_numbers<[1], [0], [0], [1], [0, 0, 1, 1], [], []>} : vector<8x128xbf16>, vector<128x512xbf16>, vector<8x512xf32> -> vector<8x512xf32>
    %49 = arith.addf %45, %48 : vector<8x512xf32>
    %50 = vector.extract_strided_slice %49 {offsets = [0, 0], sizes = [8, 128], strides = [1, 1]} : vector<8x512xf32> to vector<8x128xf32>
    %51 = arith.negf %50 : vector<8x128xf32>
    %52 = math.exp %51 : vector<8x128xf32>
    %cst_19 = arith.constant 1.000000e+00 : f32
    %53 = vector.broadcast %cst_19 : f32 to vector<8x128xf32>
    %54 = arith.addf %53, %52 : vector<8x128xf32>
    %55 = arith.divf %53, %54 : vector<8x128xf32>
    %56 = vector.extract_strided_slice %49 {offsets = [0, 128], sizes = [8, 128], strides = [1, 1]} : vector<8x512xf32> to vector<8x128xf32>
    %57 = arith.negf %56 : vector<8x128xf32>
    %58 = math.exp %57 : vector<8x128xf32>
    %cst_20 = arith.constant 1.000000e+00 : f32
    %59 = vector.broadcast %cst_20 : f32 to vector<8x128xf32>
    %60 = arith.addf %59, %58 : vector<8x128xf32>
    %61 = arith.divf %59, %60 : vector<8x128xf32>
    %62 = vector.extract_strided_slice %49 {offsets = [0, 256], sizes = [8, 128], strides = [1, 1]} : vector<8x512xf32> to vector<8x128xf32>
    %63 = math.tanh %62 : vector<8x128xf32>
    %64 = vector.extract_strided_slice %49 {offsets = [0, 384], sizes = [8, 128], strides = [1, 1]} : vector<8x512xf32> to vector<8x128xf32>
    %65 = arith.negf %64 : vector<8x128xf32>
    %66 = math.exp %65 : vector<8x128xf32>
    %cst_21 = arith.constant 1.000000e+00 : f32
    %67 = vector.broadcast %cst_21 : f32 to vector<8x128xf32>
    %68 = arith.addf %67, %66 : vector<8x128xf32>
    %69 = arith.divf %67, %68 : vector<8x128xf32>
    %70 = arith.mulf %61, %35 : vector<8x128xf32>
    %71 = arith.mulf %55, %63 : vector<8x128xf32>
    %72 = arith.addf %70, %71 : vector<8x128xf32>
    %73 = math.tanh %72 : vector<8x128xf32>
    %74 = arith.mulf %69, %73 : vector<8x128xf32>
    %75 = arith.index_cast %c1_i32 : i32 to index
    %c0_22 = arith.constant 0 : index
    %c0_23 = arith.constant 0 : index
    %76 = vector.load %arg3[%75, %c0_22, %c0_23] : memref<8x8x128xf32, #tpu.memory_space<vmem>>, vector<1x8x128xf32>
    %77 = vector.shape_cast %76 : vector<1x8x128xf32> to vector<8x128xf32>
    %78 = vector.shape_cast %74 : vector<8x128xf32> to vector<1x8x128xf32>
    tpu.vector_store %arg3[%75, %c0_22, %c0_23], %78 {strides = array<i32>} : memref<8x8x128xf32, #tpu.memory_space<vmem>>, vector<1x8x128xf32>,
    %c2_i32 = arith.constant 2 : i32
    %79 = arith.index_cast %c2_i32 : i32 to index
    %c0_24 = arith.constant 0 : index
    %c0_25 = arith.constant 0 : index
    %80 = vector.load %arg1[%79, %c0_24, %c0_25] : memref<8x8x512xbf16, #tpu.memory_space<vmem>>, vector<1x8x512xbf16>
    %81 = vector.shape_cast %80 : vector<1x8x512xbf16> to vector<8x512xbf16>
    %82 = arith.extf %81 : vector<8x512xbf16> to vector<8x512xf32>
    %83 = arith.truncf %74 : vector<8x128xf32> to vector<8x128xbf16>
    %c0_26 = arith.constant 0 : index
    %c0_27 = arith.constant 0 : index
    %84 = vector.load %arg2[%c0_26, %c0_27] : memref<128x512xbf16, #tpu.memory_space<vmem>>, vector<128x512xbf16>
    %cst_28 = arith.constant dense<0.000000e+00> : vector<8x512xf32>
    %85 = tpu.matmul %83, %84, %cst_28 {dimension_numbers = #tpu.dot_dimension_numbers<[1], [0], [0], [1], [0, 0, 1, 1], [], []>} : vector<8x128xbf16>, vector<128x512xbf16>, vector<8x512xf32> -> vector<8x512xf32>
    %86 = arith.addf %82, %85 : vector<8x512xf32>
    %87 = vector.extract_strided_slice %86 {offsets = [0, 0], sizes = [8, 128], strides = [1, 1]} : vector<8x512xf32> to vector<8x128xf32>
    %88 = arith.negf %87 : vector<8x128xf32>
    %89 = math.exp %88 : vector<8x128xf32>
    %cst_29 = arith.constant 1.000000e+00 : f32
    %90 = vector.broadcast %cst_29 : f32 to vector<8x128xf32>
    %91 = arith.addf %90, %89 : vector<8x128xf32>
    %92 = arith.divf %90, %91 : vector<8x128xf32>
    %93 = vector.extract_strided_slice %86 {offsets = [0, 128], sizes = [8, 128], strides = [1, 1]} : vector<8x512xf32> to vector<8x128xf32>
    %94 = arith.negf %93 : vector<8x128xf32>
    %95 = math.exp %94 : vector<8x128xf32>
    %cst_30 = arith.constant 1.000000e+00 : f32
    %96 = vector.broadcast %cst_30 : f32 to vector<8x128xf32>
    %97 = arith.addf %96, %95 : vector<8x128xf32>
    %98 = arith.divf %96, %97 : vector<8x128xf32>
    %99 = vector.extract_strided_slice %86 {offsets = [0, 256], sizes = [8, 128], strides = [1, 1]} : vector<8x512xf32> to vector<8x128xf32>
    %100 = math.tanh %99 : vector<8x128xf32>
    %101 = vector.extract_strided_slice %86 {offsets = [0, 384], sizes = [8, 128], strides = [1, 1]} : vector<8x512xf32> to vector<8x128xf32>
    %102 = arith.negf %101 : vector<8x128xf32>
    %103 = math.exp %102 : vector<8x128xf32>
    %cst_31 = arith.constant 1.000000e+00 : f32
    %104 = vector.broadcast %cst_31 : f32 to vector<8x128xf32>
    %105 = arith.addf %104, %103 : vector<8x128xf32>
    %106 = arith.divf %104, %105 : vector<8x128xf32>
    %107 = arith.mulf %98, %72 : vector<8x128xf32>
    %108 = arith.mulf %92, %100 : vector<8x128xf32>
    %109 = arith.addf %107, %108 : vector<8x128xf32>
    %110 = math.tanh %109 : vector<8x128xf32>
    %111 = arith.mulf %106, %110 : vector<8x128xf32>
    %112 = arith.index_cast %c2_i32 : i32 to index
    %c0_32 = arith.constant 0 : index
    %c0_33 = arith.constant 0 : index
    %113 = vector.load %arg3[%112, %c0_32, %c0_33] : memref<8x8x128xf32, #tpu.memory_space<vmem>>, vector<1x8x128xf32>
    %114 = vector.shape_cast %113 : vector<1x8x128xf32> to vector<8x128xf32>
    %115 = vector.shape_cast %111 : vector<8x128xf32> to vector<1x8x128xf32>
    tpu.vector_store %arg3[%112, %c0_32, %c0_33], %115 {strides = array<i32>} : memref<8x8x128xf32, #tpu.memory_space<vmem>>, vector<1x8x128xf32>,
    %c3_i32 = arith.constant 3 : i32
    %116 = arith.index_cast %c3_i32 : i32 to index
    %c0_34 = arith.constant 0 : index
    %c0_35 = arith.constant 0 : index
    %117 = vector.load %arg1[%116, %c0_34, %c0_35] : memref<8x8x512xbf16, #tpu.memory_space<vmem>>, vector<1x8x512xbf16>
    %118 = vector.shape_cast %117 : vector<1x8x512xbf16> to vector<8x512xbf16>
    %119 = arith.extf %118 : vector<8x512xbf16> to vector<8x512xf32>
    %120 = arith.truncf %111 : vector<8x128xf32> to vector<8x128xbf16>
    %c0_36 = arith.constant 0 : index
    %c0_37 = arith.constant 0 : index
    %121 = vector.load %arg2[%c0_36, %c0_37] : memref<128x512xbf16, #tpu.memory_space<vmem>>, vector<128x512xbf16>
    %cst_38 = arith.constant dense<0.000000e+00> : vector<8x512xf32>
    %122 = tpu.matmul %120, %121, %cst_38 {dimension_numbers = #tpu.dot_dimension_numbers<[1], [0], [0], [1], [0, 0, 1, 1], [], []>} : vector<8x128xbf16>, vector<128x512xbf16>, vector<8x512xf32> -> vector<8x512xf32>
    %123 = arith.addf %119, %122 : vector<8x512xf32>
    %124 = vector.extract_strided_slice %123 {offsets = [0, 0], sizes = [8, 128], strides = [1, 1]} : vector<8x512xf32> to vector<8x128xf32>
    %125 = arith.negf %124 : vector<8x128xf32>
    %126 = math.exp %125 : vector<8x128xf32>
    %cst_39 = arith.constant 1.000000e+00 : f32
    %127 = vector.broadcast %cst_39 : f32 to vector<8x128xf32>
    %128 = arith.addf %127, %126 : vector<8x128xf32>
    %129 = arith.divf %127, %128 : vector<8x128xf32>
    %130 = vector.extract_strided_slice %123 {offsets = [0, 128], sizes = [8, 128], strides = [1, 1]} : vector<8x512xf32> to vector<8x128xf32>
    %131 = arith.negf %130 : vector<8x128xf32>
    %132 = math.exp %131 : vector<8x128xf32>
    %cst_40 = arith.constant 1.000000e+00 : f32
    %133 = vector.broadcast %cst_40 : f32 to vector<8x128xf32>
    %134 = arith.addf %133, %132 : vector<8x128xf32>
    %135 = arith.divf %133, %134 : vector<8x128xf32>
    %136 = vector.extract_strided_slice %123 {offsets = [0, 256], sizes = [8, 128], strides = [1, 1]} : vector<8x512xf32> to vector<8x128xf32>
    %137 = math.tanh %136 : vector<8x128xf32>
    %138 = vector.extract_strided_slice %123 {offsets = [0, 384], sizes = [8, 128], strides = [1, 1]} : vector<8x512xf32> to vector<8x128xf32>
    %139 = arith.negf %138 : vector<8x128xf32>
    %140 = math.exp %139 : vector<8x128xf32>
    %cst_41 = arith.constant 1.000000e+00 : f32
    %141 = vector.broadcast %cst_41 : f32 to vector<8x128xf32>
    %142 = arith.addf %141, %140 : vector<8x128xf32>
    %143 = arith.divf %141, %142 : vector<8x128xf32>
    %144 = arith.mulf %135, %109 : vector<8x128xf32>
    %145 = arith.mulf %129, %137 : vector<8x128xf32>
    %146 = arith.addf %144, %145 : vector<8x128xf32>
    %147 = math.tanh %146 : vector<8x128xf32>
    %148 = arith.mulf %143, %147 : vector<8x128xf32>
    %149 = arith.index_cast %c3_i32 : i32 to index
    %c0_42 = arith.constant 0 : index
    %c0_43 = arith.constant 0 : index
    %150 = vector.load %arg3[%149, %c0_42, %c0_43] : memref<8x8x128xf32, #tpu.memory_space<vmem>>, vector<1x8x128xf32>
    %151 = vector.shape_cast %150 : vector<1x8x128xf32> to vector<8x128xf32>
    %152 = vector.shape_cast %148 : vector<8x128xf32> to vector<1x8x128xf32>
    tpu.vector_store %arg3[%149, %c0_42, %c0_43], %152 {strides = array<i32>} : memref<8x8x128xf32, #tpu.memory_space<vmem>>, vector<1x8x128xf32>,
    %c4_i32 = arith.constant 4 : i32
    %153 = arith.index_cast %c4_i32 : i32 to index
    %c0_44 = arith.constant 0 : index
    %c0_45 = arith.constant 0 : index
    %154 = vector.load %arg1[%153, %c0_44, %c0_45] : memref<8x8x512xbf16, #tpu.memory_space<vmem>>, vector<1x8x512xbf16>
    %155 = vector.shape_cast %154 : vector<1x8x512xbf16> to vector<8x512xbf16>
    %156 = arith.extf %155 : vector<8x512xbf16> to vector<8x512xf32>
    %157 = arith.truncf %148 : vector<8x128xf32> to vector<8x128xbf16>
    %c0_46 = arith.constant 0 : index
    %c0_47 = arith.constant 0 : index
    %158 = vector.load %arg2[%c0_46, %c0_47] : memref<128x512xbf16, #tpu.memory_space<vmem>>, vector<128x512xbf16>
    %cst_48 = arith.constant dense<0.000000e+00> : vector<8x512xf32>
    %159 = tpu.matmul %157, %158, %cst_48 {dimension_numbers = #tpu.dot_dimension_numbers<[1], [0], [0], [1], [0, 0, 1, 1], [], []>} : vector<8x128xbf16>, vector<128x512xbf16>, vector<8x512xf32> -> vector<8x512xf32>
    %160 = arith.addf %156, %159 : vector<8x512xf32>
    %161 = vector.extract_strided_slice %160 {offsets = [0, 0], sizes = [8, 128], strides = [1, 1]} : vector<8x512xf32> to vector<8x128xf32>
    %162 = arith.negf %161 : vector<8x128xf32>
    %163 = math.exp %162 : vector<8x128xf32>
    %cst_49 = arith.constant 1.000000e+00 : f32
    %164 = vector.broadcast %cst_49 : f32 to vector<8x128xf32>
    %165 = arith.addf %164, %163 : vector<8x128xf32>
    %166 = arith.divf %164, %165 : vector<8x128xf32>
    %167 = vector.extract_strided_slice %160 {offsets = [0, 128], sizes = [8, 128], strides = [1, 1]} : vector<8x512xf32> to vector<8x128xf32>
    %168 = arith.negf %167 : vector<8x128xf32>
    %169 = math.exp %168 : vector<8x128xf32>
    %cst_50 = arith.constant 1.000000e+00 : f32
    %170 = vector.broadcast %cst_50 : f32 to vector<8x128xf32>
    %171 = arith.addf %170, %169 : vector<8x128xf32>
    %172 = arith.divf %170, %171 : vector<8x128xf32>
    %173 = vector.extract_strided_slice %160 {offsets = [0, 256], sizes = [8, 128], strides = [1, 1]} : vector<8x512xf32> to vector<8x128xf32>
    %174 = math.tanh %173 : vector<8x128xf32>
    %175 = vector.extract_strided_slice %160 {offsets = [0, 384], sizes = [8, 128], strides = [1, 1]} : vector<8x512xf32> to vector<8x128xf32>
    %176 = arith.negf %175 : vector<8x128xf32>
    %177 = math.exp %176 : vector<8x128xf32>
    %cst_51 = arith.constant 1.000000e+00 : f32
    %178 = vector.broadcast %cst_51 : f32 to vector<8x128xf32>
    %179 = arith.addf %178, %177 : vector<8x128xf32>
    %180 = arith.divf %178, %179 : vector<8x128xf32>
    %181 = arith.mulf %172, %146 : vector<8x128xf32>
    %182 = arith.mulf %166, %174 : vector<8x128xf32>
    %183 = arith.addf %181, %182 : vector<8x128xf32>
    %184 = math.tanh %183 : vector<8x128xf32>
    %185 = arith.mulf %180, %184 : vector<8x128xf32>
    %186 = arith.index_cast %c4_i32 : i32 to index
    %c0_52 = arith.constant 0 : index
    %c0_53 = arith.constant 0 : index
    %187 = vector.load %arg3[%186, %c0_52, %c0_53] : memref<8x8x128xf32, #tpu.memory_space<vmem>>, vector<1x8x128xf32>
    %188 = vector.shape_cast %187 : vector<1x8x128xf32> to vector<8x128xf32>
    %189 = vector.shape_cast %185 : vector<8x128xf32> to vector<1x8x128xf32>
    tpu.vector_store %arg3[%186, %c0_52, %c0_53], %189 {strides = array<i32>} : memref<8x8x128xf32, #tpu.memory_space<vmem>>, vector<1x8x128xf32>,
    %c5_i32 = arith.constant 5 : i32
    %190 = arith.index_cast %c5_i32 : i32 to index
    %c0_54 = arith.constant 0 : index
    %c0_55 = arith.constant 0 : index
    %191 = vector.load %arg1[%190, %c0_54, %c0_55] : memref<8x8x512xbf16, #tpu.memory_space<vmem>>, vector<1x8x512xbf16>
    %192 = vector.shape_cast %191 : vector<1x8x512xbf16> to vector<8x512xbf16>
    %193 = arith.extf %192 : vector<8x512xbf16> to vector<8x512xf32>
    %194 = arith.truncf %185 : vector<8x128xf32> to vector<8x128xbf16>
    %c0_56 = arith.constant 0 : index
    %c0_57 = arith.constant 0 : index
    %195 = vector.load %arg2[%c0_56, %c0_57] : memref<128x512xbf16, #tpu.memory_space<vmem>>, vector<128x512xbf16>
    %cst_58 = arith.constant dense<0.000000e+00> : vector<8x512xf32>
    %196 = tpu.matmul %194, %195, %cst_58 {dimension_numbers = #tpu.dot_dimension_numbers<[1], [0], [0], [1], [0, 0, 1, 1], [], []>} : vector<8x128xbf16>, vector<128x512xbf16>, vector<8x512xf32> -> vector<8x512xf32>
    %197 = arith.addf %193, %196 : vector<8x512xf32>
    %198 = vector.extract_strided_slice %197 {offsets = [0, 0], sizes = [8, 128], strides = [1, 1]} : vector<8x512xf32> to vector<8x128xf32>
    %199 = arith.negf %198 : vector<8x128xf32>
    %200 = math.exp %199 : vector<8x128xf32>
    %cst_59 = arith.constant 1.000000e+00 : f32
    %201 = vector.broadcast %cst_59 : f32 to vector<8x128xf32>
    %202 = arith.addf %201, %200 : vector<8x128xf32>
    %203 = arith.divf %201, %202 : vector<8x128xf32>
    %204 = vector.extract_strided_slice %197 {offsets = [0, 128], sizes = [8, 128], strides = [1, 1]} : vector<8x512xf32> to vector<8x128xf32>
    %205 = arith.negf %204 : vector<8x128xf32>
    %206 = math.exp %205 : vector<8x128xf32>
    %cst_60 = arith.constant 1.000000e+00 : f32
    %207 = vector.broadcast %cst_60 : f32 to vector<8x128xf32>
    %208 = arith.addf %207, %206 : vector<8x128xf32>
    %209 = arith.divf %207, %208 : vector<8x128xf32>
    %210 = vector.extract_strided_slice %197 {offsets = [0, 256], sizes = [8, 128], strides = [1, 1]} : vector<8x512xf32> to vector<8x128xf32>
    %211 = math.tanh %210 : vector<8x128xf32>
    %212 = vector.extract_strided_slice %197 {offsets = [0, 384], sizes = [8, 128], strides = [1, 1]} : vector<8x512xf32> to vector<8x128xf32>
    %213 = arith.negf %212 : vector<8x128xf32>
    %214 = math.exp %213 : vector<8x128xf32>
    %cst_61 = arith.constant 1.000000e+00 : f32
    %215 = vector.broadcast %cst_61 : f32 to vector<8x128xf32>
    %216 = arith.addf %215, %214 : vector<8x128xf32>
    %217 = arith.divf %215, %216 : vector<8x128xf32>
    %218 = arith.mulf %209, %183 : vector<8x128xf32>
    %219 = arith.mulf %203, %211 : vector<8x128xf32>
    %220 = arith.addf %218, %219 : vector<8x128xf32>
    %221 = math.tanh %220 : vector<8x128xf32>
    %222 = arith.mulf %217, %221 : vector<8x128xf32>
    %223 = arith.index_cast %c5_i32 : i32 to index
    %c0_62 = arith.constant 0 : index
    %c0_63 = arith.constant 0 : index
    %224 = vector.load %arg3[%223, %c0_62, %c0_63] : memref<8x8x128xf32, #tpu.memory_space<vmem>>, vector<1x8x128xf32>
    %225 = vector.shape_cast %224 : vector<1x8x128xf32> to vector<8x128xf32>
    %226 = vector.shape_cast %222 : vector<8x128xf32> to vector<1x8x128xf32>
    tpu.vector_store %arg3[%223, %c0_62, %c0_63], %226 {strides = array<i32>} : memref<8x8x128xf32, #tpu.memory_space<vmem>>, vector<1x8x128xf32>,
    %c6_i32 = arith.constant 6 : i32
    %227 = arith.index_cast %c6_i32 : i32 to index
    %c0_64 = arith.constant 0 : index
    %c0_65 = arith.constant 0 : index
    %228 = vector.load %arg1[%227, %c0_64, %c0_65] : memref<8x8x512xbf16, #tpu.memory_space<vmem>>, vector<1x8x512xbf16>
    %229 = vector.shape_cast %228 : vector<1x8x512xbf16> to vector<8x512xbf16>
    %230 = arith.extf %229 : vector<8x512xbf16> to vector<8x512xf32>
    %231 = arith.truncf %222 : vector<8x128xf32> to vector<8x128xbf16>
    %c0_66 = arith.constant 0 : index
    %c0_67 = arith.constant 0 : index
    %232 = vector.load %arg2[%c0_66, %c0_67] : memref<128x512xbf16, #tpu.memory_space<vmem>>, vector<128x512xbf16>
    %cst_68 = arith.constant dense<0.000000e+00> : vector<8x512xf32>
    %233 = tpu.matmul %231, %232, %cst_68 {dimension_numbers = #tpu.dot_dimension_numbers<[1], [0], [0], [1], [0, 0, 1, 1], [], []>} : vector<8x128xbf16>, vector<128x512xbf16>, vector<8x512xf32> -> vector<8x512xf32>
    %234 = arith.addf %230, %233 : vector<8x512xf32>
    %235 = vector.extract_strided_slice %234 {offsets = [0, 0], sizes = [8, 128], strides = [1, 1]} : vector<8x512xf32> to vector<8x128xf32>
    %236 = arith.negf %235 : vector<8x128xf32>
    %237 = math.exp %236 : vector<8x128xf32>
    %cst_69 = arith.constant 1.000000e+00 : f32
    %238 = vector.broadcast %cst_69 : f32 to vector<8x128xf32>
    %239 = arith.addf %238, %237 : vector<8x128xf32>
    %240 = arith.divf %238, %239 : vector<8x128xf32>
    %241 = vector.extract_strided_slice %234 {offsets = [0, 128], sizes = [8, 128], strides = [1, 1]} : vector<8x512xf32> to vector<8x128xf32>
    %242 = arith.negf %241 : vector<8x128xf32>
    %243 = math.exp %242 : vector<8x128xf32>
    %cst_70 = arith.constant 1.000000e+00 : f32
    %244 = vector.broadcast %cst_70 : f32 to vector<8x128xf32>
    %245 = arith.addf %244, %243 : vector<8x128xf32>
    %246 = arith.divf %244, %245 : vector<8x128xf32>
    %247 = vector.extract_strided_slice %234 {offsets = [0, 256], sizes = [8, 128], strides = [1, 1]} : vector<8x512xf32> to vector<8x128xf32>
    %248 = math.tanh %247 : vector<8x128xf32>
    %249 = vector.extract_strided_slice %234 {offsets = [0, 384], sizes = [8, 128], strides = [1, 1]} : vector<8x512xf32> to vector<8x128xf32>
    %250 = arith.negf %249 : vector<8x128xf32>
    %251 = math.exp %250 : vector<8x128xf32>
    %cst_71 = arith.constant 1.000000e+00 : f32
    %252 = vector.broadcast %cst_71 : f32 to vector<8x128xf32>
    %253 = arith.addf %252, %251 : vector<8x128xf32>
    %254 = arith.divf %252, %253 : vector<8x128xf32>
    %255 = arith.mulf %246, %220 : vector<8x128xf32>
    %256 = arith.mulf %240, %248 : vector<8x128xf32>
    %257 = arith.addf %255, %256 : vector<8x128xf32>
    %258 = math.tanh %257 : vector<8x128xf32>
    %259 = arith.mulf %254, %258 : vector<8x128xf32>
    %260 = arith.index_cast %c6_i32 : i32 to index
    %c0_72 = arith.constant 0 : index
    %c0_73 = arith.constant 0 : index
    %261 = vector.load %arg3[%260, %c0_72, %c0_73] : memref<8x8x128xf32, #tpu.memory_space<vmem>>, vector<1x8x128xf32>
    %262 = vector.shape_cast %261 : vector<1x8x128xf32> to vector<8x128xf32>
    %263 = vector.shape_cast %259 : vector<8x128xf32> to vector<1x8x128xf32>
    tpu.vector_store %arg3[%260, %c0_72, %c0_73], %263 {strides = array<i32>} : memref<8x8x128xf32, #tpu.memory_space<vmem>>, vector<1x8x128xf32>,
    %c7_i32 = arith.constant 7 : i32
    %264 = arith.index_cast %c7_i32 : i32 to index
    %c0_74 = arith.constant 0 : index
    %c0_75 = arith.constant 0 : index
    %265 = vector.load %arg1[%264, %c0_74, %c0_75] : memref<8x8x512xbf16, #tpu.memory_space<vmem>>, vector<1x8x512xbf16>
    %266 = vector.shape_cast %265 : vector<1x8x512xbf16> to vector<8x512xbf16>
    %267 = arith.extf %266 : vector<8x512xbf16> to vector<8x512xf32>
    %268 = arith.truncf %259 : vector<8x128xf32> to vector<8x128xbf16>
    %c0_76 = arith.constant 0 : index
    %c0_77 = arith.constant 0 : index
    %269 = vector.load %arg2[%c0_76, %c0_77] : memref<128x512xbf16, #tpu.memory_space<vmem>>, vector<128x512xbf16>
    %cst_78 = arith.constant dense<0.000000e+00> : vector<8x512xf32>
    %270 = tpu.matmul %268, %269, %cst_78 {dimension_numbers = #tpu.dot_dimension_numbers<[1], [0], [0], [1], [0, 0, 1, 1], [], []>} : vector<8x128xbf16>, vector<128x512xbf16>, vector<8x512xf32> -> vector<8x512xf32>
    %271 = arith.addf %267, %270 : vector<8x512xf32>
    %272 = vector.extract_strided_slice %271 {offsets = [0, 0], sizes = [8, 128], strides = [1, 1]} : vector<8x512xf32> to vector<8x128xf32>
    %273 = arith.negf %272 : vector<8x128xf32>
    %274 = math.exp %273 : vector<8x128xf32>
    %cst_79 = arith.constant 1.000000e+00 : f32
    %275 = vector.broadcast %cst_79 : f32 to vector<8x128xf32>
    %276 = arith.addf %275, %274 : vector<8x128xf32>
    %277 = arith.divf %275, %276 : vector<8x128xf32>
    %278 = vector.extract_strided_slice %271 {offsets = [0, 128], sizes = [8, 128], strides = [1, 1]} : vector<8x512xf32> to vector<8x128xf32>
    %279 = arith.negf %278 : vector<8x128xf32>
    %280 = math.exp %279 : vector<8x128xf32>
    %cst_80 = arith.constant 1.000000e+00 : f32
    %281 = vector.broadcast %cst_80 : f32 to vector<8x128xf32>
    %282 = arith.addf %281, %280 : vector<8x128xf32>
    %283 = arith.divf %281, %282 : vector<8x128xf32>
    %284 = vector.extract_strided_slice %271 {offsets = [0, 256], sizes = [8, 128], strides = [1, 1]} : vector<8x512xf32> to vector<8x128xf32>
    %285 = math.tanh %284 : vector<8x128xf32>
    %286 = vector.extract_strided_slice %271 {offsets = [0, 384], sizes = [8, 128], strides = [1, 1]} : vector<8x512xf32> to vector<8x128xf32>
    %287 = arith.negf %286 : vector<8x128xf32>
    %288 = math.exp %287 : vector<8x128xf32>
    %cst_81 = arith.constant 1.000000e+00 : f32
    %289 = vector.broadcast %cst_81 : f32 to vector<8x128xf32>
    %290 = arith.addf %289, %288 : vector<8x128xf32>
    %291 = arith.divf %289, %290 : vector<8x128xf32>
    %292 = arith.mulf %283, %257 : vector<8x128xf32>
    %293 = arith.mulf %277, %285 : vector<8x128xf32>
    %294 = arith.addf %292, %293 : vector<8x128xf32>
    %295 = math.tanh %294 : vector<8x128xf32>
    %296 = arith.mulf %291, %295 : vector<8x128xf32>
    %297 = arith.index_cast %c7_i32 : i32 to index
    %c0_82 = arith.constant 0 : index
    %c0_83 = arith.constant 0 : index
    %298 = vector.load %arg3[%297, %c0_82, %c0_83] : memref<8x8x128xf32, #tpu.memory_space<vmem>>, vector<1x8x128xf32>
    %299 = vector.shape_cast %298 : vector<1x8x128xf32> to vector<8x128xf32>
    %300 = vector.shape_cast %296 : vector<8x128xf32> to vector<1x8x128xf32>
    tpu.vector_store %arg3[%297, %c0_82, %c0_83], %300 {strides = array<i32>} : memref<8x8x128xf32, #tpu.memory_space<vmem>>, vector<1x8x128xf32>,
    %c8_i32 = arith.constant 8 : i32
    %c0_84 = arith.constant 0 : index
    %c0_85 = arith.constant 0 : index
    %301 = vector.load %arg6[%c0_84, %c0_85] : memref<8x128xf32, #tpu.memory_space<vmem>>, vector<8x128xf32>
    tpu.vector_store %arg6[%c0_84, %c0_85], %296 {strides = array<i32>} : memref<8x128xf32, #tpu.memory_space<vmem>>, vector<8x128xf32>,
    %c0_86 = arith.constant 0 : index
    %c0_87 = arith.constant 0 : index
    %302 = vector.load %arg7[%c0_86, %c0_87] : memref<8x128xf32, #tpu.memory_space<vmem>>, vector<8x128xf32>
    tpu.vector_store %arg7[%c0_86, %c0_87], %294 {strides = array<i32>} : memref<8x128xf32, #tpu.memory_space<vmem>>, vector<8x128xf32>,
    %c0_i32_88 = arith.constant 0 : i32
    %303 = arith.cmpi eq, %arg0, %c0_i32_88 : i32
    %304 = arith.extui %303 : i1 to i32
    %c0_i32_89 = arith.constant 0 : i32
    %305 = arith.cmpi ne, %304, %c0_i32_89 : i32
    scf.if %305 {
      %c0_90 = arith.constant 0 : index
      %c0_91 = arith.constant 0 : index
      %306 = vector.load %arg4[%c0_90, %c0_91] : memref<8x128xf32, #tpu.memory_space<vmem>>, vector<8x128xf32>
      tpu.vector_store %arg4[%c0_90, %c0_91], %296 {strides = array<i32>} : memref<8x128xf32, #tpu.memory_space<vmem>>, vector<8x128xf32>,
      %c0_92 = arith.constant 0 : index
      %c0_93 = arith.constant 0 : index
      %307 = vector.load %arg5[%c0_92, %c0_93] : memref<8x128xf32, #tpu.memory_space<vmem>>, vector<8x128xf32>
      tpu.vector_store %arg5[%c0_92, %c0_93], %294 {strides = array<i32>} : memref<8x128xf32, #tpu.memory_space<vmem>>, vector<8x128xf32>,
    } else {
    }
    return
  }
  func.func @transform_0(%arg0: i32) -> (i32, i32, i32) {
    %c0_i32 = arith.constant 0 : i32
    %c0_i32_0 = arith.constant 0 : i32
    %c0_i32_1 = arith.constant 0 : i32
    return %arg0, %c0_i32, %c0_i32_0 : i32, i32, i32
  }
  func.func @transform_1(%arg0: i32) -> (i32, i32) {
    %c0_i32 = arith.constant 0 : i32
    %c0_i32_0 = arith.constant 0 : i32
    %c0_i32_1 = arith.constant 0 : i32
    return %c0_i32, %c0_i32_0 : i32, i32
  }
  func.func @transform_2(%arg0: i32) -> (i32, i32, i32) {
    %c0_i32 = arith.constant 0 : i32
    %c0_i32_0 = arith.constant 0 : i32
    %c0_i32_1 = arith.constant 0 : i32
    return %arg0, %c0_i32, %c0_i32_0 : i32, i32, i32
  }
  func.func @transform_3(%arg0: i32) -> (i32, i32) {
    %c0_i32 = arith.constant 0 : i32
    %c0_i32_0 = arith.constant 0 : i32
    %c0_i32_1 = arith.constant 0 : i32
    return %c0_i32, %c0_i32_0 : i32, i32
  }
  func.func @transform_4(%arg0: i32) -> (i32, i32) {
    %c0_i32 = arith.constant 0 : i32
    %c0_i32_0 = arith.constant 0 : i32
    %c0_i32_1 = arith.constant 0 : i32
    return %c0_i32, %c0_i32_0 : i32, i32
  }
}

</mosaic_0001>

<llo_original>
// kernel: encoder_forward.2
$region0: #{encoder_forward.2}
  #allocation0 [shape = 'u32[]', space=smem, size = 0x4, offset = 0x4, fixed_abs, tag = 'smem constant byte address 0x4 - core index']
  #allocation1 [shape = 'u32[144,128]{1,0:T(1,128)}', space=vmem, size = 0x12000, scoped, tag = 'internal scratch']
  #allocation2 [shape = 'f32[8,128]{1,0:T(8,128)}', space=vmem, size = 0x1000, scoped, tag = 'scratch operand']
  #allocation3 [shape = 'f32[8,128]{1,0:T(8,128)}', space=vmem, size = 0x1000, scoped, tag = 'scratch operand']
  %s0 = inlined_call_operand.vmem [shape: bf16[8,8,512], index: 0, kind: input, shape index: {}]
  %s1 = inlined_call_operand.vmem [shape: bf16[128,512], index: 1, kind: input, shape index: {}]
  %s2 = inlined_call_operand.vmem [shape: bf16[8,8,128], index: 2, kind: output, shape index: {0}]
  %s3 = inlined_call_operand.vmem [shape: f32[8,128], index: 3, kind: output, shape index: {1}]
  %s4 = inlined_call_operand.vmem [shape: f32[8,128], index: 4, kind: output, shape index: {2}]
  %5 = xla_tuple %s2, %s3, %s4
  %s6 = sld [smem:[#allocation0]]
  $region42: #{encoder_forward.2} parent=0
    _
  %s8 = ssub.s32 1, %s6
  %s9 = scalar_select 0, %s8, %s6
  // Predicated region
  $region2: #{encoder_forward.2} parent=0 // pred_check
    _
  $region3: #{encoder_forward.2} parent=0 // pred_check_branch
    %11 = sbr.rel (0) target = $region5
  $region4: #{encoder_forward.2} parent=0 // pred_region
    _
  $region5: #{encoder_forward.2} parent=0 // pred_fallthru
    _
  // Predicated region
  $region6: #{encoder_forward.2} parent=0 // pred_check
    _
  $region7: #{encoder_forward.2} parent=0 // pred_check_branch
    %13 = sbr.rel (0) target = $region9
  $region8: #{encoder_forward.2} parent=0 // pred_region
    _
  $region9: #{encoder_forward.2} parent=0 // pred_fallthru
    _
  %p15 = scmp.eq.s32.totalorder 0, 0
  // Predicated region
  $region10: #{encoder_forward.2} parent=0 // pred_check
    %p16 = pneg %p15
  $region11: #{encoder_forward.2} parent=0 // pred_check_branch
    %18 = sbr.rel (%p16) target = $region13
  $region12: #{encoder_forward.2} parent=0 // pred_region
    %19 = vst [vmem:[#allocation2] sm:$0xff] 0.0
    %20 = vst [vmem:[#allocation3] sm:$0xff] 0.0
  $region13: #{encoder_forward.2} parent=0 // pred_fallthru
    _
  %v21 = vld [vmem:[#allocation2] sm:$0xff]
  %v22 = vld [vmem:[#allocation3] sm:$0xff]
  %v23 = vld [vmem:[%s0] sm:$0xff]
  %v24 = vld [vmem:[%s0 + $0x8] sm:$0xff]
  %v25 = vunpack.c.l.bf16 %v23
  %v26 = vunpack.c.h.bf16 %v23
  %v27 = vunpack.c.l.bf16 %v24
  %v28 = vunpack.c.h.bf16 %v24
  %v29 = vpack.c.bf16 %v21, %v21
  %v30 = vld [vmem:[%s1] sm:$0xff]
  %v31 = vld [vmem:[%s1 + $0x8] sm:$0xff]
  %v32 = vld [vmem:[%s1 + $0x10] sm:$0xff]
  %v33 = vld [vmem:[%s1 + $0x18] sm:$0xff]
  %v34 = vld [vmem:[%s1 + $0x20] sm:$0xff]
  %v35 = vld [vmem:[%s1 + $0x28] sm:$0xff]
  %v36 = vld [vmem:[%s1 + $0x30] sm:$0xff]
  %v37 = vld [vmem:[%s1 + $0x38] sm:$0xff]
  %v38 = vld [vmem:[%s1 + $0x40] sm:$0xff]
  %v39 = vld [vmem:[%s1 + $0x48] sm:$0xff]
  %v40 = vld [vmem:[%s1 + $0x50] sm:$0xff]
  %v41 = vld [vmem:[%s1 + $0x58] sm:$0xff]
  %v42 = vld [vmem:[%s1 + $0x60] sm:$0xff]
  %v43 = vld [vmem:[%s1 + $0x68] sm:$0xff]
  %v44 = vld [vmem:[%s1 + $0x70] sm:$0xff]
  %v45 = vld [vmem:[%s1 + $0x78] sm:$0xff]
  %v46 = vld [vmem:[%s1 + $0x80] sm:$0xff]
  %v47 = vld [vmem:[%s1 + $0x88] sm:$0xff]
  %v48 = vld [vmem:[%s1 + $0x90] sm:$0xff]
  %v49 = vld [vmem:[%s1 + $0x98] sm:$0xff]
  %v50 = vld [vmem:[%s1 + $0xa0] sm:$0xff]
  %v51 = vld [vmem:[%s1 + $0xa8] sm:$0xff]
  %v52 = vld [vmem:[%s1 + $0xb0] sm:$0xff]
  %v53 = vld [vmem:[%s1 + $0xb8] sm:$0xff]
  %v54 = vld [vmem:[%s1 + $0xc0] sm:$0xff]
  %v55 = vld [vmem:[%s1 + $0xc8] sm:$0xff]
  %v56 = vld [vmem:[%s1 + $0xd0] sm:$0xff]
  %v57 = vld [vmem:[%s1 + $0xd8] sm:$0xff]
  %v58 = vld [vmem:[%s1 + $0xe0] sm:$0xff]
  %v59 = vld [vmem:[%s1 + $0xe8] sm:$0xff]
  %v60 = vld [vmem:[%s1 + $0xf0] sm:$0xff]
  %v61 = vld [vmem:[%s1 + $0xf8] sm:$0xff]
  %v94 = vunpack.c.l.b16 %v30
  %v95 = vunpack.c.h.b16 %v30
  %v96 = vunpack.c.l.b16 %v31
  %v97 = vunpack.c.h.b16 %v31
  %v98 = vunpack.c.l.b16 %v32
  %v99 = vunpack.c.h.b16 %v32
  %v100 = vunpack.c.l.b16 %v33
  %v101 = vunpack.c.h.b16 %v33
  %v102 = vunpack.c.l.b16 %v34
  %v103 = vunpack.c.h.b16 %v34
  %v104 = vunpack.c.l.b16 %v35
  %v105 = vunpack.c.h.b16 %v35
  %v106 = vunpack.c.l.b16 %v36
  %v107 = vunpack.c.h.b16 %v36
  %v108 = vunpack.c.l.b16 %v37
  %v109 = vunpack.c.h.b16 %v37
  %v110 = vunpack.c.l.b16 %v38
  %v111 = vunpack.c.h.b16 %v38
  %v112 = vunpack.c.l.b16 %v39
  %v113 = vunpack.c.h.b16 %v39
  %v114 = vunpack.c.l.b16 %v40
  %v115 = vunpack.c.h.b16 %v40
  %v116 = vunpack.c.l.b16 %v41
  %v117 = vunpack.c.h.b16 %v41
  %v118 = vunpack.c.l.b16 %v42
  %v119 = vunpack.c.h.b16 %v42
  %v120 = vunpack.c.l.b16 %v43
  %v121 = vunpack.c.h.b16 %v43
  %v122 = vunpack.c.l.b16 %v44
  %v123 = vunpack.c.h.b16 %v44
  %v124 = vunpack.c.l.b16 %v45
  %v125 = vunpack.c.h.b16 %v45
  %v126 = vunpack.c.l.b16 %v46
  %v127 = vunpack.c.h.b16 %v46
  %v128 = vunpack.c.l.b16 %v47
  %v129 = vunpack.c.h.b16 %v47
  %v130 = vunpack.c.l.b16 %v48
  %v131 = vunpack.c.h.b16 %v48
  %v132 = vunpack.c.l.b16 %v49
  %v133 = vunpack.c.h.b16 %v49
  %v134 = vunpack.c.l.b16 %v50
  %v135 = vunpack.c.h.b16 %v50
  %v136 = vunpack.c.l.b16 %v51
  %v137 = vunpack.c.h.b16 %v51
  %v138 = vunpack.c.l.b16 %v52
  %v139 = vunpack.c.h.b16 %v52
  %v140 = vunpack.c.l.b16 %v53
  %v141 = vunpack.c.h.b16 %v53
  %v142 = vunpack.c.l.b16 %v54
  %v143 = vunpack.c.h.b16 %v54
  %v144 = vunpack.c.l.b16 %v55
  %v145 = vunpack.c.h.b16 %v55
  %v146 = vunpack.c.l.b16 %v56
  %v147 = vunpack.c.h.b16 %v56
  %v148 = vunpack.c.l.b16 %v57
  %v149 = vunpack.c.h.b16 %v57
  %v150 = vunpack.c.l.b16 %v58
  %v151 = vunpack.c.h.b16 %v58
  %v152 = vunpack.c.l.b16 %v59
  %v153 = vunpack.c.h.b16 %v59
  %v154 = vunpack.c.l.b16 %v60
  %v155 = vunpack.c.h.b16 %v60
  %v156 = vunpack.c.l.b16 %v61
  %v157 = vunpack.c.h.b16 %v61
  %v158 = vpack.c.b16 %v98, %v94
  %v159 = vpack.c.b16 %v99, %v95
  %v160 = vpack.c.b16 %v100, %v96
  %v161 = vpack.c.b16 %v101, %v97
  %v162 = vpack.c.b16 %v106, %v102
  %v163 = vpack.c.b16 %v107, %v103
  %v164 = vpack.c.b16 %v108, %v104
  %v165 = vpack.c.b16 %v109, %v105
  %v166 = vpack.c.b16 %v114, %v110
  %v167 = vpack.c.b16 %v115, %v111
  %v168 = vpack.c.b16 %v116, %v112
  %v169 = vpack.c.b16 %v117, %v113
  %v170 = vpack.c.b16 %v122, %v118
  %v171 = vpack.c.b16 %v123, %v119
  %v172 = vpack.c.b16 %v124, %v120
  %v173 = vpack.c.b16 %v125, %v121
  %v174 = vpack.c.b16 %v130, %v126
  %v175 = vpack.c.b16 %v131, %v127
  %v176 = vpack.c.b16 %v132, %v128
  %v177 = vpack.c.b16 %v133, %v129
  %v178 = vpack.c.b16 %v138, %v134
  %v179 = vpack.c.b16 %v139, %v135
  %v180 = vpack.c.b16 %v140, %v136
  %v181 = vpack.c.b16 %v141, %v137
  %v182 = vpack.c.b16 %v146, %v142
  %v183 = vpack.c.b16 %v147, %v143
  %v184 = vpack.c.b16 %v148, %v144
  %v185 = vpack.c.b16 %v149, %v145
  %v186 = vpack.c.b16 %v154, %v150
  %v187 = vpack.c.b16 %v155, %v151
  %v188 = vpack.c.b16 %v156, %v152
  %v189 = vpack.c.b16 %v157, %v153
  %222 = vmatprep.subr.bf16.mxu0 %v159
  %223 = vmatpush1.bf16.msra.mxu0 %v158
  %224 = vmatprep.subr.bf16.mxu0 %v163
  %225 = vmatpush1.bf16.msra.mxu0 %v162
  %226 = vmatprep.subr.bf16.mxu0 %v167
  %227 = vmatpush1.bf16.msra.mxu0 %v166
  %228 = vmatprep.subr.bf16.mxu0 %v171
  %229 = vmatpush1.bf16.msra.mxu0 %v170
  %230 = vmatprep.subr.bf16.mxu0 %v175
  %231 = vmatpush1.bf16.msra.mxu0 %v174
  %232 = vmatprep.subr.bf16.mxu0 %v179
  %233 = vmatpush1.bf16.msra.mxu0 %v178
  %234 = vmatprep.subr.bf16.mxu0 %v183
  %235 = vmatpush1.bf16.msra.mxu0 %v182
  %236 = vmatprep.subr.bf16.mxu0 %v187
  %237 = vmatpush1.bf16.msra.mxu0 %v186
  %238 = vmatprep.subr.bf16.mxu0 0
  %239 = vmatpush1.bf16.msra.mxu0 0
  %240 = vmatprep.subr.bf16.mxu0 0
  %241 = vmatpush1.bf16.msra.mxu0 0
  %242 = vmatprep.subr.bf16.mxu0 0
  %243 = vmatpush1.bf16.msra.mxu0 0
  %244 = vmatprep.subr.bf16.mxu0 0
  %245 = vmatpush1.bf16.msra.mxu0 0
  %246 = vmatprep.subr.bf16.mxu0 0
  %247 = vmatpush1.bf16.msra.mxu0 0
  %248 = vmatprep.subr.bf16.mxu0 0
  %249 = vmatpush1.bf16.msra.mxu0 0
  %250 = vmatprep.subr.bf16.mxu0 0
  %251 = vmatpush1.bf16.msra.mxu0 0
  %252 = vmatprep.subr.bf16.mxu0 0
  %253 = vmatpush1.bf16.msra.mxu0 0
  %254 = vmatprep.mubr.bf16.mxu0 0
  %255 = vmatmul.mubr.bf16.gmra.mrb[0].mxu0 %v29
  %v256 = vpop.f32.mrb[0].mxu0
  %v257 = vadd.f32 0.0, %v256
  %v258 = vpop.f32.mrb[0].mxu0
  %v259 = vadd.f32 0.0, %v258
  %v260 = vpop.f32.mrb[0].mxu0
  %v261 = vpop.f32.mrb[0].mxu0
  %262 = vdwg.mxu0
  %263 = vmatprep.subr.bf16.mxu0 %v161
  %264 = vmatpush1.bf16.msra.mxu0 %v160
  %265 = vmatprep.subr.bf16.mxu0 %v165
  %266 = vmatpush1.bf16.msra.mxu0 %v164
  %267 = vmatprep.subr.bf16.mxu0 %v169
  %268 = vmatpush1.bf16.msra.mxu0 %v168
  %269 = vmatprep.subr.bf16.mxu0 %v173
  %270 = vmatpush1.bf16.msra.mxu0 %v172
  %271 = vmatprep.subr.bf16.mxu0 %v177
  %272 = vmatpush1.bf16.msra.mxu0 %v176
  %273 = vmatprep.subr.bf16.mxu0 %v181
  %274 = vmatpush1.bf16.msra.mxu0 %v180
  %275 = vmatprep.subr.bf16.mxu0 %v185
  %276 = vmatpush1.bf16.msra.mxu0 %v184
  %277 = vmatprep.subr.bf16.mxu0 %v189
  %278 = vmatpush1.bf16.msra.mxu0 %v188
  %279 = vmatprep.subr.bf16.mxu0 0
  %280 = vmatpush1.bf16.msra.mxu0 0
  %281 = vmatprep.subr.bf16.mxu0 0
  %282 = vmatpush1.bf16.msra.mxu0 0
  %283 = vmatprep.subr.bf16.mxu0 0
  %284 = vmatpush1.bf16.msra.mxu0 0
  %285 = vmatprep.subr.bf16.mxu0 0
  %286 = vmatpush1.bf16.msra.mxu0 0
  %287 = vmatprep.subr.bf16.mxu0 0
  %288 = vmatpush1.bf16.msra.mxu0 0
  %289 = vmatprep.subr.bf16.mxu0 0
  %290 = vmatpush1.bf16.msra.mxu0 0
  %291 = vmatprep.subr.bf16.mxu0 0
  %292 = vmatpush1.bf16.msra.mxu0 0
  %293 = vmatprep.subr.bf16.mxu0 0
  %294 = vmatpush1.bf16.msra.mxu0 0
  %295 = vmatprep.mubr.bf16.mxu0 0
  %296 = vmatmul.mubr.bf16.gmra.mrb[0].mxu0 %v29
  %v297 = vpop.f32.mrb[0].mxu0
  %v298 = vadd.f32 0.0, %v297
  %v299 = vpop.f32.mrb[0].mxu0
  %v300 = vadd.f32 0.0, %v299
  %v301 = vpop.f32.mrb[0].mxu0
  %v302 = vpop.f32.mrb[0].mxu0
  %303 = vdwg.mxu0
  %v304 = vadd.f32 %v25, %v257
  %v305 = vadd.f32 %v26, %v259
  %v306 = vadd.f32 %v27, %v298
  %v307 = vadd.f32 %v28, %v300
  %v308 = vxor.u32 %v304, 2147483648
  %v309 = vmul.f32 %v308, 1.442695
  %v310 = vpow.pop %v309
  %v311 = vadd.f32 %v310, 1.0
  %v312 = vrcp.pop %v311
  %v313 = vmul.f32 1.0, %v312
  %v314 = vxor.u32 %v305, 2147483648
  %v315 = vmul.f32 %v314, 1.442695
  %v316 = vpow.pop %v315
  %v317 = vadd.f32 %v316, 1.0
  %v318 = vrcp.pop %v317
  %v319 = vmul.f32 1.0, %v318
  %v320 = vtanh.pop %v306
  %v321 = vxor.u32 %v307, 2147483648
  %v322 = vmul.f32 %v321, 1.442695
  %v323 = vpow.pop %v322
  %v324 = vadd.f32 %v323, 1.0
  %v325 = vrcp.pop %v324
  %v326 = vmul.f32 1.0, %v325
  %v327 = vmul.f32 %v319, %v22
  %v328 = vmul.f32 %v313, %v320
  %v329 = vadd.f32 %v327, %v328
  %v330 = vtanh.pop %v329
  %v331 = vmul.f32 %v326, %v330
  %v332 = vpack.c.bf16 %v331, %v331
  %333 = vst [vmem:[%s2] sm:$0xf] %v332
  %s334 = scalar_lea.vmem %s0, 16
  %v335 = vld [vmem:[%s334] sm:$0xff]
  %v336 = vld [vmem:[%s334 + $0x8] sm:$0xff]
  %v337 = vunpack.c.l.bf16 %v335
  %v338 = vunpack.c.h.bf16 %v335
  %v339 = vunpack.c.l.bf16 %v336
  %v340 = vunpack.c.h.bf16 %v336
  %v341 = vld [vmem:[%s1] sm:$0xff]
  %v342 = vld [vmem:[%s1 + $0x8] sm:$0xff]
  %v343 = vld [vmem:[%s1 + $0x10] sm:$0xff]
  %v344 = vld [vmem:[%s1 + $0x18] sm:$0xff]
  %v345 = vld [vmem:[%s1 + $0x20] sm:$0xff]
  %v346 = vld [vmem:[%s1 + $0x28] sm:$0xff]
  %v347 = vld [vmem:[%s1 + $0x30] sm:$0xff]
  %v348 = vld [vmem:[%s1 + $0x38] sm:$0xff]
  %v349 = vld [vmem:[%s1 + $0x40] sm:$0xff]
  %v350 = vld [vmem:[%s1 + $0x48] sm:$0xff]
  %v351 = vld [vmem:[%s1 + $0x50] sm:$0xff]
  %v352 = vld [vmem:[%s1 + $0x58] sm:$0xff]
  %v353 = vld [vmem:[%s1 + $0x60] sm:$0xff]
  %v354 = vld [vmem:[%s1 + $0x68] sm:$0xff]
  %v355 = vld [vmem:[%s1 + $0x70] sm:$0xff]
  %v356 = vld [vmem:[%s1 + $0x78] sm:$0xff]
  %v357 = vld [vmem:[%s1 + $0x80] sm:$0xff]
  %v358 = vld [vmem:[%s1 + $0x88] sm:$0xff]
  %v359 = vld [vmem:[%s1 + $0x90] sm:$0xff]
  %v360 = vld [vmem:[%s1 + $0x98] sm:$0xff]
  %v361 = vld [vmem:[%s1 + $0xa0] sm:$0xff]
  %v362 = vld [vmem:[%s1 + $0xa8] sm:$0xff]
  %v363 = vld [vmem:[%s1 + $0xb0] sm:$0xff]
  %v364 = vld [vmem:[%s1 + $0xb8] sm:$0xff]
  %v365 = vld [vmem:[%s1 + $0xc0] sm:$0xff]
  %v366 = vld [vmem:[%s1 + $0xc8] sm:$0xff]
  %v367 = vld [vmem:[%s1 + $0xd0] sm:$0xff]
  %v368 = vld [vmem:[%s1 + $0xd8] sm:$0xff]
  %v369 = vld [vmem:[%s1 + $0xe0] sm:$0xff]
  %v370 = vld [vmem:[%s1 + $0xe8] sm:$0xff]
  %v371 = vld [vmem:[%s1 + $0xf0] sm:$0xff]
  %v372 = vld [vmem:[%s1 + $0xf8] sm:$0xff]
  %v405 = vunpack.c.l.b16 %v341
  %v406 = vunpack.c.h.b16 %v341
  %v407 = vunpack.c.l.b16 %v342
  %v408 = vunpack.c.h.b16 %v342
  %v409 = vunpack.c.l.b16 %v343
  %v410 = vunpack.c.h.b16 %v343
  %v411 = vunpack.c.l.b16 %v344
  %v412 = vunpack.c.h.b16 %v344
  %v413 = vunpack.c.l.b16 %v345
  %v414 = vunpack.c.h.b16 %v345
  %v415 = vunpack.c.l.b16 %v346
  %v416 = vunpack.c.h.b16 %v346
  %v417 = vunpack.c.l.b16 %v347
  %v418 = vunpack.c.h.b16 %v347
  %v419 = vunpack.c.l.b16 %v348
  %v420 = vunpack.c.h.b16 %v348
  %v421 = vunpack.c.l.b16 %v349
  %v422 = vunpack.c.h.b16 %v349
  %v423 = vunpack.c.l.b16 %v350
  %v424 = vunpack.c.h.b16 %v350
  %v425 = vunpack.c.l.b16 %v351
  %v426 = vunpack.c.h.b16 %v351
  %v427 = vunpack.c.l.b16 %v352
  %v428 = vunpack.c.h.b16 %v352
  %v429 = vunpack.c.l.b16 %v353
  %v430 = vunpack.c.h.b16 %v353
  %v431 = vunpack.c.l.b16 %v354
  %v432 = vunpack.c.h.b16 %v354
  %v433 = vunpack.c.l.b16 %v355
  %v434 = vunpack.c.h.b16 %v355
  %v435 = vunpack.c.l.b16 %v356
  %v436 = vunpack.c.h.b16 %v356
  %v437 = vunpack.c.l.b16 %v357
  %v438 = vunpack.c.h.b16 %v357
  %v439 = vunpack.c.l.b16 %v358
  %v440 = vunpack.c.h.b16 %v358
  %v441 = vunpack.c.l.b16 %v359
  %v442 = vunpack.c.h.b16 %v359
  %v443 = vunpack.c.l.b16 %v360
  %v444 = vunpack.c.h.b16 %v360
  %v445 = vunpack.c.l.b16 %v361
  %v446 = vunpack.c.h.b16 %v361
  %v447 = vunpack.c.l.b16 %v362
  %v448 = vunpack.c.h.b16 %v362
  %v449 = vunpack.c.l.b16 %v363
  %v450 = vunpack.c.h.b16 %v363
  %v451 = vunpack.c.l.b16 %v364
  %v452 = vunpack.c.h.b16 %v364
  %v453 = vunpack.c.l.b16 %v365
  %v454 = vunpack.c.h.b16 %v365
  %v455 = vunpack.c.l.b16 %v366
  %v456 = vunpack.c.h.b16 %v366
  %v457 = vunpack.c.l.b16 %v367
  %v458 = vunpack.c.h.b16 %v367
  %v459 = vunpack.c.l.b16 %v368
  %v460 = vunpack.c.h.b16 %v368
  %v461 = vunpack.c.l.b16 %v369
  %v462 = vunpack.c.h.b16 %v369
  %v463 = vunpack.c.l.b16 %v370
  %v464 = vunpack.c.h.b16 %v370
  %v465 = vunpack.c.l.b16 %v371
  %v466 = vunpack.c.h.b16 %v371
  %v467 = vunpack.c.l.b16 %v372
  %v468 = vunpack.c.h.b16 %v372
  %v469 = vpack.c.b16 %v409, %v405
  %v470 = vpack.c.b16 %v410, %v406
  %v471 = vpack.c.b16 %v411, %v407
  %v472 = vpack.c.b16 %v412, %v408
  %v473 = vpack.c.b16 %v417, %v413
  %v474 = vpack.c.b16 %v418, %v414
  %v475 = vpack.c.b16 %v419, %v415
  %v476 = vpack.c.b16 %v420, %v416
  %v477 = vpack.c.b16 %v425, %v421
  %v478 = vpack.c.b16 %v426, %v422
  %v479 = vpack.c.b16 %v427, %v423
  %v480 = vpack.c.b16 %v428, %v424
  %v481 = vpack.c.b16 %v433, %v429
  %v482 = vpack.c.b16 %v434, %v430
  %v483 = vpack.c.b16 %v435, %v431
  %v484 = vpack.c.b16 %v436, %v432
  %v485 = vpack.c.b16 %v441, %v437
  %v486 = vpack.c.b16 %v442, %v438
  %v487 = vpack.c.b16 %v443, %v439
  %v488 = vpack.c.b16 %v444, %v440
  %v489 = vpack.c.b16 %v449, %v445
  %v490 = vpack.c.b16 %v450, %v446
  %v491 = vpack.c.b16 %v451, %v447
  %v492 = vpack.c.b16 %v452, %v448
  %v493 = vpack.c.b16 %v457, %v453
  %v494 = vpack.c.b16 %v458, %v454
  %v495 = vpack.c.b16 %v459, %v455
  %v496 = vpack.c.b16 %v460, %v456
  %v497 = vpack.c.b16 %v465, %v461
  %v498 = vpack.c.b16 %v466, %v462
  %v499 = vpack.c.b16 %v467, %v463
  %v500 = vpack.c.b16 %v468, %v464
  %533 = vmatprep.subr.bf16.mxu0 %v470
  %534 = vmatpush1.bf16.msra.mxu0 %v469
  %535 = vmatprep.subr.bf16.mxu0 %v474
  %536 = vmatpush1.bf16.msra.mxu0 %v473
  %537 = vmatprep.subr.bf16.mxu0 %v478
  %538 = vmatpush1.bf16.msra.mxu0 %v477
  %539 = vmatprep.subr.bf16.mxu0 %v482
  %540 = vmatpush1.bf16.msra.mxu0 %v481
  %541 = vmatprep.subr.bf16.mxu0 %v486
  %542 = vmatpush1.bf16.msra.mxu0 %v485
  %543 = vmatprep.subr.bf16.mxu0 %v490
  %544 = vmatpush1.bf16.msra.mxu0 %v489
  %545 = vmatprep.subr.bf16.mxu0 %v494
  %546 = vmatpush1.bf16.msra.mxu0 %v493
  %547 = vmatprep.subr.bf16.mxu0 %v498
  %548 = vmatpush1.bf16.msra.mxu0 %v497
  %549 = vmatprep.subr.bf16.mxu0 0
  %550 = vmatpush1.bf16.msra.mxu0 0
  %551 = vmatprep.subr.bf16.mxu0 0
  %552 = vmatpush1.bf16.msra.mxu0 0
  %553 = vmatprep.subr.bf16.mxu0 0
  %554 = vmatpush1.bf16.msra.mxu0 0
  %555 = vmatprep.subr.bf16.mxu0 0
  %556 = vmatpush1.bf16.msra.mxu0 0
  %557 = vmatprep.subr.bf16.mxu0 0
  %558 = vmatpush1.bf16.msra.mxu0 0
  %559 = vmatprep.subr.bf16.mxu0 0
  %560 = vmatpush1.bf16.msra.mxu0 0
  %561 = vmatprep.subr.bf16.mxu0 0
  %562 = vmatpush1.bf16.msra.mxu0 0
  %563 = vmatprep.subr.bf16.mxu0 0
  %564 = vmatpush1.bf16.msra.mxu0 0
  %565 = vmatprep.mubr.bf16.mxu0 0
  %566 = vmatmul.mubr.bf16.gmra.mrb[0].mxu0 %v332
  %v567 = vpop.f32.mrb[0].mxu0
  %v568 = vadd.f32 0.0, %v567
  %v569 = vpop.f32.mrb[0].mxu0
  %v570 = vadd.f32 0.0, %v569
  %v571 = vpop.f32.mrb[0].mxu0
  %v572 = vpop.f32.mrb[0].mxu0
  %573 = vdwg.mxu0
  %574 = vmatprep.subr.bf16.mxu0 %v472
  %575 = vmatpush1.bf16.msra.mxu0 %v471
  %576 = vmatprep.subr.bf16.mxu0 %v476
  %577 = vmatpush1.bf16.msra.mxu0 %v475
  %578 = vmatprep.subr.bf16.mxu0 %v480
  %579 = vmatpush1.bf16.msra.mxu0 %v479
  %580 = vmatprep.subr.bf16.mxu0 %v484
  %581 = vmatpush1.bf16.msra.mxu0 %v483
  %582 = vmatprep.subr.bf16.mxu0 %v488
  %583 = vmatpush1.bf16.msra.mxu0 %v487
  %584 = vmatprep.subr.bf16.mxu0 %v492
  %585 = vmatpush1.bf16.msra.mxu0 %v491
  %586 = vmatprep.subr.bf16.mxu0 %v496
  %587 = vmatpush1.bf16.msra.mxu0 %v495
  %588 = vmatprep.subr.bf16.mxu0 %v500
  %589 = vmatpush1.bf16.msra.mxu0 %v499
  %590 = vmatprep.subr.bf16.mxu0 0
  %591 = vmatpush1.bf16.msra.mxu0 0
  %592 = vmatprep.subr.bf16.mxu0 0
  %593 = vmatpush1.bf16.msra.mxu0 0
  %594 = vmatprep.subr.bf16.mxu0 0
  %595 = vmatpush1.bf16.msra.mxu0 0
  %596 = vmatprep.subr.bf16.mxu0 0
  %597 = vmatpush1.bf16.msra.mxu0 0
  %598 = vmatprep.subr.bf16.mxu0 0
  %599 = vmatpush1.bf16.msra.mxu0 0
  %600 = vmatprep.subr.bf16.mxu0 0
  %601 = vmatpush1.bf16.msra.mxu0 0
  %602 = vmatprep.subr.bf16.mxu0 0
  %603 = vmatpush1.bf16.msra.mxu0 0
  %604 = vmatprep.subr.bf16.mxu0 0
  %605 = vmatpush1.bf16.msra.mxu0 0
  %606 = vmatprep.mubr.bf16.mxu0 0
  %607 = vmatmul.mubr.bf16.gmra.mrb[0].mxu0 %v332
  %v608 = vpop.f32.mrb[0].mxu0
  %v609 = vadd.f32 0.0, %v608
  %v610 = vpop.f32.mrb[0].mxu0
  %v611 = vadd.f32 0.0, %v610
  %v612 = vpop.f32.mrb[0].mxu0
  %v613 = vpop.f32.mrb[0].mxu0
  %614 = vdwg.mxu0
  %v615 = vadd.f32 %v337, %v568
  %v616 = vadd.f32 %v338, %v570
  %v617 = vadd.f32 %v339, %v609
  %v618 = vadd.f32 %v340, %v611
  %v619 = vxor.u32 %v615, 2147483648
  %v620 = vmul.f32 %v619, 1.442695
  %v621 = vpow.pop %v620
  %v622 = vadd.f32 %v621, 1.0
  %v623 = vrcp.pop %v622
  %v624 = vmul.f32 1.0, %v623
  %v625 = vxor.u32 %v616, 2147483648
  %v626 = vmul.f32 %v625, 1.442695
  %v627 = vpow.pop %v626
  %v628 = vadd.f32 %v627, 1.0
  %v629 = vrcp.pop %v628
  %v630 = vmul.f32 1.0, %v629
  %v631 = vtanh.pop %v617
  %v632 = vxor.u32 %v618, 2147483648
  %v633 = vmul.f32 %v632, 1.442695
  %v634 = vpow.pop %v633
  %v635 = vadd.f32 %v634, 1.0
  %v636 = vrcp.pop %v635
  %v637 = vmul.f32 1.0, %v636
  %v638 = vmul.f32 %v630, %v329
  %v639 = vmul.f32 %v624, %v631
  %v640 = vadd.f32 %v638, %v639
  %v641 = vtanh.pop %v640
  %v642 = vmul.f32 %v637, %v641
  %v643 = vpack.c.bf16 %v642, %v642
  %s644 = scalar_lea.vmem %s2, 4
  %645 = vst [vmem:[%s644] sm:$0xf] %v643
  %s646 = scalar_lea.vmem %s0, 32
  %v647 = vld [vmem:[%s646] sm:$0xff]
  %v648 = vld [vmem:[%s646 + $0x8] sm:$0xff]
  %v649 = vunpack.c.l.bf16 %v647
  %v650 = vunpack.c.h.bf16 %v647
  %v651 = vunpack.c.l.bf16 %v648
  %v652 = vunpack.c.h.bf16 %v648
  %v653 = vld [vmem:[%s1] sm:$0xff]
  %v654 = vld [vmem:[%s1 + $0x8] sm:$0xff]
  %v655 = vld [vmem:[%s1 + $0x10] sm:$0xff]
  %v656 = vld [vmem:[%s1 + $0x18] sm:$0xff]
  %v657 = vld [vmem:[%s1 + $0x20] sm:$0xff]
  %v658 = vld [vmem:[%s1 + $0x28] sm:$0xff]
  %v659 = vld [vmem:[%s1 + $0x30] sm:$0xff]
  %v660 = vld [vmem:[%s1 + $0x38] sm:$0xff]
  %v661 = vld [vmem:[%s1 + $0x40] sm:$0xff]
  %v662 = vld [vmem:[%s1 + $0x48] sm:$0xff]
  %v663 = vld [vmem:[%s1 + $0x50] sm:$0xff]
  %v664 = vld [vmem:[%s1 + $0x58] sm:$0xff]
  %v665 = vld [vmem:[%s1 + $0x60] sm:$0xff]
  %v666 = vld [vmem:[%s1 + $0x68] sm:$0xff]
  %v667 = vld [vmem:[%s1 + $0x70] sm:$0xff]
  %v668 = vld [vmem:[%s1 + $0x78] sm:$0xff]
  %v669 = vld [vmem:[%s1 + $0x80] sm:$0xff]
  %v670 = vld [vmem:[%s1 + $0x88] sm:$0xff]
  %v671 = vld [vmem:[%s1 + $0x90] sm:$0xff]
  %v672 = vld [vmem:[%s1 + $0x98] sm:$0xff]
  %v673 = vld [vmem:[%s1 + $0xa0] sm:$0xff]
  %v674 = vld [vmem:[%s1 + $0xa8] sm:$0xff]
  %v675 = vld [vmem:[%s1 + $0xb0] sm:$0xff]
  %v676 = vld [vmem:[%s1 + $0xb8] sm:$0xff]
  %v677 = vld [vmem:[%s1 + $0xc0] sm:$0xff]
  %v678 = vld [vmem:[%s1 + $0xc8] sm:$0xff]
  %v679 = vld [vmem:[%s1 + $0xd0] sm:$0xff]
  %v680 = vld [vmem:[%s1 + $0xd8] sm:$0xff]
  %v681 = vld [vmem:[%s1 + $0xe0] sm:$0xff]
  %v682 = vld [vmem:[%s1 + $0xe8] sm:$0xff]
  %v683 = vld [vmem:[%s1 + $0xf0] sm:$0xff]
  %v684 = vld [vmem:[%s1 + $0xf8] sm:$0xff]
  %v717 = vunpack.c.l.b16 %v653
  %v718 = vunpack.c.h.b16 %v653
  %v719 = vunpack.c.l.b16 %v654
  %v720 = vunpack.c.h.b16 %v654
  %v721 = vunpack.c.l.b16 %v655
  %v722 = vunpack.c.h.b16 %v655
  %v723 = vunpack.c.l.b16 %v656
  %v724 = vunpack.c.h.b16 %v656
  %v725 = vunpack.c.l.b16 %v657
  %v726 = vunpack.c.h.b16 %v657
  %v727 = vunpack.c.l.b16 %v658
  %v728 = vunpack.c.h.b16 %v658
  %v729 = vunpack.c.l.b16 %v659
  %v730 = vunpack.c.h.b16 %v659
  %v731 = vunpack.c.l.b16 %v660
  %v732 = vunpack.c.h.b16 %v660
  %v733 = vunpack.c.l.b16 %v661
  %v734 = vunpack.c.h.b16 %v661
  %v735 = vunpack.c.l.b16 %v662
  %v736 = vunpack.c.h.b16 %v662
  %v737 = vunpack.c.l.b16 %v663
  %v738 = vunpack.c.h.b16 %v663
  %v739 = vunpack.c.l.b16 %v664
  %v740 = vunpack.c.h.b16 %v664
  %v741 = vunpack.c.l.b16 %v665
  %v742 = vunpack.c.h.b16 %v665
  %v743 = vunpack.c.l.b16 %v666
  %v744 = vunpack.c.h.b16 %v666
  %v745 = vunpack.c.l.b16 %v667
  %v746 = vunpack.c.h.b16 %v667
  %v747 = vunpack.c.l.b16 %v668
  %v748 = vunpack.c.h.b16 %v668
  %v749 = vunpack.c.l.b16 %v669
  %v750 = vunpack.c.h.b16 %v669
  %v751 = vunpack.c.l.b16 %v670
  %v752 = vunpack.c.h.b16 %v670
  %v753 = vunpack.c.l.b16 %v671
  %v754 = vunpack.c.h.b16 %v671
  %v755 = vunpack.c.l.b16 %v672
  %v756 = vunpack.c.h.b16 %v672
  %v757 = vunpack.c.l.b16 %v673
  %v758 = vunpack.c.h.b16 %v673
  %v759 = vunpack.c.l.b16 %v674
  %v760 = vunpack.c.h.b16 %v674
  %v761 = vunpack.c.l.b16 %v675
  %v762 = vunpack.c.h.b16 %v675
  %v763 = vunpack.c.l.b16 %v676
  %v764 = vunpack.c.h.b16 %v676
  %v765 = vunpack.c.l.b16 %v677
  %v766 = vunpack.c.h.b16 %v677
  %v767 = vunpack.c.l.b16 %v678
  %v768 = vunpack.c.h.b16 %v678
  %v769 = vunpack.c.l.b16 %v679
  %v770 = vunpack.c.h.b16 %v679
  %v771 = vunpack.c.l.b16 %v680
  %v772 = vunpack.c.h.b16 %v680
  %v773 = vunpack.c.l.b16 %v681
  %v774 = vunpack.c.h.b16 %v681
  %v775 = vunpack.c.l.b16 %v682
  %v776 = vunpack.c.h.b16 %v682
  %v777 = vunpack.c.l.b16 %v683
  %v778 = vunpack.c.h.b16 %v683
  %v779 = vunpack.c.l.b16 %v684
  %v780 = vunpack.c.h.b16 %v684
  %v781 = vpack.c.b16 %v721, %v717
  %v782 = vpack.c.b16 %v722, %v718
  %v783 = vpack.c.b16 %v723, %v719
  %v784 = vpack.c.b16 %v724, %v720
  %v785 = vpack.c.b16 %v729, %v725
  %v786 = vpack.c.b16 %v730, %v726
  %v787 = vpack.c.b16 %v731, %v727
  %v788 = vpack.c.b16 %v732, %v728
  %v789 = vpack.c.b16 %v737, %v733
  %v790 = vpack.c.b16 %v738, %v734
  %v791 = vpack.c.b16 %v739, %v735
  %v792 = vpack.c.b16 %v740, %v736
  %v793 = vpack.c.b16 %v745, %v741
  %v794 = vpack.c.b16 %v746, %v742
  %v795 = vpack.c.b16 %v747, %v743
  %v796 = vpack.c.b16 %v748, %v744
  %v797 = vpack.c.b16 %v753, %v749
  %v798 = vpack.c.b16 %v754, %v750
  %v799 = vpack.c.b16 %v755, %v751
  %v800 = vpack.c.b16 %v756, %v752
  %v801 = vpack.c.b16 %v761, %v757
  %v802 = vpack.c.b16 %v762, %v758
  %v803 = vpack.c.b16 %v763, %v759
  %v804 = vpack.c.b16 %v764, %v760
  %v805 = vpack.c.b16 %v769, %v765
  %v806 = vpack.c.b16 %v770, %v766
  %v807 = vpack.c.b16 %v771, %v767
  %v808 = vpack.c.b16 %v772, %v768
  %v809 = vpack.c.b16 %v777, %v773
  %v810 = vpack.c.b16 %v778, %v774
  %v811 = vpack.c.b16 %v779, %v775
  %v812 = vpack.c.b16 %v780, %v776
  %845 = vmatprep.subr.bf16.mxu0 %v782
  %846 = vmatpush1.bf16.msra.mxu0 %v781
  %847 = vmatprep.subr.bf16.mxu0 %v786
  %848 = vmatpush1.bf16.msra.mxu0 %v785
  %849 = vmatprep.subr.bf16.mxu0 %v790
  %850 = vmatpush1.bf16.msra.mxu0 %v789
  %851 = vmatprep.subr.bf16.mxu0 %v794
  %852 = vmatpush1.bf16.msra.mxu0 %v793
  %853 = vmatprep.subr.bf16.mxu0 %v798
  %854 = vmatpush1.bf16.msra.mxu0 %v797
  %855 = vmatprep.subr.bf16.mxu0 %v802
  %856 = vmatpush1.bf16.msra.mxu0 %v801
  %857 = vmatprep.subr.bf16.mxu0 %v806
  %858 = vmatpush1.bf16.msra.mxu0 %v805
  %859 = vmatprep.subr.bf16.mxu0 %v810
  %860 = vmatpush1.bf16.msra.mxu0 %v809
  %861 = vmatprep.subr.bf16.mxu0 0
  %862 = vmatpush1.bf16.msra.mxu0 0
  %863 = vmatprep.subr.bf16.mxu0 0
  %864 = vmatpush1.bf16.msra.mxu0 0
  %865 = vmatprep.subr.bf16.mxu0 0
  %866 = vmatpush1.bf16.msra.mxu0 0
  %867 = vmatprep.subr.bf16.mxu0 0
  %868 = vmatpush1.bf16.msra.mxu0 0
  %869 = vmatprep.subr.bf16.mxu0 0
  %870 = vmatpush1.bf16.msra.mxu0 0
  %871 = vmatprep.subr.bf16.mxu0 0
  %872 = vmatpush1.bf16.msra.mxu0 0
  %873 = vmatprep.subr.bf16.mxu0 0
  %874 = vmatpush1.bf16.msra.mxu0 0
  %875 = vmatprep.subr.bf16.mxu0 0
  %876 = vmatpush1.bf16.msra.mxu0 0
  %877 = vmatprep.mubr.bf16.mxu0 0
  %878 = vmatmul.mubr.bf16.gmra.mrb[0].mxu0 %v643
  %v879 = vpop.f32.mrb[0].mxu0
  %v880 = vadd.f32 0.0, %v879
  %v881 = vpop.f32.mrb[0].mxu0
  %v882 = vadd.f32 0.0, %v881
  %v883 = vpop.f32.mrb[0].mxu0
  %v884 = vpop.f32.mrb[0].mxu0
  %885 = vdwg.mxu0
  %886 = vmatprep.subr.bf16.mxu0 %v784
  %887 = vmatpush1.bf16.msra.mxu0 %v783
  %888 = vmatprep.subr.bf16.mxu0 %v788
  %889 = vmatpush1.bf16.msra.mxu0 %v787
  %890 = vmatprep.subr.bf16.mxu0 %v792
  %891 = vmatpush1.bf16.msra.mxu0 %v791
  %892 = vmatprep.subr.bf16.mxu0 %v796
  %893 = vmatpush1.bf16.msra.mxu0 %v795
  %894 = vmatprep.subr.bf16.mxu0 %v800
  %895 = vmatpush1.bf16.msra.mxu0 %v799
  %896 = vmatprep.subr.bf16.mxu0 %v804
  %897 = vmatpush1.bf16.msra.mxu0 %v803
  %898 = vmatprep.subr.bf16.mxu0 %v808
  %899 = vmatpush1.bf16.msra.mxu0 %v807
  %900 = vmatprep.subr.bf16.mxu0 %v812
  %901 = vmatpush1.bf16.msra.mxu0 %v811
  %902 = vmatprep.subr.bf16.mxu0 0
  %903 = vmatpush1.bf16.msra.mxu0 0
  %904 = vmatprep.subr.bf16.mxu0 0
  %905 = vmatpush1.bf16.msra.mxu0 0
  %906 = vmatprep.subr.bf16.mxu0 0
  %907 = vmatpush1.bf16.msra.mxu0 0
  %908 = vmatprep.subr.bf16.mxu0 0
  %909 = vmatpush1.bf16.msra.mxu0 0
  %910 = vmatprep.subr.bf16.mxu0 0
  %911 = vmatpush1.bf16.msra.mxu0 0
  %912 = vmatprep.subr.bf16.mxu0 0
  %913 = vmatpush1.bf16.msra.mxu0 0
  %914 = vmatprep.subr.bf16.mxu0 0
  %915 = vmatpush1.bf16.msra.mxu0 0
  %916 = vmatprep.subr.bf16.mxu0 0
  %917 = vmatpush1.bf16.msra.mxu0 0
  %918 = vmatprep.mubr.bf16.mxu0 0
  %919 = vmatmul.mubr.bf16.gmra.mrb[0].mxu0 %v643
  %v920 = vpop.f32.mrb[0].mxu0
  %v921 = vadd.f32 0.0, %v920
  %v922 = vpop.f32.mrb[0].mxu0
  %v923 = vadd.f32 0.0, %v922
  %v924 = vpop.f32.mrb[0].mxu0
  %v925 = vpop.f32.mrb[0].mxu0
  %926 = vdwg.mxu0
  %v927 = vadd.f32 %v649, %v880
  %v928 = vadd.f32 %v650, %v882
  %v929 = vadd.f32 %v651, %v921
  %v930 = vadd.f32 %v652, %v923
  %v931 = vxor.u32 %v927, 2147483648
  %v932 = vmul.f32 %v931, 1.442695
  %v933 = vpow.pop %v932
  %v934 = vadd.f32 %v933, 1.0
  %v935 = vrcp.pop %v934
  %v936 = vmul.f32 1.0, %v935
  %v937 = vxor.u32 %v928, 2147483648
  %v938 = vmul.f32 %v937, 1.442695
  %v939 = vpow.pop %v938
  %v940 = vadd.f32 %v939, 1.0
  %v941 = vrcp.pop %v940
  %v942 = vmul.f32 1.0, %v941
  %v943 = vtanh.pop %v929
  %v944 = vxor.u32 %v930, 2147483648
  %v945 = vmul.f32 %v944, 1.442695
  %v946 = vpow.pop %v945
  %v947 = vadd.f32 %v946, 1.0
  %v948 = vrcp.pop %v947
  %v949 = vmul.f32 1.0, %v948
  %v950 = vmul.f32 %v942, %v640
  %v951 = vmul.f32 %v936, %v943
  %v952 = vadd.f32 %v950, %v951
  %v953 = vtanh.pop %v952
  %v954 = vmul.f32 %v949, %v953
  %v955 = vpack.c.bf16 %v954, %v954
  %s956 = scalar_lea.vmem %s2, 8
  %957 = vst [vmem:[%s956] sm:$0xf] %v955
  %s958 = scalar_lea.vmem %s0, 48
  %v959 = vld [vmem:[%s958] sm:$0xff]
  %v960 = vld [vmem:[%s958 + $0x8] sm:$0xff]
  %v961 = vunpack.c.l.bf16 %v959
  %v962 = vunpack.c.h.bf16 %v959
  %v963 = vunpack.c.l.bf16 %v960
  %v964 = vunpack.c.h.bf16 %v960
  %v965 = vld [vmem:[%s1] sm:$0xff]
  %v966 = vld [vmem:[%s1 + $0x8] sm:$0xff]
  %v967 = vld [vmem:[%s1 + $0x10] sm:$0xff]
  %v968 = vld [vmem:[%s1 + $0x18] sm:$0xff]
  %v969 = vld [vmem:[%s1 + $0x20] sm:$0xff]
  %v970 = vld [vmem:[%s1 + $0x28] sm:$0xff]
  %v971 = vld [vmem:[%s1 + $0x30] sm:$0xff]
  %v972 = vld [vmem:[%s1 + $0x38] sm:$0xff]
  %v973 = vld [vmem:[%s1 + $0x40] sm:$0xff]
  %v974 = vld [vmem:[%s1 + $0x48] sm:$0xff]
  %v975 = vld [vmem:[%s1 + $0x50] sm:$0xff]
  %v976 = vld [vmem:[%s1 + $0x58] sm:$0xff]
  %v977 = vld [vmem:[%s1 + $0x60] sm:$0xff]
  %v978 = vld [vmem:[%s1 + $0x68] sm:$0xff]
  %v979 = vld [vmem:[%s1 + $0x70] sm:$0xff]
  %v980 = vld [vmem:[%s1 + $0x78] sm:$0xff]
  %v981 = vld [vmem:[%s1 + $0x80] sm:$0xff]
  %v982 = vld [vmem:[%s1 + $0x88] sm:$0xff]
  %v983 = vld [vmem:[%s1 + $0x90] sm:$0xff]
  %v984 = vld [vmem:[%s1 + $0x98] sm:$0xff]
  %v985 = vld [vmem:[%s1 + $0xa0] sm:$0xff]
  %v986 = vld [vmem:[%s1 + $0xa8] sm:$0xff]
  %v987 = vld [vmem:[%s1 + $0xb0] sm:$0xff]
  %v988 = vld [vmem:[%s1 + $0xb8] sm:$0xff]
  %v989 = vld [vmem:[%s1 + $0xc0] sm:$0xff]
  %v990 = vld [vmem:[%s1 + $0xc8] sm:$0xff]
  %v991 = vld [vmem:[%s1 + $0xd0] sm:$0xff]
  %v992 = vld [vmem:[%s1 + $0xd8] sm:$0xff]
  %v993 = vld [vmem:[%s1 + $0xe0] sm:$0xff]
  %v994 = vld [vmem:[%s1 + $0xe8] sm:$0xff]
  %v995 = vld [vmem:[%s1 + $0xf0] sm:$0xff]
  %v996 = vld [vmem:[%s1 + $0xf8] sm:$0xff]
  %v1029 = vunpack.c.l.b16 %v965
  %v1030 = vunpack.c.h.b16 %v965
  %v1031 = vunpack.c.l.b16 %v966
  %v1032 = vunpack.c.h.b16 %v966
  %v1033 = vunpack.c.l.b16 %v967
  %v1034 = vunpack.c.h.b16 %v967
  %v1035 = vunpack.c.l.b16 %v968
  %v1036 = vunpack.c.h.b16 %v968
  %v1037 = vunpack.c.l.b16 %v969
  %v1038 = vunpack.c.h.b16 %v969
  %v1039 = vunpack.c.l.b16 %v970
  %v1040 = vunpack.c.h.b16 %v970
  %v1041 = vunpack.c.l.b16 %v971
  %v1042 = vunpack.c.h.b16 %v971
  %v1043 = vunpack.c.l.b16 %v972
  %v1044 = vunpack.c.h.b16 %v972
  %v1045 = vunpack.c.l.b16 %v973
  %v1046 = vunpack.c.h.b16 %v973
  %v1047 = vunpack.c.l.b16 %v974
  %v1048 = vunpack.c.h.b16 %v974
  %v1049 = vunpack.c.l.b16 %v975
  %v1050 = vunpack.c.h.b16 %v975
  %v1051 = vunpack.c.l.b16 %v976
  %v1052 = vunpack.c.h.b16 %v976
  %v1053 = vunpack.c.l.b16 %v977
  %v1054 = vunpack.c.h.b16 %v977
  %v1055 = vunpack.c.l.b16 %v978
  %v1056 = vunpack.c.h.b16 %v978
  %v1057 = vunpack.c.l.b16 %v979
  %v1058 = vunpack.c.h.b16 %v979
  %v1059 = vunpack.c.l.b16 %v980
  %v1060 = vunpack.c.h.b16 %v980
  %v1061 = vunpack.c.l.b16 %v981
  %v1062 = vunpack.c.h.b16 %v981
  %v1063 = vunpack.c.l.b16 %v982
  %v1064 = vunpack.c.h.b16 %v982
  %v1065 = vunpack.c.l.b16 %v983
  %v1066 = vunpack.c.h.b16 %v983
  %v1067 = vunpack.c.l.b16 %v984
  %v1068 = vunpack.c.h.b16 %v984
  %v1069 = vunpack.c.l.b16 %v985
  %v1070 = vunpack.c.h.b16 %v985
  %v1071 = vunpack.c.l.b16 %v986
  %v1072 = vunpack.c.h.b16 %v986
  %v1073 = vunpack.c.l.b16 %v987
  %v1074 = vunpack.c.h.b16 %v987
  %v1075 = vunpack.c.l.b16 %v988
  %v1076 = vunpack.c.h.b16 %v988
  %v1077 = vunpack.c.l.b16 %v989
  %v1078 = vunpack.c.h.b16 %v989
  %v1079 = vunpack.c.l.b16 %v990
  %v1080 = vunpack.c.h.b16 %v990
  %v1081 = vunpack.c.l.b16 %v991
  %v1082 = vunpack.c.h.b16 %v991
  %v1083 = vunpack.c.l.b16 %v992
  %v1084 = vunpack.c.h.b16 %v992
  %v1085 = vunpack.c.l.b16 %v993
  %v1086 = vunpack.c.h.b16 %v993
  %v1087 = vunpack.c.l.b16 %v994
  %v1088 = vunpack.c.h.b16 %v994
  %v1089 = vunpack.c.l.b16 %v995
  %v1090 = vunpack.c.h.b16 %v995
  %v1091 = vunpack.c.l.b16 %v996
  %v1092 = vunpack.c.h.b16 %v996
  %v1093 = vpack.c.b16 %v1033, %v1029
  %v1094 = vpack.c.b16 %v1034, %v1030
  %v1095 = vpack.c.b16 %v1035, %v1031
  %v1096 = vpack.c.b16 %v1036, %v1032
  %v1097 = vpack.c.b16 %v1041, %v1037
  %v1098 = vpack.c.b16 %v1042, %v1038
  %v1099 = vpack.c.b16 %v1043, %v1039
  %v1100 = vpack.c.b16 %v1044, %v1040
  %v1101 = vpack.c.b16 %v1049, %v1045
  %v1102 = vpack.c.b16 %v1050, %v1046
  %v1103 = vpack.c.b16 %v1051, %v1047
  %v1104 = vpack.c.b16 %v1052, %v1048
  %v1105 = vpack.c.b16 %v1057, %v1053
  %v1106 = vpack.c.b16 %v1058, %v1054
  %v1107 = vpack.c.b16 %v1059, %v1055
  %v1108 = vpack.c.b16 %v1060, %v1056
  %v1109 = vpack.c.b16 %v1065, %v1061
  %v1110 = vpack.c.b16 %v1066, %v1062
  %v1111 = vpack.c.b16 %v1067, %v1063
  %v1112 = vpack.c.b16 %v1068, %v1064
  %v1113 = vpack.c.b16 %v1073, %v1069
  %v1114 = vpack.c.b16 %v1074, %v1070
  %v1115 = vpack.c.b16 %v1075, %v1071
  %v1116 = vpack.c.b16 %v1076, %v1072
  %v1117 = vpack.c.b16 %v1081, %v1077
  %v1118 = vpack.c.b16 %v1082, %v1078
  %v1119 = vpack.c.b16 %v1083, %v1079
  %v1120 = vpack.c.b16 %v1084, %v1080
  %v1121 = vpack.c.b16 %v1089, %v1085
  %v1122 = vpack.c.b16 %v1090, %v1086
  %v1123 = vpack.c.b16 %v1091, %v1087
  %v1124 = vpack.c.b16 %v1092, %v1088
  %1157 = vmatprep.subr.bf16.mxu0 %v1094
  %1158 = vmatpush1.bf16.msra.mxu0 %v1093
  %1159 = vmatprep.subr.bf16.mxu0 %v1098
  %1160 = vmatpush1.bf16.msra.mxu0 %v1097
  %1161 = vmatprep.subr.bf16.mxu0 %v1102
  %1162 = vmatpush1.bf16.msra.mxu0 %v1101
  %1163 = vmatprep.subr.bf16.mxu0 %v1106
  %1164 = vmatpush1.bf16.msra.mxu0 %v1105
  %1165 = vmatprep.subr.bf16.mxu0 %v1110
  %1166 = vmatpush1.bf16.msra.mxu0 %v1109
  %1167 = vmatprep.subr.bf16.mxu0 %v1114
  %1168 = vmatpush1.bf16.msra.mxu0 %v1113
  %1169 = vmatprep.subr.bf16.mxu0 %v1118
  %1170 = vmatpush1.bf16.msra.mxu0 %v1117
  %1171 = vmatprep.subr.bf16.mxu0 %v1122
  %1172 = vmatpush1.bf16.msra.mxu0 %v1121
  %1173 = vmatprep.subr.bf16.mxu0 0
  %1174 = vmatpush1.bf16.msra.mxu0 0
  %1175 = vmatprep.subr.bf16.mxu0 0
  %1176 = vmatpush1.bf16.msra.mxu0 0
  %1177 = vmatprep.subr.bf16.mxu0 0
  %1178 = vmatpush1.bf16.msra.mxu0 0
  %1179 = vmatprep.subr.bf16.mxu0 0
  %1180 = vmatpush1.bf16.msra.mxu0 0
  %1181 = vmatprep.subr.bf16.mxu0 0
  %1182 = vmatpush1.bf16.msra.mxu0 0
  %1183 = vmatprep.subr.bf16.mxu0 0
  %1184 = vmatpush1.bf16.msra.mxu0 0
  %1185 = vmatprep.subr.bf16.mxu0 0
  %1186 = vmatpush1.bf16.msra.mxu0 0
  %1187 = vmatprep.subr.bf16.mxu0 0
  %1188 = vmatpush1.bf16.msra.mxu0 0
  %1189 = vmatprep.mubr.bf16.mxu0 0
  %1190 = vmatmul.mubr.bf16.gmra.mrb[0].mxu0 %v955
  %v1191 = vpop.f32.mrb[0].mxu0
  %v1192 = vadd.f32 0.0, %v1191
  %v1193 = vpop.f32.mrb[0].mxu0
  %v1194 = vadd.f32 0.0, %v1193
  %v1195 = vpop.f32.mrb[0].mxu0
  %v1196 = vpop.f32.mrb[0].mxu0
  %1197 = vdwg.mxu0
  %1198 = vmatprep.subr.bf16.mxu0 %v1096
  %1199 = vmatpush1.bf16.msra.mxu0 %v1095
  %1200 = vmatprep.subr.bf16.mxu0 %v1100
  %1201 = vmatpush1.bf16.msra.mxu0 %v1099
  %1202 = vmatprep.subr.bf16.mxu0 %v1104
  %1203 = vmatpush1.bf16.msra.mxu0 %v1103
  %1204 = vmatprep.subr.bf16.mxu0 %v1108
  %1205 = vmatpush1.bf16.msra.mxu0 %v1107
  %1206 = vmatprep.subr.bf16.mxu0 %v1112
  %1207 = vmatpush1.bf16.msra.mxu0 %v1111
  %1208 = vmatprep.subr.bf16.mxu0 %v1116
  %1209 = vmatpush1.bf16.msra.mxu0 %v1115
  %1210 = vmatprep.subr.bf16.mxu0 %v1120
  %1211 = vmatpush1.bf16.msra.mxu0 %v1119
  %1212 = vmatprep.subr.bf16.mxu0 %v1124
  %1213 = vmatpush1.bf16.msra.mxu0 %v1123
  %1214 = vmatprep.subr.bf16.mxu0 0
  %1215 = vmatpush1.bf16.msra.mxu0 0
  %1216 = vmatprep.subr.bf16.mxu0 0
  %1217 = vmatpush1.bf16.msra.mxu0 0
  %1218 = vmatprep.subr.bf16.mxu0 0
  %1219 = vmatpush1.bf16.msra.mxu0 0
  %1220 = vmatprep.subr.bf16.mxu0 0
  %1221 = vmatpush1.bf16.msra.mxu0 0
  %1222 = vmatprep.subr.bf16.mxu0 0
  %1223 = vmatpush1.bf16.msra.mxu0 0
  %1224 = vmatprep.subr.bf16.mxu0 0
  %1225 = vmatpush1.bf16.msra.mxu0 0
  %1226 = vmatprep.subr.bf16.mxu0 0
  %1227 = vmatpush1.bf16.msra.mxu0 0
  %1228 = vmatprep.subr.bf16.mxu0 0
  %1229 = vmatpush1.bf16.msra.mxu0 0
  %1230 = vmatprep.mubr.bf16.mxu0 0
  %1231 = vmatmul.mubr.bf16.gmra.mrb[0].mxu0 %v955
  %v1232 = vpop.f32.mrb[0].mxu0
  %v1233 = vadd.f32 0.0, %v1232
  %v1234 = vpop.f32.mrb[0].mxu0
  %v1235 = vadd.f32 0.0, %v1234
  %v1236 = vpop.f32.mrb[0].mxu0
  %v1237 = vpop.f32.mrb[0].mxu0
  %1238 = vdwg.mxu0
  %v1239 = vadd.f32 %v961, %v1192
  %v1240 = vadd.f32 %v962, %v1194
  %v1241 = vadd.f32 %v963, %v1233
  %v1242 = vadd.f32 %v964, %v1235
  %v1243 = vxor.u32 %v1239, 2147483648
  %v1244 = vmul.f32 %v1243, 1.442695
  %v1245 = vpow.pop %v1244
  %v1246 = vadd.f32 %v1245, 1.0
  %v1247 = vrcp.pop %v1246
  %v1248 = vmul.f32 1.0, %v1247
  %v1249 = vxor.u32 %v1240, 2147483648
  %v1250 = vmul.f32 %v1249, 1.442695
  %v1251 = vpow.pop %v1250
  %v1252 = vadd.f32 %v1251, 1.0
  %v1253 = vrcp.pop %v1252
  %v1254 = vmul.f32 1.0, %v1253
  %v1255 = vtanh.pop %v1241
  %v1256 = vxor.u32 %v1242, 2147483648
  %v1257 = vmul.f32 %v1256, 1.442695
  %v1258 = vpow.pop %v1257
  %v1259 = vadd.f32 %v1258, 1.0
  %v1260 = vrcp.pop %v1259
  %v1261 = vmul.f32 1.0, %v1260
  %v1262 = vmul.f32 %v1254, %v952
  %v1263 = vmul.f32 %v1248, %v1255
  %v1264 = vadd.f32 %v1262, %v1263
  %v1265 = vtanh.pop %v1264
  %v1266 = vmul.f32 %v1261, %v1265
  %v1267 = vpack.c.bf16 %v1266, %v1266
  %s1268 = scalar_lea.vmem %s2, 12
  %1269 = vst [vmem:[%s1268] sm:$0xf] %v1267
  %s1270 = scalar_lea.vmem %s0, 64
  %v1271 = vld [vmem:[%s1270] sm:$0xff]
  %v1272 = vld [vmem:[%s1270 + $0x8] sm:$0xff]
  %v1273 = vunpack.c.l.bf16 %v1271
  %v1274 = vunpack.c.h.bf16 %v1271
  %v1275 = vunpack.c.l.bf16 %v1272
  %v1276 = vunpack.c.h.bf16 %v1272
  %v1277 = vld [vmem:[%s1] sm:$0xff]
  %v1278 = vld [vmem:[%s1 + $0x8] sm:$0xff]
  %v1279 = vld [vmem:[%s1 + $0x10] sm:$0xff]
  %v1280 = vld [vmem:[%s1 + $0x18] sm:$0xff]
  %v1281 = vld [vmem:[%s1 + $0x20] sm:$0xff]
  %v1282 = vld [vmem:[%s1 + $0x28] sm:$0xff]
  %v1283 = vld [vmem:[%s1 + $0x30] sm:$0xff]
  %v1284 = vld [vmem:[%s1 + $0x38] sm:$0xff]
  %v1285 = vld [vmem:[%s1 + $0x40] sm:$0xff]
  %v1286 = vld [vmem:[%s1 + $0x48] sm:$0xff]
  %v1287 = vld [vmem:[%s1 + $0x50] sm:$0xff]
  %v1288 = vld [vmem:[%s1 + $0x58] sm:$0xff]
  %v1289 = vld [vmem:[%s1 + $0x60] sm:$0xff]
  %v1290 = vld [vmem:[%s1 + $0x68] sm:$0xff]
  %v1291 = vld [vmem:[%s1 + $0x70] sm:$0xff]
  %v1292 = vld [vmem:[%s1 + $0x78] sm:$0xff]
  %v1293 = vld [vmem:[%s1 + $0x80] sm:$0xff]
  %v1294 = vld [vmem:[%s1 + $0x88] sm:$0xff]
  %v1295 = vld [vmem:[%s1 + $0x90] sm:$0xff]
  %v1296 = vld [vmem:[%s1 + $0x98] sm:$0xff]
  %v1297 = vld [vmem:[%s1 + $0xa0] sm:$0xff]
  %v1298 = vld [vmem:[%s1 + $0xa8] sm:$0xff]
  %v1299 = vld [vmem:[%s1 + $0xb0] sm:$0xff]
  %v1300 = vld [vmem:[%s1 + $0xb8] sm:$0xff]
  %v1301 = vld [vmem:[%s1 + $0xc0] sm:$0xff]
  %v1302 = vld [vmem:[%s1 + $0xc8] sm:$0xff]
  %v1303 = vld [vmem:[%s1 + $0xd0] sm:$0xff]
  %v1304 = vld [vmem:[%s1 + $0xd8] sm:$0xff]
  %v1305 = vld [vmem:[%s1 + $0xe0] sm:$0xff]
  %v1306 = vld [vmem:[%s1 + $0xe8] sm:$0xff]
  %v1307 = vld [vmem:[%s1 + $0xf0] sm:$0xff]
  %v1308 = vld [vmem:[%s1 + $0xf8] sm:$0xff]
  %v1341 = vunpack.c.l.b16 %v1277
  %v1342 = vunpack.c.h.b16 %v1277
  %v1343 = vunpack.c.l.b16 %v1278
  %v1344 = vunpack.c.h.b16 %v1278
  %v1345 = vunpack.c.l.b16 %v1279
  %v1346 = vunpack.c.h.b16 %v1279
  %v1347 = vunpack.c.l.b16 %v1280
  %v1348 = vunpack.c.h.b16 %v1280
  %v1349 = vunpack.c.l.b16 %v1281
  %v1350 = vunpack.c.h.b16 %v1281
  %v1351 = vunpack.c.l.b16 %v1282
  %v1352 = vunpack.c.h.b16 %v1282
  %v1353 = vunpack.c.l.b16 %v1283
  %v1354 = vunpack.c.h.b16 %v1283
  %v1355 = vunpack.c.l.b16 %v1284
  %v1356 = vunpack.c.h.b16 %v1284
  %v1357 = vunpack.c.l.b16 %v1285
  %v1358 = vunpack.c.h.b16 %v1285
  %v1359 = vunpack.c.l.b16 %v1286
  %v1360 = vunpack.c.h.b16 %v1286
  %v1361 = vunpack.c.l.b16 %v1287
  %v1362 = vunpack.c.h.b16 %v1287
  %v1363 = vunpack.c.l.b16 %v1288
  %v1364 = vunpack.c.h.b16 %v1288
  %v1365 = vunpack.c.l.b16 %v1289
  %v1366 = vunpack.c.h.b16 %v1289
  %v1367 = vunpack.c.l.b16 %v1290
  %v1368 = vunpack.c.h.b16 %v1290
  %v1369 = vunpack.c.l.b16 %v1291
  %v1370 = vunpack.c.h.b16 %v1291
  %v1371 = vunpack.c.l.b16 %v1292
  %v1372 = vunpack.c.h.b16 %v1292
  %v1373 = vunpack.c.l.b16 %v1293
  %v1374 = vunpack.c.h.b16 %v1293
  %v1375 = vunpack.c.l.b16 %v1294
  %v1376 = vunpack.c.h.b16 %v1294
  %v1377 = vunpack.c.l.b16 %v1295
  %v1378 = vunpack.c.h.b16 %v1295
  %v1379 = vunpack.c.l.b16 %v1296
  %v1380 = vunpack.c.h.b16 %v1296
  %v1381 = vunpack.c.l.b16 %v1297
  %v1382 = vunpack.c.h.b16 %v1297
  %v1383 = vunpack.c.l.b16 %v1298
  %v1384 = vunpack.c.h.b16 %v1298
  %v1385 = vunpack.c.l.b16 %v1299
  %v1386 = vunpack.c.h.b16 %v1299
  %v1387 = vunpack.c.l.b16 %v1300
  %v1388 = vunpack.c.h.b16 %v1300
  %v1389 = vunpack.c.l.b16 %v1301
  %v1390 = vunpack.c.h.b16 %v1301
  %v1391 = vunpack.c.l.b16 %v1302
  %v1392 = vunpack.c.h.b16 %v1302
  %v1393 = vunpack.c.l.b16 %v1303
  %v1394 = vunpack.c.h.b16 %v1303
  %v1395 = vunpack.c.l.b16 %v1304
  %v1396 = vunpack.c.h.b16 %v1304
  %v1397 = vunpack.c.l.b16 %v1305
  %v1398 = vunpack.c.h.b16 %v1305
  %v1399 = vunpack.c.l.b16 %v1306
  %v1400 = vunpack.c.h.b16 %v1306
  %v1401 = vunpack.c.l.b16 %v1307
  %v1402 = vunpack.c.h.b16 %v1307
  %v1403 = vunpack.c.l.b16 %v1308
  %v1404 = vunpack.c.h.b16 %v1308
  %v1405 = vpack.c.b16 %v1345, %v1341
  %v1406 = vpack.c.b16 %v1346, %v1342
  %v1407 = vpack.c.b16 %v1347, %v1343
  %v1408 = vpack.c.b16 %v1348, %v1344
  %v1409 = vpack.c.b16 %v1353, %v1349
  %v1410 = vpack.c.b16 %v1354, %v1350
  %v1411 = vpack.c.b16 %v1355, %v1351
  %v1412 = vpack.c.b16 %v1356, %v1352
  %v1413 = vpack.c.b16 %v1361, %v1357
  %v1414 = vpack.c.b16 %v1362, %v1358
  %v1415 = vpack.c.b16 %v1363, %v1359
  %v1416 = vpack.c.b16 %v1364, %v1360
  %v1417 = vpack.c.b16 %v1369, %v1365
  %v1418 = vpack.c.b16 %v1370, %v1366
  %v1419 = vpack.c.b16 %v1371, %v1367
  %v1420 = vpack.c.b16 %v1372, %v1368
  %v1421 = vpack.c.b16 %v1377, %v1373
  %v1422 = vpack.c.b16 %v1378, %v1374
  %v1423 = vpack.c.b16 %v1379, %v1375
  %v1424 = vpack.c.b16 %v1380, %v1376
  %v1425 = vpack.c.b16 %v1385, %v1381
  %v1426 = vpack.c.b16 %v1386, %v1382
  %v1427 = vpack.c.b16 %v1387, %v1383
  %v1428 = vpack.c.b16 %v1388, %v1384
  %v1429 = vpack.c.b16 %v1393, %v1389
  %v1430 = vpack.c.b16 %v1394, %v1390
  %v1431 = vpack.c.b16 %v1395, %v1391
  %v1432 = vpack.c.b16 %v1396, %v1392
  %v1433 = vpack.c.b16 %v1401, %v1397
  %v1434 = vpack.c.b16 %v1402, %v1398
  %v1435 = vpack.c.b16 %v1403, %v1399
  %v1436 = vpack.c.b16 %v1404, %v1400
  %1469 = vmatprep.subr.bf16.mxu0 %v1406
  %1470 = vmatpush1.bf16.msra.mxu0 %v1405
  %1471 = vmatprep.subr.bf16.mxu0 %v1410
  %1472 = vmatpush1.bf16.msra.mxu0 %v1409
  %1473 = vmatprep.subr.bf16.mxu0 %v1414
  %1474 = vmatpush1.bf16.msra.mxu0 %v1413
  %1475 = vmatprep.subr.bf16.mxu0 %v1418
  %1476 = vmatpush1.bf16.msra.mxu0 %v1417
  %1477 = vmatprep.subr.bf16.mxu0 %v1422
  %1478 = vmatpush1.bf16.msra.mxu0 %v1421
  %1479 = vmatprep.subr.bf16.mxu0 %v1426
  %1480 = vmatpush1.bf16.msra.mxu0 %v1425
  %1481 = vmatprep.subr.bf16.mxu0 %v1430
  %1482 = vmatpush1.bf16.msra.mxu0 %v1429
  %1483 = vmatprep.subr.bf16.mxu0 %v1434
  %1484 = vmatpush1.bf16.msra.mxu0 %v1433
  %1485 = vmatprep.subr.bf16.mxu0 0
  %1486 = vmatpush1.bf16.msra.mxu0 0
  %1487 = vmatprep.subr.bf16.mxu0 0
  %1488 = vmatpush1.bf16.msra.mxu0 0
  %1489 = vmatprep.subr.bf16.mxu0 0
  %1490 = vmatpush1.bf16.msra.mxu0 0
  %1491 = vmatprep.subr.bf16.mxu0 0
  %1492 = vmatpush1.bf16.msra.mxu0 0
  %1493 = vmatprep.subr.bf16.mxu0 0
  %1494 = vmatpush1.bf16.msra.mxu0 0
  %1495 = vmatprep.subr.bf16.mxu0 0
  %1496 = vmatpush1.bf16.msra.mxu0 0
  %1497 = vmatprep.subr.bf16.mxu0 0
  %1498 = vmatpush1.bf16.msra.mxu0 0
  %1499 = vmatprep.subr.bf16.mxu0 0
  %1500 = vmatpush1.bf16.msra.mxu0 0
  %1501 = vmatprep.mubr.bf16.mxu0 0
  %1502 = vmatmul.mubr.bf16.gmra.mrb[0].mxu0 %v1267
  %v1503 = vpop.f32.mrb[0].mxu0
  %v1504 = vadd.f32 0.0, %v1503
  %v1505 = vpop.f32.mrb[0].mxu0
  %v1506 = vadd.f32 0.0, %v1505
  %v1507 = vpop.f32.mrb[0].mxu0
  %v1508 = vpop.f32.mrb[0].mxu0
  %1509 = vdwg.mxu0
  %1510 = vmatprep.subr.bf16.mxu0 %v1408
  %1511 = vmatpush1.bf16.msra.mxu0 %v1407
  %1512 = vmatprep.subr.bf16.mxu0 %v1412
  %1513 = vmatpush1.bf16.msra.mxu0 %v1411
  %1514 = vmatprep.subr.bf16.mxu0 %v1416
  %1515 = vmatpush1.bf16.msra.mxu0 %v1415
  %1516 = vmatprep.subr.bf16.mxu0 %v1420
  %1517 = vmatpush1.bf16.msra.mxu0 %v1419
  %1518 = vmatprep.subr.bf16.mxu0 %v1424
  %1519 = vmatpush1.bf16.msra.mxu0 %v1423
  %1520 = vmatprep.subr.bf16.mxu0 %v1428
  %1521 = vmatpush1.bf16.msra.mxu0 %v1427
  %1522 = vmatprep.subr.bf16.mxu0 %v1432
  %1523 = vmatpush1.bf16.msra.mxu0 %v1431
  %1524 = vmatprep.subr.bf16.mxu0 %v1436
  %1525 = vmatpush1.bf16.msra.mxu0 %v1435
  %1526 = vmatprep.subr.bf16.mxu0 0
  %1527 = vmatpush1.bf16.msra.mxu0 0
  %1528 = vmatprep.subr.bf16.mxu0 0
  %1529 = vmatpush1.bf16.msra.mxu0 0
  %1530 = vmatprep.subr.bf16.mxu0 0
  %1531 = vmatpush1.bf16.msra.mxu0 0
  %1532 = vmatprep.subr.bf16.mxu0 0
  %1533 = vmatpush1.bf16.msra.mxu0 0
  %1534 = vmatprep.subr.bf16.mxu0 0
  %1535 = vmatpush1.bf16.msra.mxu0 0
  %1536 = vmatprep.subr.bf16.mxu0 0
  %1537 = vmatpush1.bf16.msra.mxu0 0
  %1538 = vmatprep.subr.bf16.mxu0 0
  %1539 = vmatpush1.bf16.msra.mxu0 0
  %1540 = vmatprep.subr.bf16.mxu0 0
  %1541 = vmatpush1.bf16.msra.mxu0 0
  %1542 = vmatprep.mubr.bf16.mxu0 0
  %1543 = vmatmul.mubr.bf16.gmra.mrb[0].mxu0 %v1267
  %v1544 = vpop.f32.mrb[0].mxu0
  %v1545 = vadd.f32 0.0, %v1544
  %v1546 = vpop.f32.mrb[0].mxu0
  %v1547 = vadd.f32 0.0, %v1546
  %v1548 = vpop.f32.mrb[0].mxu0
  %v1549 = vpop.f32.mrb[0].mxu0
  %1550 = vdwg.mxu0
  %v1551 = vadd.f32 %v1273, %v1504
  %v1552 = vadd.f32 %v1274, %v1506
  %v1553 = vadd.f32 %v1275, %v1545
  %v1554 = vadd.f32 %v1276, %v1547
  %v1555 = vxor.u32 %v1551, 2147483648
  %v1556 = vmul.f32 %v1555, 1.442695
  %v1557 = vpow.pop %v1556
  %v1558 = vadd.f32 %v1557, 1.0
  %v1559 = vrcp.pop %v1558
  %v1560 = vmul.f32 1.0, %v1559
  %v1561 = vxor.u32 %v1552, 2147483648
  %v1562 = vmul.f32 %v1561, 1.442695
  %v1563 = vpow.pop %v1562
  %v1564 = vadd.f32 %v1563, 1.0
  %v1565 = vrcp.pop %v1564
  %v1566 = vmul.f32 1.0, %v1565
  %v1567 = vtanh.pop %v1553
  %v1568 = vxor.u32 %v1554, 2147483648
  %v1569 = vmul.f32 %v1568, 1.442695
  %v1570 = vpow.pop %v1569
  %v1571 = vadd.f32 %v1570, 1.0
  %v1572 = vrcp.pop %v1571
  %v1573 = vmul.f32 1.0, %v1572
  %v1574 = vmul.f32 %v1566, %v1264
  %v1575 = vmul.f32 %v1560, %v1567
  %v1576 = vadd.f32 %v1574, %v1575
  %v1577 = vtanh.pop %v1576
  %v1578 = vmul.f32 %v1573, %v1577
  %v1579 = vpack.c.bf16 %v1578, %v1578
  %s1580 = scalar_lea.vmem %s2, 16
  %1581 = vst [vmem:[%s1580] sm:$0xf] %v1579
  %s1582 = scalar_lea.vmem %s0, 80
  %v1583 = vld [vmem:[%s1582] sm:$0xff]
  %v1584 = vld [vmem:[%s1582 + $0x8] sm:$0xff]
  %v1585 = vunpack.c.l.bf16 %v1583
  %v1586 = vunpack.c.h.bf16 %v1583
  %v1587 = vunpack.c.l.bf16 %v1584
  %v1588 = vunpack.c.h.bf16 %v1584
  %v1589 = vld [vmem:[%s1] sm:$0xff]
  %v1590 = vld [vmem:[%s1 + $0x8] sm:$0xff]
  %v1591 = vld [vmem:[%s1 + $0x10] sm:$0xff]
  %v1592 = vld [vmem:[%s1 + $0x18] sm:$0xff]
  %v1593 = vld [vmem:[%s1 + $0x20] sm:$0xff]
  %v1594 = vld [vmem:[%s1 + $0x28] sm:$0xff]
  %v1595 = vld [vmem:[%s1 + $0x30] sm:$0xff]
  %v1596 = vld [vmem:[%s1 + $0x38] sm:$0xff]
  %v1597 = vld [vmem:[%s1 + $0x40] sm:$0xff]
  %v1598 = vld [vmem:[%s1 + $0x48] sm:$0xff]
  %v1599 = vld [vmem:[%s1 + $0x50] sm:$0xff]
  %v1600 = vld [vmem:[%s1 + $0x58] sm:$0xff]
  %v1601 = vld [vmem:[%s1 + $0x60] sm:$0xff]
  %v1602 = vld [vmem:[%s1 + $0x68] sm:$0xff]
  %v1603 = vld [vmem:[%s1 + $0x70] sm:$0xff]
  %v1604 = vld [vmem:[%s1 + $0x78] sm:$0xff]
  %v1605 = vld [vmem:[%s1 + $0x80] sm:$0xff]
  %v1606 = vld [vmem:[%s1 + $0x88] sm:$0xff]
  %v1607 = vld [vmem:[%s1 + $0x90] sm:$0xff]
  %v1608 = vld [vmem:[%s1 + $0x98] sm:$0xff]
  %v1609 = vld [vmem:[%s1 + $0xa0] sm:$0xff]
  %v1610 = vld [vmem:[%s1 + $0xa8] sm:$0xff]
  %v1611 = vld [vmem:[%s1 + $0xb0] sm:$0xff]
  %v1612 = vld [vmem:[%s1 + $0xb8] sm:$0xff]
  %v1613 = vld [vmem:[%s1 + $0xc0] sm:$0xff]
  %v1614 = vld [vmem:[%s1 + $0xc8] sm:$0xff]
  %v1615 = vld [vmem:[%s1 + $0xd0] sm:$0xff]
  %v1616 = vld [vmem:[%s1 + $0xd8] sm:$0xff]
  %v1617 = vld [vmem:[%s1 + $0xe0] sm:$0xff]
  %v1618 = vld [vmem:[%s1 + $0xe8] sm:$0xff]
  %v1619 = vld [vmem:[%s1 + $0xf0] sm:$0xff]
  %v1620 = vld [vmem:[%s1 + $0xf8] sm:$0xff]
  %v1653 = vunpack.c.l.b16 %v1589
  %v1654 = vunpack.c.h.b16 %v1589
  %v1655 = vunpack.c.l.b16 %v1590
  %v1656 = vunpack.c.h.b16 %v1590
  %v1657 = vunpack.c.l.b16 %v1591
  %v1658 = vunpack.c.h.b16 %v1591
  %v1659 = vunpack.c.l.b16 %v1592
  %v1660 = vunpack.c.h.b16 %v1592
  %v1661 = vunpack.c.l.b16 %v1593
  %v1662 = vunpack.c.h.b16 %v1593
  %v1663 = vunpack.c.l.b16 %v1594
  %v1664 = vunpack.c.h.b16 %v1594
  %v1665 = vunpack.c.l.b16 %v1595
  %v1666 = vunpack.c.h.b16 %v1595
  %v1667 = vunpack.c.l.b16 %v1596
  %v1668 = vunpack.c.h.b16 %v1596
  %v1669 = vunpack.c.l.b16 %v1597
  %v1670 = vunpack.c.h.b16 %v1597
  %v1671 = vunpack.c.l.b16 %v1598
  %v1672 = vunpack.c.h.b16 %v1598
  %v1673 = vunpack.c.l.b16 %v1599
  %v1674 = vunpack.c.h.b16 %v1599
  %v1675 = vunpack.c.l.b16 %v1600
  %v1676 = vunpack.c.h.b16 %v1600
  %v1677 = vunpack.c.l.b16 %v1601
  %v1678 = vunpack.c.h.b16 %v1601
  %v1679 = vunpack.c.l.b16 %v1602
  %v1680 = vunpack.c.h.b16 %v1602
  %v1681 = vunpack.c.l.b16 %v1603
  %v1682 = vunpack.c.h.b16 %v1603
  %v1683 = vunpack.c.l.b16 %v1604
  %v1684 = vunpack.c.h.b16 %v1604
  %v1685 = vunpack.c.l.b16 %v1605
  %v1686 = vunpack.c.h.b16 %v1605
  %v1687 = vunpack.c.l.b16 %v1606
  %v1688 = vunpack.c.h.b16 %v1606
  %v1689 = vunpack.c.l.b16 %v1607
  %v1690 = vunpack.c.h.b16 %v1607
  %v1691 = vunpack.c.l.b16 %v1608
  %v1692 = vunpack.c.h.b16 %v1608
  %v1693 = vunpack.c.l.b16 %v1609
  %v1694 = vunpack.c.h.b16 %v1609
  %v1695 = vunpack.c.l.b16 %v1610
  %v1696 = vunpack.c.h.b16 %v1610
  %v1697 = vunpack.c.l.b16 %v1611
  %v1698 = vunpack.c.h.b16 %v1611
  %v1699 = vunpack.c.l.b16 %v1612
  %v1700 = vunpack.c.h.b16 %v1612
  %v1701 = vunpack.c.l.b16 %v1613
  %v1702 = vunpack.c.h.b16 %v1613
  %v1703 = vunpack.c.l.b16 %v1614
  %v1704 = vunpack.c.h.b16 %v1614
  %v1705 = vunpack.c.l.b16 %v1615
  %v1706 = vunpack.c.h.b16 %v1615
  %v1707 = vunpack.c.l.b16 %v1616
  %v1708 = vunpack.c.h.b16 %v1616
  %v1709 = vunpack.c.l.b16 %v1617
  %v1710 = vunpack.c.h.b16 %v1617
  %v1711 = vunpack.c.l.b16 %v1618
  %v1712 = vunpack.c.h.b16 %v1618
  %v1713 = vunpack.c.l.b16 %v1619
  %v1714 = vunpack.c.h.b16 %v1619
  %v1715 = vunpack.c.l.b16 %v1620
  %v1716 = vunpack.c.h.b16 %v1620
  %v1717 = vpack.c.b16 %v1657, %v1653
  %v1718 = vpack.c.b16 %v1658, %v1654
  %v1719 = vpack.c.b16 %v1659, %v1655
  %v1720 = vpack.c.b16 %v1660, %v1656
  %v1721 = vpack.c.b16 %v1665, %v1661
  %v1722 = vpack.c.b16 %v1666, %v1662
  %v1723 = vpack.c.b16 %v1667, %v1663
  %v1724 = vpack.c.b16 %v1668, %v1664
  %v1725 = vpack.c.b16 %v1673, %v1669
  %v1726 = vpack.c.b16 %v1674, %v1670
  %v1727 = vpack.c.b16 %v1675, %v1671
  %v1728 = vpack.c.b16 %v1676, %v1672
  %v1729 = vpack.c.b16 %v1681, %v1677
  %v1730 = vpack.c.b16 %v1682, %v1678
  %v1731 = vpack.c.b16 %v1683, %v1679
  %v1732 = vpack.c.b16 %v1684, %v1680
  %v1733 = vpack.c.b16 %v1689, %v1685
  %v1734 = vpack.c.b16 %v1690, %v1686
  %v1735 = vpack.c.b16 %v1691, %v1687
  %v1736 = vpack.c.b16 %v1692, %v1688
  %v1737 = vpack.c.b16 %v1697, %v1693
  %v1738 = vpack.c.b16 %v1698, %v1694
  %v1739 = vpack.c.b16 %v1699, %v1695
  %v1740 = vpack.c.b16 %v1700, %v1696
  %v1741 = vpack.c.b16 %v1705, %v1701
  %v1742 = vpack.c.b16 %v1706, %v1702
  %v1743 = vpack.c.b16 %v1707, %v1703
  %v1744 = vpack.c.b16 %v1708, %v1704
  %v1745 = vpack.c.b16 %v1713, %v1709
  %v1746 = vpack.c.b16 %v1714, %v1710
  %v1747 = vpack.c.b16 %v1715, %v1711
  %v1748 = vpack.c.b16 %v1716, %v1712
  %1781 = vmatprep.subr.bf16.mxu0 %v1718
  %1782 = vmatpush1.bf16.msra.mxu0 %v1717
  %1783 = vmatprep.subr.bf16.mxu0 %v1722
  %1784 = vmatpush1.bf16.msra.mxu0 %v1721
  %1785 = vmatprep.subr.bf16.mxu0 %v1726
  %1786 = vmatpush1.bf16.msra.mxu0 %v1725
  %1787 = vmatprep.subr.bf16.mxu0 %v1730
  %1788 = vmatpush1.bf16.msra.mxu0 %v1729
  %1789 = vmatprep.subr.bf16.mxu0 %v1734
  %1790 = vmatpush1.bf16.msra.mxu0 %v1733
  %1791 = vmatprep.subr.bf16.mxu0 %v1738
  %1792 = vmatpush1.bf16.msra.mxu0 %v1737
  %1793 = vmatprep.subr.bf16.mxu0 %v1742
  %1794 = vmatpush1.bf16.msra.mxu0 %v1741
  %1795 = vmatprep.subr.bf16.mxu0 %v1746
  %1796 = vmatpush1.bf16.msra.mxu0 %v1745
  %1797 = vmatprep.subr.bf16.mxu0 0
  %1798 = vmatpush1.bf16.msra.mxu0 0
  %1799 = vmatprep.subr.bf16.mxu0 0
  %1800 = vmatpush1.bf16.msra.mxu0 0
  %1801 = vmatprep.subr.bf16.mxu0 0
  %1802 = vmatpush1.bf16.msra.mxu0 0
  %1803 = vmatprep.subr.bf16.mxu0 0
  %1804 = vmatpush1.bf16.msra.mxu0 0
  %1805 = vmatprep.subr.bf16.mxu0 0
  %1806 = vmatpush1.bf16.msra.mxu0 0
  %1807 = vmatprep.subr.bf16.mxu0 0
  %1808 = vmatpush1.bf16.msra.mxu0 0
  %1809 = vmatprep.subr.bf16.mxu0 0
  %1810 = vmatpush1.bf16.msra.mxu0 0
  %1811 = vmatprep.subr.bf16.mxu0 0
  %1812 = vmatpush1.bf16.msra.mxu0 0
  %1813 = vmatprep.mubr.bf16.mxu0 0
  %1814 = vmatmul.mubr.bf16.gmra.mrb[0].mxu0 %v1579
  %v1815 = vpop.f32.mrb[0].mxu0
  %v1816 = vadd.f32 0.0, %v1815
  %v1817 = vpop.f32.mrb[0].mxu0
  %v1818 = vadd.f32 0.0, %v1817
  %v1819 = vpop.f32.mrb[0].mxu0
  %v1820 = vpop.f32.mrb[0].mxu0
  %1821 = vdwg.mxu0
  %1822 = vmatprep.subr.bf16.mxu0 %v1720
  %1823 = vmatpush1.bf16.msra.mxu0 %v1719
  %1824 = vmatprep.subr.bf16.mxu0 %v1724
  %1825 = vmatpush1.bf16.msra.mxu0 %v1723
  %1826 = vmatprep.subr.bf16.mxu0 %v1728
  %1827 = vmatpush1.bf16.msra.mxu0 %v1727
  %1828 = vmatprep.subr.bf16.mxu0 %v1732
  %1829 = vmatpush1.bf16.msra.mxu0 %v1731
  %1830 = vmatprep.subr.bf16.mxu0 %v1736
  %1831 = vmatpush1.bf16.msra.mxu0 %v1735
  %1832 = vmatprep.subr.bf16.mxu0 %v1740
  %1833 = vmatpush1.bf16.msra.mxu0 %v1739
  %1834 = vmatprep.subr.bf16.mxu0 %v1744
  %1835 = vmatpush1.bf16.msra.mxu0 %v1743
  %1836 = vmatprep.subr.bf16.mxu0 %v1748
  %1837 = vmatpush1.bf16.msra.mxu0 %v1747
  %1838 = vmatprep.subr.bf16.mxu0 0
  %1839 = vmatpush1.bf16.msra.mxu0 0
  %1840 = vmatprep.subr.bf16.mxu0 0
  %1841 = vmatpush1.bf16.msra.mxu0 0
  %1842 = vmatprep.subr.bf16.mxu0 0
  %1843 = vmatpush1.bf16.msra.mxu0 0
  %1844 = vmatprep.subr.bf16.mxu0 0
  %1845 = vmatpush1.bf16.msra.mxu0 0
  %1846 = vmatprep.subr.bf16.mxu0 0
  %1847 = vmatpush1.bf16.msra.mxu0 0
  %1848 = vmatprep.subr.bf16.mxu0 0
  %1849 = vmatpush1.bf16.msra.mxu0 0
  %1850 = vmatprep.subr.bf16.mxu0 0
  %1851 = vmatpush1.bf16.msra.mxu0 0
  %1852 = vmatprep.subr.bf16.mxu0 0
  %1853 = vmatpush1.bf16.msra.mxu0 0
  %1854 = vmatprep.mubr.bf16.mxu0 0
  %1855 = vmatmul.mubr.bf16.gmra.mrb[0].mxu0 %v1579
  %v1856 = vpop.f32.mrb[0].mxu0
  %v1857 = vadd.f32 0.0, %v1856
  %v1858 = vpop.f32.mrb[0].mxu0
  %v1859 = vadd.f32 0.0, %v1858
  %v1860 = vpop.f32.mrb[0].mxu0
  %v1861 = vpop.f32.mrb[0].mxu0
  %1862 = vdwg.mxu0
  %v1863 = vadd.f32 %v1585, %v1816
  %v1864 = vadd.f32 %v1586, %v1818
  %v1865 = vadd.f32 %v1587, %v1857
  %v1866 = vadd.f32 %v1588, %v1859
  %v1867 = vxor.u32 %v1863, 2147483648
  %v1868 = vmul.f32 %v1867, 1.442695
  %v1869 = vpow.pop %v1868
  %v1870 = vadd.f32 %v1869, 1.0
  %v1871 = vrcp.pop %v1870
  %v1872 = vmul.f32 1.0, %v1871
  %v1873 = vxor.u32 %v1864, 2147483648
  %v1874 = vmul.f32 %v1873, 1.442695
  %v1875 = vpow.pop %v1874
  %v1876 = vadd.f32 %v1875, 1.0
  %v1877 = vrcp.pop %v1876
  %v1878 = vmul.f32 1.0, %v1877
  %v1879 = vtanh.pop %v1865
  %v1880 = vxor.u32 %v1866, 2147483648
  %v1881 = vmul.f32 %v1880, 1.442695
  %v1882 = vpow.pop %v1881
  %v1883 = vadd.f32 %v1882, 1.0
  %v1884 = vrcp.pop %v1883
  %v1885 = vmul.f32 1.0, %v1884
  %v1886 = vmul.f32 %v1878, %v1576
  %v1887 = vmul.f32 %v1872, %v1879
  %v1888 = vadd.f32 %v1886, %v1887
  %v1889 = vtanh.pop %v1888
  %v1890 = vmul.f32 %v1885, %v1889
  %v1891 = vpack.c.bf16 %v1890, %v1890
  %s1892 = scalar_lea.vmem %s2, 20
  %1893 = vst [vmem:[%s1892] sm:$0xf] %v1891
  %s1894 = scalar_lea.vmem %s0, 96
  %v1895 = vld [vmem:[%s1894] sm:$0xff]
  %v1896 = vld [vmem:[%s1894 + $0x8] sm:$0xff]
  %v1897 = vunpack.c.l.bf16 %v1895
  %v1898 = vunpack.c.h.bf16 %v1895
  %v1899 = vunpack.c.l.bf16 %v1896
  %v1900 = vunpack.c.h.bf16 %v1896
  %v1901 = vld [vmem:[%s1] sm:$0xff]
  %v1902 = vld [vmem:[%s1 + $0x8] sm:$0xff]
  %v1903 = vld [vmem:[%s1 + $0x10] sm:$0xff]
  %v1904 = vld [vmem:[%s1 + $0x18] sm:$0xff]
  %v1905 = vld [vmem:[%s1 + $0x20] sm:$0xff]
  %v1906 = vld [vmem:[%s1 + $0x28] sm:$0xff]
  %v1907 = vld [vmem:[%s1 + $0x30] sm:$0xff]
  %v1908 = vld [vmem:[%s1 + $0x38] sm:$0xff]
  %v1909 = vld [vmem:[%s1 + $0x40] sm:$0xff]
  %v1910 = vld [vmem:[%s1 + $0x48] sm:$0xff]
  %v1911 = vld [vmem:[%s1 + $0x50] sm:$0xff]
  %v1912 = vld [vmem:[%s1 + $0x58] sm:$0xff]
  %v1913 = vld [vmem:[%s1 + $0x60] sm:$0xff]
  %v1914 = vld [vmem:[%s1 + $0x68] sm:$0xff]
  %v1915 = vld [vmem:[%s1 + $0x70] sm:$0xff]
  %v1916 = vld [vmem:[%s1 + $0x78] sm:$0xff]
  %v1917 = vld [vmem:[%s1 + $0x80] sm:$0xff]
  %v1918 = vld [vmem:[%s1 + $0x88] sm:$0xff]
  %v1919 = vld [vmem:[%s1 + $0x90] sm:$0xff]
  %v1920 = vld [vmem:[%s1 + $0x98] sm:$0xff]
  %v1921 = vld [vmem:[%s1 + $0xa0] sm:$0xff]
  %v1922 = vld [vmem:[%s1 + $0xa8] sm:$0xff]
  %v1923 = vld [vmem:[%s1 + $0xb0] sm:$0xff]
  %v1924 = vld [vmem:[%s1 + $0xb8] sm:$0xff]
  %v1925 = vld [vmem:[%s1 + $0xc0] sm:$0xff]
  %v1926 = vld [vmem:[%s1 + $0xc8] sm:$0xff]
  %v1927 = vld [vmem:[%s1 + $0xd0] sm:$0xff]
  %v1928 = vld [vmem:[%s1 + $0xd8] sm:$0xff]
  %v1929 = vld [vmem:[%s1 + $0xe0] sm:$0xff]
  %v1930 = vld [vmem:[%s1 + $0xe8] sm:$0xff]
  %v1931 = vld [vmem:[%s1 + $0xf0] sm:$0xff]
  %v1932 = vld [vmem:[%s1 + $0xf8] sm:$0xff]
  %v1965 = vunpack.c.l.b16 %v1901
  %v1966 = vunpack.c.h.b16 %v1901
  %v1967 = vunpack.c.l.b16 %v1902
  %v1968 = vunpack.c.h.b16 %v1902
  %v1969 = vunpack.c.l.b16 %v1903
  %v1970 = vunpack.c.h.b16 %v1903
  %v1971 = vunpack.c.l.b16 %v1904
  %v1972 = vunpack.c.h.b16 %v1904
  %v1973 = vunpack.c.l.b16 %v1905
  %v1974 = vunpack.c.h.b16 %v1905
  %v1975 = vunpack.c.l.b16 %v1906
  %v1976 = vunpack.c.h.b16 %v1906
  %v1977 = vunpack.c.l.b16 %v1907
  %v1978 = vunpack.c.h.b16 %v1907
  %v1979 = vunpack.c.l.b16 %v1908
  %v1980 = vunpack.c.h.b16 %v1908
  %v1981 = vunpack.c.l.b16 %v1909
  %v1982 = vunpack.c.h.b16 %v1909
  %v1983 = vunpack.c.l.b16 %v1910
  %v1984 = vunpack.c.h.b16 %v1910
  %v1985 = vunpack.c.l.b16 %v1911
  %v1986 = vunpack.c.h.b16 %v1911
  %v1987 = vunpack.c.l.b16 %v1912
  %v1988 = vunpack.c.h.b16 %v1912
  %v1989 = vunpack.c.l.b16 %v1913
  %v1990 = vunpack.c.h.b16 %v1913
  %v1991 = vunpack.c.l.b16 %v1914
  %v1992 = vunpack.c.h.b16 %v1914
  %v1993 = vunpack.c.l.b16 %v1915
  %v1994 = vunpack.c.h.b16 %v1915
  %v1995 = vunpack.c.l.b16 %v1916
  %v1996 = vunpack.c.h.b16 %v1916
  %v1997 = vunpack.c.l.b16 %v1917
  %v1998 = vunpack.c.h.b16 %v1917
  %v1999 = vunpack.c.l.b16 %v1918
  %v2000 = vunpack.c.h.b16 %v1918
  %v2001 = vunpack.c.l.b16 %v1919
  %v2002 = vunpack.c.h.b16 %v1919
  %v2003 = vunpack.c.l.b16 %v1920
  %v2004 = vunpack.c.h.b16 %v1920
  %v2005 = vunpack.c.l.b16 %v1921
  %v2006 = vunpack.c.h.b16 %v1921
  %v2007 = vunpack.c.l.b16 %v1922
  %v2008 = vunpack.c.h.b16 %v1922
  %v2009 = vunpack.c.l.b16 %v1923
  %v2010 = vunpack.c.h.b16 %v1923
  %v2011 = vunpack.c.l.b16 %v1924
  %v2012 = vunpack.c.h.b16 %v1924
  %v2013 = vunpack.c.l.b16 %v1925
  %v2014 = vunpack.c.h.b16 %v1925
  %v2015 = vunpack.c.l.b16 %v1926
  %v2016 = vunpack.c.h.b16 %v1926
  %v2017 = vunpack.c.l.b16 %v1927
  %v2018 = vunpack.c.h.b16 %v1927
  %v2019 = vunpack.c.l.b16 %v1928
  %v2020 = vunpack.c.h.b16 %v1928
  %v2021 = vunpack.c.l.b16 %v1929
  %v2022 = vunpack.c.h.b16 %v1929
  %v2023 = vunpack.c.l.b16 %v1930
  %v2024 = vunpack.c.h.b16 %v1930
  %v2025 = vunpack.c.l.b16 %v1931
  %v2026 = vunpack.c.h.b16 %v1931
  %v2027 = vunpack.c.l.b16 %v1932
  %v2028 = vunpack.c.h.b16 %v1932
  %v2029 = vpack.c.b16 %v1969, %v1965
  %v2030 = vpack.c.b16 %v1970, %v1966
  %v2031 = vpack.c.b16 %v1971, %v1967
  %v2032 = vpack.c.b16 %v1972, %v1968
  %v2033 = vpack.c.b16 %v1977, %v1973
  %v2034 = vpack.c.b16 %v1978, %v1974
  %v2035 = vpack.c.b16 %v1979, %v1975
  %v2036 = vpack.c.b16 %v1980, %v1976
  %v2037 = vpack.c.b16 %v1985, %v1981
  %v2038 = vpack.c.b16 %v1986, %v1982
  %v2039 = vpack.c.b16 %v1987, %v1983
  %v2040 = vpack.c.b16 %v1988, %v1984
  %v2041 = vpack.c.b16 %v1993, %v1989
  %v2042 = vpack.c.b16 %v1994, %v1990
  %v2043 = vpack.c.b16 %v1995, %v1991
  %v2044 = vpack.c.b16 %v1996, %v1992
  %v2045 = vpack.c.b16 %v2001, %v1997
  %v2046 = vpack.c.b16 %v2002, %v1998
  %v2047 = vpack.c.b16 %v2003, %v1999
  %v2048 = vpack.c.b16 %v2004, %v2000
  %v2049 = vpack.c.b16 %v2009, %v2005
  %v2050 = vpack.c.b16 %v2010, %v2006
  %v2051 = vpack.c.b16 %v2011, %v2007
  %v2052 = vpack.c.b16 %v2012, %v2008
  %v2053 = vpack.c.b16 %v2017, %v2013
  %v2054 = vpack.c.b16 %v2018, %v2014
  %v2055 = vpack.c.b16 %v2019, %v2015
  %v2056 = vpack.c.b16 %v2020, %v2016
  %v2057 = vpack.c.b16 %v2025, %v2021
  %v2058 = vpack.c.b16 %v2026, %v2022
  %v2059 = vpack.c.b16 %v2027, %v2023
  %v2060 = vpack.c.b16 %v2028, %v2024
  %2093 = vmatprep.subr.bf16.mxu0 %v2030
  %2094 = vmatpush1.bf16.msra.mxu0 %v2029
  %2095 = vmatprep.subr.bf16.mxu0 %v2034
  %2096 = vmatpush1.bf16.msra.mxu0 %v2033
  %2097 = vmatprep.subr.bf16.mxu0 %v2038
  %2098 = vmatpush1.bf16.msra.mxu0 %v2037
  %2099 = vmatprep.subr.bf16.mxu0 %v2042
  %2100 = vmatpush1.bf16.msra.mxu0 %v2041
  %2101 = vmatprep.subr.bf16.mxu0 %v2046
  %2102 = vmatpush1.bf16.msra.mxu0 %v2045
  %2103 = vmatprep.subr.bf16.mxu0 %v2050
  %2104 = vmatpush1.bf16.msra.mxu0 %v2049
  %2105 = vmatprep.subr.bf16.mxu0 %v2054
  %2106 = vmatpush1.bf16.msra.mxu0 %v2053
  %2107 = vmatprep.subr.bf16.mxu0 %v2058
  %2108 = vmatpush1.bf16.msra.mxu0 %v2057
  %2109 = vmatprep.subr.bf16.mxu0 0
  %2110 = vmatpush1.bf16.msra.mxu0 0
  %2111 = vmatprep.subr.bf16.mxu0 0
  %2112 = vmatpush1.bf16.msra.mxu0 0
  %2113 = vmatprep.subr.bf16.mxu0 0
  %2114 = vmatpush1.bf16.msra.mxu0 0
  %2115 = vmatprep.subr.bf16.mxu0 0
  %2116 = vmatpush1.bf16.msra.mxu0 0
  %2117 = vmatprep.subr.bf16.mxu0 0
  %2118 = vmatpush1.bf16.msra.mxu0 0
  %2119 = vmatprep.subr.bf16.mxu0 0
  %2120 = vmatpush1.bf16.msra.mxu0 0
  %2121 = vmatprep.subr.bf16.mxu0 0
  %2122 = vmatpush1.bf16.msra.mxu0 0
  %2123 = vmatprep.subr.bf16.mxu0 0
  %2124 = vmatpush1.bf16.msra.mxu0 0
  %2125 = vmatprep.mubr.bf16.mxu0 0
  %2126 = vmatmul.mubr.bf16.gmra.mrb[0].mxu0 %v1891
  %v2127 = vpop.f32.mrb[0].mxu0
  %v2128 = vadd.f32 0.0, %v2127
  %v2129 = vpop.f32.mrb[0].mxu0
  %v2130 = vadd.f32 0.0, %v2129
  %v2131 = vpop.f32.mrb[0].mxu0
  %v2132 = vpop.f32.mrb[0].mxu0
  %2133 = vdwg.mxu0
  %2134 = vmatprep.subr.bf16.mxu0 %v2032
  %2135 = vmatpush1.bf16.msra.mxu0 %v2031
  %2136 = vmatprep.subr.bf16.mxu0 %v2036
  %2137 = vmatpush1.bf16.msra.mxu0 %v2035
  %2138 = vmatprep.subr.bf16.mxu0 %v2040
  %2139 = vmatpush1.bf16.msra.mxu0 %v2039
  %2140 = vmatprep.subr.bf16.mxu0 %v2044
  %2141 = vmatpush1.bf16.msra.mxu0 %v2043
  %2142 = vmatprep.subr.bf16.mxu0 %v2048
  %2143 = vmatpush1.bf16.msra.mxu0 %v2047
  %2144 = vmatprep.subr.bf16.mxu0 %v2052
  %2145 = vmatpush1.bf16.msra.mxu0 %v2051
  %2146 = vmatprep.subr.bf16.mxu0 %v2056
  %2147 = vmatpush1.bf16.msra.mxu0 %v2055
  %2148 = vmatprep.subr.bf16.mxu0 %v2060
  %2149 = vmatpush1.bf16.msra.mxu0 %v2059
  %2150 = vmatprep.subr.bf16.mxu0 0
  %2151 = vmatpush1.bf16.msra.mxu0 0
  %2152 = vmatprep.subr.bf16.mxu0 0
  %2153 = vmatpush1.bf16.msra.mxu0 0
  %2154 = vmatprep.subr.bf16.mxu0 0
  %2155 = vmatpush1.bf16.msra.mxu0 0
  %2156 = vmatprep.subr.bf16.mxu0 0
  %2157 = vmatpush1.bf16.msra.mxu0 0
  %2158 = vmatprep.subr.bf16.mxu0 0
  %2159 = vmatpush1.bf16.msra.mxu0 0
  %2160 = vmatprep.subr.bf16.mxu0 0
  %2161 = vmatpush1.bf16.msra.mxu0 0
  %2162 = vmatprep.subr.bf16.mxu0 0
  %2163 = vmatpush1.bf16.msra.mxu0 0
  %2164 = vmatprep.subr.bf16.mxu0 0
  %2165 = vmatpush1.bf16.msra.mxu0 0
  %2166 = vmatprep.mubr.bf16.mxu0 0
  %2167 = vmatmul.mubr.bf16.gmra.mrb[0].mxu0 %v1891
  %v2168 = vpop.f32.mrb[0].mxu0
  %v2169 = vadd.f32 0.0, %v2168
  %v2170 = vpop.f32.mrb[0].mxu0
  %v2171 = vadd.f32 0.0, %v2170
  %v2172 = vpop.f32.mrb[0].mxu0
  %v2173 = vpop.f32.mrb[0].mxu0
  %2174 = vdwg.mxu0
  %v2175 = vadd.f32 %v1897, %v2128
  %v2176 = vadd.f32 %v1898, %v2130
  %v2177 = vadd.f32 %v1899, %v2169
  %v2178 = vadd.f32 %v1900, %v2171
  %v2179 = vxor.u32 %v2175, 2147483648
  %v2180 = vmul.f32 %v2179, 1.442695
  %v2181 = vpow.pop %v2180
  %v2182 = vadd.f32 %v2181, 1.0
  %v2183 = vrcp.pop %v2182
  %v2184 = vmul.f32 1.0, %v2183
  %v2185 = vxor.u32 %v2176, 2147483648
  %v2186 = vmul.f32 %v2185, 1.442695
  %v2187 = vpow.pop %v2186
  %v2188 = vadd.f32 %v2187, 1.0
  %v2189 = vrcp.pop %v2188
  %v2190 = vmul.f32 1.0, %v2189
  %v2191 = vtanh.pop %v2177
  %v2192 = vxor.u32 %v2178, 2147483648
  %v2193 = vmul.f32 %v2192, 1.442695
  %v2194 = vpow.pop %v2193
  %v2195 = vadd.f32 %v2194, 1.0
  %v2196 = vrcp.pop %v2195
  %v2197 = vmul.f32 1.0, %v2196
  %v2198 = vmul.f32 %v2190, %v1888
  %v2199 = vmul.f32 %v2184, %v2191
  %v2200 = vadd.f32 %v2198, %v2199
  %v2201 = vtanh.pop %v2200
  %v2202 = vmul.f32 %v2197, %v2201
  %v2203 = vpack.c.bf16 %v2202, %v2202
  %s2204 = scalar_lea.vmem %s2, 24
  %2205 = vst [vmem:[%s2204] sm:$0xf] %v2203
  %s2206 = scalar_lea.vmem %s0, 112
  %v2207 = vld [vmem:[%s2206] sm:$0xff]
  %v2208 = vld [vmem:[%s2206 + $0x8] sm:$0xff]
  %v2209 = vunpack.c.l.bf16 %v2207
  %v2210 = vunpack.c.h.bf16 %v2207
  %v2211 = vunpack.c.l.bf16 %v2208
  %v2212 = vunpack.c.h.bf16 %v2208
  %v2213 = vld [vmem:[%s1] sm:$0xff]
  %v2214 = vld [vmem:[%s1 + $0x8] sm:$0xff]
  %v2215 = vld [vmem:[%s1 + $0x10] sm:$0xff]
  %v2216 = vld [vmem:[%s1 + $0x18] sm:$0xff]
  %v2217 = vld [vmem:[%s1 + $0x20] sm:$0xff]
  %v2218 = vld [vmem:[%s1 + $0x28] sm:$0xff]
  %v2219 = vld [vmem:[%s1 + $0x30] sm:$0xff]
  %v2220 = vld [vmem:[%s1 + $0x38] sm:$0xff]
  %v2221 = vld [vmem:[%s1 + $0x40] sm:$0xff]
  %v2222 = vld [vmem:[%s1 + $0x48] sm:$0xff]
  %v2223 = vld [vmem:[%s1 + $0x50] sm:$0xff]
  %v2224 = vld [vmem:[%s1 + $0x58] sm:$0xff]
  %v2225 = vld [vmem:[%s1 + $0x60] sm:$0xff]
  %v2226 = vld [vmem:[%s1 + $0x68] sm:$0xff]
  %v2227 = vld [vmem:[%s1 + $0x70] sm:$0xff]
  %v2228 = vld [vmem:[%s1 + $0x78] sm:$0xff]
  %v2229 = vld [vmem:[%s1 + $0x80] sm:$0xff]
  %v2230 = vld [vmem:[%s1 + $0x88] sm:$0xff]
  %v2231 = vld [vmem:[%s1 + $0x90] sm:$0xff]
  %v2232 = vld [vmem:[%s1 + $0x98] sm:$0xff]
  %v2233 = vld [vmem:[%s1 + $0xa0] sm:$0xff]
  %v2234 = vld [vmem:[%s1 + $0xa8] sm:$0xff]
  %v2235 = vld [vmem:[%s1 + $0xb0] sm:$0xff]
  %v2236 = vld [vmem:[%s1 + $0xb8] sm:$0xff]
  %v2237 = vld [vmem:[%s1 + $0xc0] sm:$0xff]
  %v2238 = vld [vmem:[%s1 + $0xc8] sm:$0xff]
  %v2239 = vld [vmem:[%s1 + $0xd0] sm:$0xff]
  %v2240 = vld [vmem:[%s1 + $0xd8] sm:$0xff]
  %v2241 = vld [vmem:[%s1 + $0xe0] sm:$0xff]
  %v2242 = vld [vmem:[%s1 + $0xe8] sm:$0xff]
  %v2243 = vld [vmem:[%s1 + $0xf0] sm:$0xff]
  %v2244 = vld [vmem:[%s1 + $0xf8] sm:$0xff]
  %v2277 = vunpack.c.l.b16 %v2213
  %v2278 = vunpack.c.h.b16 %v2213
  %v2279 = vunpack.c.l.b16 %v2214
  %v2280 = vunpack.c.h.b16 %v2214
  %v2281 = vunpack.c.l.b16 %v2215
  %v2282 = vunpack.c.h.b16 %v2215
  %v2283 = vunpack.c.l.b16 %v2216
  %v2284 = vunpack.c.h.b16 %v2216
  %v2285 = vunpack.c.l.b16 %v2217
  %v2286 = vunpack.c.h.b16 %v2217
  %v2287 = vunpack.c.l.b16 %v2218
  %v2288 = vunpack.c.h.b16 %v2218
  %v2289 = vunpack.c.l.b16 %v2219
  %v2290 = vunpack.c.h.b16 %v2219
  %v2291 = vunpack.c.l.b16 %v2220
  %v2292 = vunpack.c.h.b16 %v2220
  %v2293 = vunpack.c.l.b16 %v2221
  %v2294 = vunpack.c.h.b16 %v2221
  %v2295 = vunpack.c.l.b16 %v2222
  %v2296 = vunpack.c.h.b16 %v2222
  %v2297 = vunpack.c.l.b16 %v2223
  %v2298 = vunpack.c.h.b16 %v2223
  %v2299 = vunpack.c.l.b16 %v2224
  %v2300 = vunpack.c.h.b16 %v2224
  %v2301 = vunpack.c.l.b16 %v2225
  %v2302 = vunpack.c.h.b16 %v2225
  %v2303 = vunpack.c.l.b16 %v2226
  %v2304 = vunpack.c.h.b16 %v2226
  %v2305 = vunpack.c.l.b16 %v2227
  %v2306 = vunpack.c.h.b16 %v2227
  %v2307 = vunpack.c.l.b16 %v2228
  %v2308 = vunpack.c.h.b16 %v2228
  %v2309 = vunpack.c.l.b16 %v2229
  %v2310 = vunpack.c.h.b16 %v2229
  %v2311 = vunpack.c.l.b16 %v2230
  %v2312 = vunpack.c.h.b16 %v2230
  %v2313 = vunpack.c.l.b16 %v2231
  %v2314 = vunpack.c.h.b16 %v2231
  %v2315 = vunpack.c.l.b16 %v2232
  %v2316 = vunpack.c.h.b16 %v2232
  %v2317 = vunpack.c.l.b16 %v2233
  %v2318 = vunpack.c.h.b16 %v2233
  %v2319 = vunpack.c.l.b16 %v2234
  %v2320 = vunpack.c.h.b16 %v2234
  %v2321 = vunpack.c.l.b16 %v2235
  %v2322 = vunpack.c.h.b16 %v2235
  %v2323 = vunpack.c.l.b16 %v2236
  %v2324 = vunpack.c.h.b16 %v2236
  %v2325 = vunpack.c.l.b16 %v2237
  %v2326 = vunpack.c.h.b16 %v2237
  %v2327 = vunpack.c.l.b16 %v2238
  %v2328 = vunpack.c.h.b16 %v2238
  %v2329 = vunpack.c.l.b16 %v2239
  %v2330 = vunpack.c.h.b16 %v2239
  %v2331 = vunpack.c.l.b16 %v2240
  %v2332 = vunpack.c.h.b16 %v2240
  %v2333 = vunpack.c.l.b16 %v2241
  %v2334 = vunpack.c.h.b16 %v2241
  %v2335 = vunpack.c.l.b16 %v2242
  %v2336 = vunpack.c.h.b16 %v2242
  %v2337 = vunpack.c.l.b16 %v2243
  %v2338 = vunpack.c.h.b16 %v2243
  %v2339 = vunpack.c.l.b16 %v2244
  %v2340 = vunpack.c.h.b16 %v2244
  %v2341 = vpack.c.b16 %v2281, %v2277
  %v2342 = vpack.c.b16 %v2282, %v2278
  %v2343 = vpack.c.b16 %v2283, %v2279
  %v2344 = vpack.c.b16 %v2284, %v2280
  %v2345 = vpack.c.b16 %v2289, %v2285
  %v2346 = vpack.c.b16 %v2290, %v2286
  %v2347 = vpack.c.b16 %v2291, %v2287
  %v2348 = vpack.c.b16 %v2292, %v2288
  %v2349 = vpack.c.b16 %v2297, %v2293
  %v2350 = vpack.c.b16 %v2298, %v2294
  %v2351 = vpack.c.b16 %v2299, %v2295
  %v2352 = vpack.c.b16 %v2300, %v2296
  %v2353 = vpack.c.b16 %v2305, %v2301
  %v2354 = vpack.c.b16 %v2306, %v2302
  %v2355 = vpack.c.b16 %v2307, %v2303
  %v2356 = vpack.c.b16 %v2308, %v2304
  %v2357 = vpack.c.b16 %v2313, %v2309
  %v2358 = vpack.c.b16 %v2314, %v2310
  %v2359 = vpack.c.b16 %v2315, %v2311
  %v2360 = vpack.c.b16 %v2316, %v2312
  %v2361 = vpack.c.b16 %v2321, %v2317
  %v2362 = vpack.c.b16 %v2322, %v2318
  %v2363 = vpack.c.b16 %v2323, %v2319
  %v2364 = vpack.c.b16 %v2324, %v2320
  %v2365 = vpack.c.b16 %v2329, %v2325
  %v2366 = vpack.c.b16 %v2330, %v2326
  %v2367 = vpack.c.b16 %v2331, %v2327
  %v2368 = vpack.c.b16 %v2332, %v2328
  %v2369 = vpack.c.b16 %v2337, %v2333
  %v2370 = vpack.c.b16 %v2338, %v2334
  %v2371 = vpack.c.b16 %v2339, %v2335
  %v2372 = vpack.c.b16 %v2340, %v2336
  %2405 = vmatprep.subr.bf16.mxu0 %v2342
  %2406 = vmatpush1.bf16.msra.mxu0 %v2341
  %2407 = vmatprep.subr.bf16.mxu0 %v2346
  %2408 = vmatpush1.bf16.msra.mxu0 %v2345
  %2409 = vmatprep.subr.bf16.mxu0 %v2350
  %2410 = vmatpush1.bf16.msra.mxu0 %v2349
  %2411 = vmatprep.subr.bf16.mxu0 %v2354
  %2412 = vmatpush1.bf16.msra.mxu0 %v2353
  %2413 = vmatprep.subr.bf16.mxu0 %v2358
  %2414 = vmatpush1.bf16.msra.mxu0 %v2357
  %2415 = vmatprep.subr.bf16.mxu0 %v2362
  %2416 = vmatpush1.bf16.msra.mxu0 %v2361
  %2417 = vmatprep.subr.bf16.mxu0 %v2366
  %2418 = vmatpush1.bf16.msra.mxu0 %v2365
  %2419 = vmatprep.subr.bf16.mxu0 %v2370
  %2420 = vmatpush1.bf16.msra.mxu0 %v2369
  %2421 = vmatprep.subr.bf16.mxu0 0
  %2422 = vmatpush1.bf16.msra.mxu0 0
  %2423 = vmatprep.subr.bf16.mxu0 0
  %2424 = vmatpush1.bf16.msra.mxu0 0
  %2425 = vmatprep.subr.bf16.mxu0 0
  %2426 = vmatpush1.bf16.msra.mxu0 0
  %2427 = vmatprep.subr.bf16.mxu0 0
  %2428 = vmatpush1.bf16.msra.mxu0 0
  %2429 = vmatprep.subr.bf16.mxu0 0
  %2430 = vmatpush1.bf16.msra.mxu0 0
  %2431 = vmatprep.subr.bf16.mxu0 0
  %2432 = vmatpush1.bf16.msra.mxu0 0
  %2433 = vmatprep.subr.bf16.mxu0 0
  %2434 = vmatpush1.bf16.msra.mxu0 0
  %2435 = vmatprep.subr.bf16.mxu0 0
  %2436 = vmatpush1.bf16.msra.mxu0 0
  %2437 = vmatprep.mubr.bf16.mxu0 0
  %2438 = vmatmul.mubr.bf16.gmra.mrb[0].mxu0 %v2203
  %v2439 = vpop.f32.mrb[0].mxu0
  %v2440 = vadd.f32 0.0, %v2439
  %v2441 = vpop.f32.mrb[0].mxu0
  %v2442 = vadd.f32 0.0, %v2441
  %v2443 = vpop.f32.mrb[0].mxu0
  %v2444 = vpop.f32.mrb[0].mxu0
  %2445 = vdwg.mxu0
  %2446 = vmatprep.subr.bf16.mxu0 %v2344
  %2447 = vmatpush1.bf16.msra.mxu0 %v2343
  %2448 = vmatprep.subr.bf16.mxu0 %v2348
  %2449 = vmatpush1.bf16.msra.mxu0 %v2347
  %2450 = vmatprep.subr.bf16.mxu0 %v2352
  %2451 = vmatpush1.bf16.msra.mxu0 %v2351
  %2452 = vmatprep.subr.bf16.mxu0 %v2356
  %2453 = vmatpush1.bf16.msra.mxu0 %v2355
  %2454 = vmatprep.subr.bf16.mxu0 %v2360
  %2455 = vmatpush1.bf16.msra.mxu0 %v2359
  %2456 = vmatprep.subr.bf16.mxu0 %v2364
  %2457 = vmatpush1.bf16.msra.mxu0 %v2363
  %2458 = vmatprep.subr.bf16.mxu0 %v2368
  %2459 = vmatpush1.bf16.msra.mxu0 %v2367
  %2460 = vmatprep.subr.bf16.mxu0 %v2372
  %2461 = vmatpush1.bf16.msra.mxu0 %v2371
  %2462 = vmatprep.subr.bf16.mxu0 0
  %2463 = vmatpush1.bf16.msra.mxu0 0
  %2464 = vmatprep.subr.bf16.mxu0 0
  %2465 = vmatpush1.bf16.msra.mxu0 0
  %2466 = vmatprep.subr.bf16.mxu0 0
  %2467 = vmatpush1.bf16.msra.mxu0 0
  %2468 = vmatprep.subr.bf16.mxu0 0
  %2469 = vmatpush1.bf16.msra.mxu0 0
  %2470 = vmatprep.subr.bf16.mxu0 0
  %2471 = vmatpush1.bf16.msra.mxu0 0
  %2472 = vmatprep.subr.bf16.mxu0 0
  %2473 = vmatpush1.bf16.msra.mxu0 0
  %2474 = vmatprep.subr.bf16.mxu0 0
  %2475 = vmatpush1.bf16.msra.mxu0 0
  %2476 = vmatprep.subr.bf16.mxu0 0
  %2477 = vmatpush1.bf16.msra.mxu0 0
  %2478 = vmatprep.mubr.bf16.mxu0 0
  %2479 = vmatmul.mubr.bf16.gmra.mrb[0].mxu0 %v2203
  %v2480 = vpop.f32.mrb[0].mxu0
  %v2481 = vadd.f32 0.0, %v2480
  %v2482 = vpop.f32.mrb[0].mxu0
  %v2483 = vadd.f32 0.0, %v2482
  %v2484 = vpop.f32.mrb[0].mxu0
  %v2485 = vpop.f32.mrb[0].mxu0
  %2486 = vdwg.mxu0
  %v2487 = vadd.f32 %v2209, %v2440
  %v2488 = vadd.f32 %v2210, %v2442
  %v2489 = vadd.f32 %v2211, %v2481
  %v2490 = vadd.f32 %v2212, %v2483
  %v2491 = vxor.u32 %v2487, 2147483648
  %v2492 = vmul.f32 %v2491, 1.442695
  %v2493 = vpow.pop %v2492
  %v2494 = vadd.f32 %v2493, 1.0
  %v2495 = vrcp.pop %v2494
  %v2496 = vmul.f32 1.0, %v2495
  %v2497 = vxor.u32 %v2488, 2147483648
  %v2498 = vmul.f32 %v2497, 1.442695
  %v2499 = vpow.pop %v2498
  %v2500 = vadd.f32 %v2499, 1.0
  %v2501 = vrcp.pop %v2500
  %v2502 = vmul.f32 1.0, %v2501
  %v2503 = vtanh.pop %v2489
  %v2504 = vxor.u32 %v2490, 2147483648
  %v2505 = vmul.f32 %v2504, 1.442695
  %v2506 = vpow.pop %v2505
  %v2507 = vadd.f32 %v2506, 1.0
  %v2508 = vrcp.pop %v2507
  %v2509 = vmul.f32 1.0, %v2508
  %v2510 = vmul.f32 %v2502, %v2200
  %v2511 = vmul.f32 %v2496, %v2503
  %v2512 = vadd.f32 %v2510, %v2511
  %v2513 = vtanh.pop %v2512
  %v2514 = vmul.f32 %v2509, %v2513
  %v2515 = vpack.c.bf16 %v2514, %v2514
  %s2516 = scalar_lea.vmem %s2, 28
  %2517 = vst [vmem:[%s2516] sm:$0xf] %v2515
  %2518 = vst [vmem:[#allocation2] sm:$0xff] %v2514
  %2519 = vst [vmem:[#allocation3] sm:$0xff] %v2512
  // Predicated region
  $region14: #{encoder_forward.2} parent=0 // pred_check
    %p2520 = pneg %p15
  $region15: #{encoder_forward.2} parent=0 // pred_check_branch
    %2522 = sbr.rel (%p2520) target = $region17
  $region16: #{encoder_forward.2} parent=0 // pred_region
    %2523 = vst [vmem:[%s3] sm:$0xff] %v2514
    %2524 = vst [vmem:[%s4] sm:$0xff] %v2512
  $region17: #{encoder_forward.2} parent=0 // pred_fallthru
    _
  // Predicated region
  $region18: #{encoder_forward.2} parent=0 // pred_check
    _
  $region19: #{encoder_forward.2} parent=0 // pred_check_branch
    %2526 = sbr.rel (0) target = $region21
  $region20: #{encoder_forward.2} parent=0 // pred_region
    _
  $region21: #{encoder_forward.2} parent=0 // pred_fallthru
    _
  // Predicated region
  $region22: #{encoder_forward.2} parent=0 // pred_check
    _
  $region23: #{encoder_forward.2} parent=0 // pred_check_branch
    %2528 = sbr.rel (0) target = $region25
  $region24: #{encoder_forward.2} parent=0 // pred_region
    _
  $region25: #{encoder_forward.2} parent=0 // pred_fallthru
    _
  // Predicated region
  $region26: #{encoder_forward.2} parent=0 // pred_check
    _
  $region27: #{encoder_forward.2} parent=0 // pred_check_branch
    %2530 = sbr.rel (0) target = $region29
  $region28: #{encoder_forward.2} parent=0 // pred_region
    _
  $region29: #{encoder_forward.2} parent=0 // pred_fallthru
    _
  // Predicated region
  $region30: #{encoder_forward.2} parent=0 // pred_check
    _
  $region31: #{encoder_forward.2} parent=0 // pred_check_branch
    %2532 = sbr.rel (0) target = $region33
  $region32: #{encoder_forward.2} parent=0 // pred_region
    _
  $region33: #{encoder_forward.2} parent=0 // pred_fallthru
    _
  // Predicated region
  $region34: #{encoder_forward.2} parent=0 // pred_check
    _
  $region35: #{encoder_forward.2} parent=0 // pred_check_branch
    %2534 = sbr.rel (0) target = $region37
  $region36: #{encoder_forward.2} parent=0 // pred_region
    _
  $region37: #{encoder_forward.2} parent=0 // pred_fallthru
    _
  // Predicated region
  $region38: #{encoder_forward.2} parent=0 // pred_check
    _
  $region39: #{encoder_forward.2} parent=0 // pred_check_branch
    %2536 = sbr.rel (0) target = $region41
  $region40: #{encoder_forward.2} parent=0 // pred_region
    _
  $region41: #{encoder_forward.2} parent=0 // pred_fallthru
    _

// kernel: encoder_forward.3
$region0: #{encoder_forward.3}
  #allocation0 [shape = 'u32[]', space=smem, size = 0x4, offset = 0x4, fixed_abs, tag = 'smem constant byte address 0x4 - core index']
  #allocation1 [shape = 'u32[144,128]{1,0:T(1,128)}', space=vmem, size = 0x12000, scoped, tag = 'internal scratch']
  #allocation2 [shape = 'f32[8,128]{1,0:T(8,128)}', space=vmem, size = 0x1000, scoped, tag = 'scratch operand']
  #allocation3 [shape = 'f32[8,128]{1,0:T(8,128)}', space=vmem, size = 0x1000, scoped, tag = 'scratch operand']
  %s0 = inlined_call_operand.vmem [shape: bf16[8,8,512], index: 0, kind: input, shape index: {}]
  %s1 = inlined_call_operand.vmem [shape: bf16[128,512], index: 1, kind: input, shape index: {}]
  %s2 = inlined_call_operand.vmem [shape: f32[8,8,128], index: 2, kind: output, shape index: {0}]
  %s3 = inlined_call_operand.vmem [shape: f32[8,128], index: 3, kind: output, shape index: {1}]
  %s4 = inlined_call_operand.vmem [shape: f32[8,128], index: 4, kind: output, shape index: {2}]
  %5 = xla_tuple %s2, %s3, %s4
  %s6 = sld [smem:[#allocation0]]
  $region42: #{encoder_forward.3} parent=0
    _
  %s8 = ssub.s32 1, %s6
  %s9 = scalar_select 0, %s8, %s6
  // Predicated region
  $region2: #{encoder_forward.3} parent=0 // pred_check
    _
  $region3: #{encoder_forward.3} parent=0 // pred_check_branch
    %11 = sbr.rel (0) target = $region5
  $region4: #{encoder_forward.3} parent=0 // pred_region
    _
  $region5: #{encoder_forward.3} parent=0 // pred_fallthru
    _
  // Predicated region
  $region6: #{encoder_forward.3} parent=0 // pred_check
    _
  $region7: #{encoder_forward.3} parent=0 // pred_check_branch
    %13 = sbr.rel (0) target = $region9
  $region8: #{encoder_forward.3} parent=0 // pred_region
    _
  $region9: #{encoder_forward.3} parent=0 // pred_fallthru
    _
  %p15 = scmp.eq.s32.totalorder 0, 0
  // Predicated region
  $region10: #{encoder_forward.3} parent=0 // pred_check
    %p16 = pneg %p15
  $region11: #{encoder_forward.3} parent=0 // pred_check_branch
    %18 = sbr.rel (%p16) target = $region13
  $region12: #{encoder_forward.3} parent=0 // pred_region
    %19 = vst [vmem:[#allocation2] sm:$0xff] 0.0
    %20 = vst [vmem:[#allocation3] sm:$0xff] 0.0
  $region13: #{encoder_forward.3} parent=0 // pred_fallthru
    _
  %v21 = vld [vmem:[#allocation2] sm:$0xff]
  %v22 = vld [vmem:[#allocation3] sm:$0xff]
  %v23 = vld [vmem:[%s0] sm:$0xff]
  %v24 = vld [vmem:[%s0 + $0x8] sm:$0xff]
  %v25 = vunpack.c.l.bf16 %v23
  %v26 = vunpack.c.h.bf16 %v23
  %v27 = vunpack.c.l.bf16 %v24
  %v28 = vunpack.c.h.bf16 %v24
  %v29 = vpack.c.bf16 %v21, %v21
  %v30 = vld [vmem:[%s1] sm:$0xff]
  %v31 = vld [vmem:[%s1 + $0x8] sm:$0xff]
  %v32 = vld [vmem:[%s1 + $0x10] sm:$0xff]
  %v33 = vld [vmem:[%s1 + $0x18] sm:$0xff]
  %v34 = vld [vmem:[%s1 + $0x20] sm:$0xff]
  %v35 = vld [vmem:[%s1 + $0x28] sm:$0xff]
  %v36 = vld [vmem:[%s1 + $0x30] sm:$0xff]
  %v37 = vld [vmem:[%s1 + $0x38] sm:$0xff]
  %v38 = vld [vmem:[%s1 + $0x40] sm:$0xff]
  %v39 = vld [vmem:[%s1 + $0x48] sm:$0xff]
  %v40 = vld [vmem:[%s1 + $0x50] sm:$0xff]
  %v41 = vld [vmem:[%s1 + $0x58] sm:$0xff]
  %v42 = vld [vmem:[%s1 + $0x60] sm:$0xff]
  %v43 = vld [vmem:[%s1 + $0x68] sm:$0xff]
  %v44 = vld [vmem:[%s1 + $0x70] sm:$0xff]
  %v45 = vld [vmem:[%s1 + $0x78] sm:$0xff]
  %v46 = vld [vmem:[%s1 + $0x80] sm:$0xff]
  %v47 = vld [vmem:[%s1 + $0x88] sm:$0xff]
  %v48 = vld [vmem:[%s1 + $0x90] sm:$0xff]
  %v49 = vld [vmem:[%s1 + $0x98] sm:$0xff]
  %v50 = vld [vmem:[%s1 + $0xa0] sm:$0xff]
  %v51 = vld [vmem:[%s1 + $0xa8] sm:$0xff]
  %v52 = vld [vmem:[%s1 + $0xb0] sm:$0xff]
  %v53 = vld [vmem:[%s1 + $0xb8] sm:$0xff]
  %v54 = vld [vmem:[%s1 + $0xc0] sm:$0xff]
  %v55 = vld [vmem:[%s1 + $0xc8] sm:$0xff]
  %v56 = vld [vmem:[%s1 + $0xd0] sm:$0xff]
  %v57 = vld [vmem:[%s1 + $0xd8] sm:$0xff]
  %v58 = vld [vmem:[%s1 + $0xe0] sm:$0xff]
  %v59 = vld [vmem:[%s1 + $0xe8] sm:$0xff]
  %v60 = vld [vmem:[%s1 + $0xf0] sm:$0xff]
  %v61 = vld [vmem:[%s1 + $0xf8] sm:$0xff]
  %v94 = vunpack.c.l.b16 %v30
  %v95 = vunpack.c.h.b16 %v30
  %v96 = vunpack.c.l.b16 %v31
  %v97 = vunpack.c.h.b16 %v31
  %v98 = vunpack.c.l.b16 %v32
  %v99 = vunpack.c.h.b16 %v32
  %v100 = vunpack.c.l.b16 %v33
  %v101 = vunpack.c.h.b16 %v33
  %v102 = vunpack.c.l.b16 %v34
  %v103 = vunpack.c.h.b16 %v34
  %v104 = vunpack.c.l.b16 %v35
  %v105 = vunpack.c.h.b16 %v35
  %v106 = vunpack.c.l.b16 %v36
  %v107 = vunpack.c.h.b16 %v36
  %v108 = vunpack.c.l.b16 %v37
  %v109 = vunpack.c.h.b16 %v37
  %v110 = vunpack.c.l.b16 %v38
  %v111 = vunpack.c.h.b16 %v38
  %v112 = vunpack.c.l.b16 %v39
  %v113 = vunpack.c.h.b16 %v39
  %v114 = vunpack.c.l.b16 %v40
  %v115 = vunpack.c.h.b16 %v40
  %v116 = vunpack.c.l.b16 %v41
  %v117 = vunpack.c.h.b16 %v41
  %v118 = vunpack.c.l.b16 %v42
  %v119 = vunpack.c.h.b16 %v42
  %v120 = vunpack.c.l.b16 %v43
  %v121 = vunpack.c.h.b16 %v43
  %v122 = vunpack.c.l.b16 %v44
  %v123 = vunpack.c.h.b16 %v44
  %v124 = vunpack.c.l.b16 %v45
  %v125 = vunpack.c.h.b16 %v45
  %v126 = vunpack.c.l.b16 %v46
  %v127 = vunpack.c.h.b16 %v46
  %v128 = vunpack.c.l.b16 %v47
  %v129 = vunpack.c.h.b16 %v47
  %v130 = vunpack.c.l.b16 %v48
  %v131 = vunpack.c.h.b16 %v48
  %v132 = vunpack.c.l.b16 %v49
  %v133 = vunpack.c.h.b16 %v49
  %v134 = vunpack.c.l.b16 %v50
  %v135 = vunpack.c.h.b16 %v50
  %v136 = vunpack.c.l.b16 %v51
  %v137 = vunpack.c.h.b16 %v51
  %v138 = vunpack.c.l.b16 %v52
  %v139 = vunpack.c.h.b16 %v52
  %v140 = vunpack.c.l.b16 %v53
  %v141 = vunpack.c.h.b16 %v53
  %v142 = vunpack.c.l.b16 %v54
  %v143 = vunpack.c.h.b16 %v54
  %v144 = vunpack.c.l.b16 %v55
  %v145 = vunpack.c.h.b16 %v55
  %v146 = vunpack.c.l.b16 %v56
  %v147 = vunpack.c.h.b16 %v56
  %v148 = vunpack.c.l.b16 %v57
  %v149 = vunpack.c.h.b16 %v57
  %v150 = vunpack.c.l.b16 %v58
  %v151 = vunpack.c.h.b16 %v58
  %v152 = vunpack.c.l.b16 %v59
  %v153 = vunpack.c.h.b16 %v59
  %v154 = vunpack.c.l.b16 %v60
  %v155 = vunpack.c.h.b16 %v60
  %v156 = vunpack.c.l.b16 %v61
  %v157 = vunpack.c.h.b16 %v61
  %v158 = vpack.c.b16 %v98, %v94
  %v159 = vpack.c.b16 %v99, %v95
  %v160 = vpack.c.b16 %v100, %v96
  %v161 = vpack.c.b16 %v101, %v97
  %v162 = vpack.c.b16 %v106, %v102
  %v163 = vpack.c.b16 %v107, %v103
  %v164 = vpack.c.b16 %v108, %v104
  %v165 = vpack.c.b16 %v109, %v105
  %v166 = vpack.c.b16 %v114, %v110
  %v167 = vpack.c.b16 %v115, %v111
  %v168 = vpack.c.b16 %v116, %v112
  %v169 = vpack.c.b16 %v117, %v113
  %v170 = vpack.c.b16 %v122, %v118
  %v171 = vpack.c.b16 %v123, %v119
  %v172 = vpack.c.b16 %v124, %v120
  %v173 = vpack.c.b16 %v125, %v121
  %v174 = vpack.c.b16 %v130, %v126
  %v175 = vpack.c.b16 %v131, %v127
  %v176 = vpack.c.b16 %v132, %v128
  %v177 = vpack.c.b16 %v133, %v129
  %v178 = vpack.c.b16 %v138, %v134
  %v179 = vpack.c.b16 %v139, %v135
  %v180 = vpack.c.b16 %v140, %v136
  %v181 = vpack.c.b16 %v141, %v137
  %v182 = vpack.c.b16 %v146, %v142
  %v183 = vpack.c.b16 %v147, %v143
  %v184 = vpack.c.b16 %v148, %v144
  %v185 = vpack.c.b16 %v149, %v145
  %v186 = vpack.c.b16 %v154, %v150
  %v187 = vpack.c.b16 %v155, %v151
  %v188 = vpack.c.b16 %v156, %v152
  %v189 = vpack.c.b16 %v157, %v153
  %222 = vmatprep.subr.bf16.mxu0 %v159
  %223 = vmatpush1.bf16.msra.mxu0 %v158
  %224 = vmatprep.subr.bf16.mxu0 %v163
  %225 = vmatpush1.bf16.msra.mxu0 %v162
  %226 = vmatprep.subr.bf16.mxu0 %v167
  %227 = vmatpush1.bf16.msra.mxu0 %v166
  %228 = vmatprep.subr.bf16.mxu0 %v171
  %229 = vmatpush1.bf16.msra.mxu0 %v170
  %230 = vmatprep.subr.bf16.mxu0 %v175
  %231 = vmatpush1.bf16.msra.mxu0 %v174
  %232 = vmatprep.subr.bf16.mxu0 %v179
  %233 = vmatpush1.bf16.msra.mxu0 %v178
  %234 = vmatprep.subr.bf16.mxu0 %v183
  %235 = vmatpush1.bf16.msra.mxu0 %v182
  %236 = vmatprep.subr.bf16.mxu0 %v187
  %237 = vmatpush1.bf16.msra.mxu0 %v186
  %238 = vmatprep.subr.bf16.mxu0 0
  %239 = vmatpush1.bf16.msra.mxu0 0
  %240 = vmatprep.subr.bf16.mxu0 0
  %241 = vmatpush1.bf16.msra.mxu0 0
  %242 = vmatprep.subr.bf16.mxu0 0
  %243 = vmatpush1.bf16.msra.mxu0 0
  %244 = vmatprep.subr.bf16.mxu0 0
  %245 = vmatpush1.bf16.msra.mxu0 0
  %246 = vmatprep.subr.bf16.mxu0 0
  %247 = vmatpush1.bf16.msra.mxu0 0
  %248 = vmatprep.subr.bf16.mxu0 0
  %249 = vmatpush1.bf16.msra.mxu0 0
  %250 = vmatprep.subr.bf16.mxu0 0
  %251 = vmatpush1.bf16.msra.mxu0 0
  %252 = vmatprep.subr.bf16.mxu0 0
  %253 = vmatpush1.bf16.msra.mxu0 0
  %254 = vmatprep.mubr.bf16.mxu0 0
  %255 = vmatmul.mubr.bf16.gmra.mrb[0].mxu0 %v29
  %v256 = vpop.f32.mrb[0].mxu0
  %v257 = vadd.f32 0.0, %v256
  %v258 = vpop.f32.mrb[0].mxu0
  %v259 = vadd.f32 0.0, %v258
  %v260 = vpop.f32.mrb[0].mxu0
  %v261 = vpop.f32.mrb[0].mxu0
  %262 = vdwg.mxu0
  %263 = vmatprep.subr.bf16.mxu0 %v161
  %264 = vmatpush1.bf16.msra.mxu0 %v160
  %265 = vmatprep.subr.bf16.mxu0 %v165
  %266 = vmatpush1.bf16.msra.mxu0 %v164
  %267 = vmatprep.subr.bf16.mxu0 %v169
  %268 = vmatpush1.bf16.msra.mxu0 %v168
  %269 = vmatprep.subr.bf16.mxu0 %v173
  %270 = vmatpush1.bf16.msra.mxu0 %v172
  %271 = vmatprep.subr.bf16.mxu0 %v177
  %272 = vmatpush1.bf16.msra.mxu0 %v176
  %273 = vmatprep.subr.bf16.mxu0 %v181
  %274 = vmatpush1.bf16.msra.mxu0 %v180
  %275 = vmatprep.subr.bf16.mxu0 %v185
  %276 = vmatpush1.bf16.msra.mxu0 %v184
  %277 = vmatprep.subr.bf16.mxu0 %v189
  %278 = vmatpush1.bf16.msra.mxu0 %v188
  %279 = vmatprep.subr.bf16.mxu0 0
  %280 = vmatpush1.bf16.msra.mxu0 0
  %281 = vmatprep.subr.bf16.mxu0 0
  %282 = vmatpush1.bf16.msra.mxu0 0
  %283 = vmatprep.subr.bf16.mxu0 0
  %284 = vmatpush1.bf16.msra.mxu0 0
  %285 = vmatprep.subr.bf16.mxu0 0
  %286 = vmatpush1.bf16.msra.mxu0 0
  %287 = vmatprep.subr.bf16.mxu0 0
  %288 = vmatpush1.bf16.msra.mxu0 0
  %289 = vmatprep.subr.bf16.mxu0 0
  %290 = vmatpush1.bf16.msra.mxu0 0
  %291 = vmatprep.subr.bf16.mxu0 0
  %292 = vmatpush1.bf16.msra.mxu0 0
  %293 = vmatprep.subr.bf16.mxu0 0
  %294 = vmatpush1.bf16.msra.mxu0 0
  %295 = vmatprep.mubr.bf16.mxu0 0
  %296 = vmatmul.mubr.bf16.gmra.mrb[0].mxu0 %v29
  %v297 = vpop.f32.mrb[0].mxu0
  %v298 = vadd.f32 0.0, %v297
  %v299 = vpop.f32.mrb[0].mxu0
  %v300 = vadd.f32 0.0, %v299
  %v301 = vpop.f32.mrb[0].mxu0
  %v302 = vpop.f32.mrb[0].mxu0
  %303 = vdwg.mxu0
  %v304 = vadd.f32 %v25, %v257
  %v305 = vadd.f32 %v26, %v259
  %v306 = vadd.f32 %v27, %v298
  %v307 = vadd.f32 %v28, %v300
  %v308 = vxor.u32 %v304, 2147483648
  %v309 = vmul.f32 %v308, 1.442695
  %v310 = vpow.pop %v309
  %v311 = vadd.f32 %v310, 1.0
  %v312 = vrcp.pop %v311
  %v313 = vmul.f32 1.0, %v312
  %v314 = vxor.u32 %v305, 2147483648
  %v315 = vmul.f32 %v314, 1.442695
  %v316 = vpow.pop %v315
  %v317 = vadd.f32 %v316, 1.0
  %v318 = vrcp.pop %v317
  %v319 = vmul.f32 1.0, %v318
  %v320 = vtanh.pop %v306
  %v321 = vxor.u32 %v307, 2147483648
  %v322 = vmul.f32 %v321, 1.442695
  %v323 = vpow.pop %v322
  %v324 = vadd.f32 %v323, 1.0
  %v325 = vrcp.pop %v324
  %v326 = vmul.f32 1.0, %v325
  %v327 = vmul.f32 %v319, %v22
  %v328 = vmul.f32 %v313, %v320
  %v329 = vadd.f32 %v327, %v328
  %v330 = vtanh.pop %v329
  %v331 = vmul.f32 %v326, %v330
  %332 = vst [vmem:[%s2] sm:$0xff] %v331
  %s333 = scalar_lea.vmem %s0, 16
  %v334 = vld [vmem:[%s333] sm:$0xff]
  %v335 = vld [vmem:[%s333 + $0x8] sm:$0xff]
  %v336 = vunpack.c.l.bf16 %v334
  %v337 = vunpack.c.h.bf16 %v334
  %v338 = vunpack.c.l.bf16 %v335
  %v339 = vunpack.c.h.bf16 %v335
  %v340 = vpack.c.bf16 %v331, %v331
  %v341 = vld [vmem:[%s1] sm:$0xff]
  %v342 = vld [vmem:[%s1 + $0x8] sm:$0xff]
  %v343 = vld [vmem:[%s1 + $0x10] sm:$0xff]
  %v344 = vld [vmem:[%s1 + $0x18] sm:$0xff]
  %v345 = vld [vmem:[%s1 + $0x20] sm:$0xff]
  %v346 = vld [vmem:[%s1 + $0x28] sm:$0xff]
  %v347 = vld [vmem:[%s1 + $0x30] sm:$0xff]
  %v348 = vld [vmem:[%s1 + $0x38] sm:$0xff]
  %v349 = vld [vmem:[%s1 + $0x40] sm:$0xff]
  %v350 = vld [vmem:[%s1 + $0x48] sm:$0xff]
  %v351 = vld [vmem:[%s1 + $0x50] sm:$0xff]
  %v352 = vld [vmem:[%s1 + $0x58] sm:$0xff]
  %v353 = vld [vmem:[%s1 + $0x60] sm:$0xff]
  %v354 = vld [vmem:[%s1 + $0x68] sm:$0xff]
  %v355 = vld [vmem:[%s1 + $0x70] sm:$0xff]
  %v356 = vld [vmem:[%s1 + $0x78] sm:$0xff]
  %v357 = vld [vmem:[%s1 + $0x80] sm:$0xff]
  %v358 = vld [vmem:[%s1 + $0x88] sm:$0xff]
  %v359 = vld [vmem:[%s1 + $0x90] sm:$0xff]
  %v360 = vld [vmem:[%s1 + $0x98] sm:$0xff]
  %v361 = vld [vmem:[%s1 + $0xa0] sm:$0xff]
  %v362 = vld [vmem:[%s1 + $0xa8] sm:$0xff]
  %v363 = vld [vmem:[%s1 + $0xb0] sm:$0xff]
  %v364 = vld [vmem:[%s1 + $0xb8] sm:$0xff]
  %v365 = vld [vmem:[%s1 + $0xc0] sm:$0xff]
  %v366 = vld [vmem:[%s1 + $0xc8] sm:$0xff]
  %v367 = vld [vmem:[%s1 + $0xd0] sm:$0xff]
  %v368 = vld [vmem:[%s1 + $0xd8] sm:$0xff]
  %v369 = vld [vmem:[%s1 + $0xe0] sm:$0xff]
  %v370 = vld [vmem:[%s1 + $0xe8] sm:$0xff]
  %v371 = vld [vmem:[%s1 + $0xf0] sm:$0xff]
  %v372 = vld [vmem:[%s1 + $0xf8] sm:$0xff]
  %v405 = vunpack.c.l.b16 %v341
  %v406 = vunpack.c.h.b16 %v341
  %v407 = vunpack.c.l.b16 %v342
  %v408 = vunpack.c.h.b16 %v342
  %v409 = vunpack.c.l.b16 %v343
  %v410 = vunpack.c.h.b16 %v343
  %v411 = vunpack.c.l.b16 %v344
  %v412 = vunpack.c.h.b16 %v344
  %v413 = vunpack.c.l.b16 %v345
  %v414 = vunpack.c.h.b16 %v345
  %v415 = vunpack.c.l.b16 %v346
  %v416 = vunpack.c.h.b16 %v346
  %v417 = vunpack.c.l.b16 %v347
  %v418 = vunpack.c.h.b16 %v347
  %v419 = vunpack.c.l.b16 %v348
  %v420 = vunpack.c.h.b16 %v348
  %v421 = vunpack.c.l.b16 %v349
  %v422 = vunpack.c.h.b16 %v349
  %v423 = vunpack.c.l.b16 %v350
  %v424 = vunpack.c.h.b16 %v350
  %v425 = vunpack.c.l.b16 %v351
  %v426 = vunpack.c.h.b16 %v351
  %v427 = vunpack.c.l.b16 %v352
  %v428 = vunpack.c.h.b16 %v352
  %v429 = vunpack.c.l.b16 %v353
  %v430 = vunpack.c.h.b16 %v353
  %v431 = vunpack.c.l.b16 %v354
  %v432 = vunpack.c.h.b16 %v354
  %v433 = vunpack.c.l.b16 %v355
  %v434 = vunpack.c.h.b16 %v355
  %v435 = vunpack.c.l.b16 %v356
  %v436 = vunpack.c.h.b16 %v356
  %v437 = vunpack.c.l.b16 %v357
  %v438 = vunpack.c.h.b16 %v357
  %v439 = vunpack.c.l.b16 %v358
  %v440 = vunpack.c.h.b16 %v358
  %v441 = vunpack.c.l.b16 %v359
  %v442 = vunpack.c.h.b16 %v359
  %v443 = vunpack.c.l.b16 %v360
  %v444 = vunpack.c.h.b16 %v360
  %v445 = vunpack.c.l.b16 %v361
  %v446 = vunpack.c.h.b16 %v361
  %v447 = vunpack.c.l.b16 %v362
  %v448 = vunpack.c.h.b16 %v362
  %v449 = vunpack.c.l.b16 %v363
  %v450 = vunpack.c.h.b16 %v363
  %v451 = vunpack.c.l.b16 %v364
  %v452 = vunpack.c.h.b16 %v364
  %v453 = vunpack.c.l.b16 %v365
  %v454 = vunpack.c.h.b16 %v365
  %v455 = vunpack.c.l.b16 %v366
  %v456 = vunpack.c.h.b16 %v366
  %v457 = vunpack.c.l.b16 %v367
  %v458 = vunpack.c.h.b16 %v367
  %v459 = vunpack.c.l.b16 %v368
  %v460 = vunpack.c.h.b16 %v368
  %v461 = vunpack.c.l.b16 %v369
  %v462 = vunpack.c.h.b16 %v369
  %v463 = vunpack.c.l.b16 %v370
  %v464 = vunpack.c.h.b16 %v370
  %v465 = vunpack.c.l.b16 %v371
  %v466 = vunpack.c.h.b16 %v371
  %v467 = vunpack.c.l.b16 %v372
  %v468 = vunpack.c.h.b16 %v372
  %v469 = vpack.c.b16 %v409, %v405
  %v470 = vpack.c.b16 %v410, %v406
  %v471 = vpack.c.b16 %v411, %v407
  %v472 = vpack.c.b16 %v412, %v408
  %v473 = vpack.c.b16 %v417, %v413
  %v474 = vpack.c.b16 %v418, %v414
  %v475 = vpack.c.b16 %v419, %v415
  %v476 = vpack.c.b16 %v420, %v416
  %v477 = vpack.c.b16 %v425, %v421
  %v478 = vpack.c.b16 %v426, %v422
  %v479 = vpack.c.b16 %v427, %v423
  %v480 = vpack.c.b16 %v428, %v424
  %v481 = vpack.c.b16 %v433, %v429
  %v482 = vpack.c.b16 %v434, %v430
  %v483 = vpack.c.b16 %v435, %v431
  %v484 = vpack.c.b16 %v436, %v432
  %v485 = vpack.c.b16 %v441, %v437
  %v486 = vpack.c.b16 %v442, %v438
  %v487 = vpack.c.b16 %v443, %v439
  %v488 = vpack.c.b16 %v444, %v440
  %v489 = vpack.c.b16 %v449, %v445
  %v490 = vpack.c.b16 %v450, %v446
  %v491 = vpack.c.b16 %v451, %v447
  %v492 = vpack.c.b16 %v452, %v448
  %v493 = vpack.c.b16 %v457, %v453
  %v494 = vpack.c.b16 %v458, %v454
  %v495 = vpack.c.b16 %v459, %v455
  %v496 = vpack.c.b16 %v460, %v456
  %v497 = vpack.c.b16 %v465, %v461
  %v498 = vpack.c.b16 %v466, %v462
  %v499 = vpack.c.b16 %v467, %v463
  %v500 = vpack.c.b16 %v468, %v464
  %533 = vmatprep.subr.bf16.mxu0 %v470
  %534 = vmatpush1.bf16.msra.mxu0 %v469
  %535 = vmatprep.subr.bf16.mxu0 %v474
  %536 = vmatpush1.bf16.msra.mxu0 %v473
  %537 = vmatprep.subr.bf16.mxu0 %v478
  %538 = vmatpush1.bf16.msra.mxu0 %v477
  %539 = vmatprep.subr.bf16.mxu0 %v482
  %540 = vmatpush1.bf16.msra.mxu0 %v481
  %541 = vmatprep.subr.bf16.mxu0 %v486
  %542 = vmatpush1.bf16.msra.mxu0 %v485
  %543 = vmatprep.subr.bf16.mxu0 %v490
  %544 = vmatpush1.bf16.msra.mxu0 %v489
  %545 = vmatprep.subr.bf16.mxu0 %v494
  %546 = vmatpush1.bf16.msra.mxu0 %v493
  %547 = vmatprep.subr.bf16.mxu0 %v498
  %548 = vmatpush1.bf16.msra.mxu0 %v497
  %549 = vmatprep.subr.bf16.mxu0 0
  %550 = vmatpush1.bf16.msra.mxu0 0
  %551 = vmatprep.subr.bf16.mxu0 0
  %552 = vmatpush1.bf16.msra.mxu0 0
  %553 = vmatprep.subr.bf16.mxu0 0
  %554 = vmatpush1.bf16.msra.mxu0 0
  %555 = vmatprep.subr.bf16.mxu0 0
  %556 = vmatpush1.bf16.msra.mxu0 0
  %557 = vmatprep.subr.bf16.mxu0 0
  %558 = vmatpush1.bf16.msra.mxu0 0
  %559 = vmatprep.subr.bf16.mxu0 0
  %560 = vmatpush1.bf16.msra.mxu0 0
  %561 = vmatprep.subr.bf16.mxu0 0
  %562 = vmatpush1.bf16.msra.mxu0 0
  %563 = vmatprep.subr.bf16.mxu0 0
  %564 = vmatpush1.bf16.msra.mxu0 0
  %565 = vmatprep.mubr.bf16.mxu0 0
  %566 = vmatmul.mubr.bf16.gmra.mrb[0].mxu0 %v340
  %v567 = vpop.f32.mrb[0].mxu0
  %v568 = vadd.f32 0.0, %v567
  %v569 = vpop.f32.mrb[0].mxu0
  %v570 = vadd.f32 0.0, %v569
  %v571 = vpop.f32.mrb[0].mxu0
  %v572 = vpop.f32.mrb[0].mxu0
  %573 = vdwg.mxu0
  %574 = vmatprep.subr.bf16.mxu0 %v472
  %575 = vmatpush1.bf16.msra.mxu0 %v471
  %576 = vmatprep.subr.bf16.mxu0 %v476
  %577 = vmatpush1.bf16.msra.mxu0 %v475
  %578 = vmatprep.subr.bf16.mxu0 %v480
  %579 = vmatpush1.bf16.msra.mxu0 %v479
  %580 = vmatprep.subr.bf16.mxu0 %v484
  %581 = vmatpush1.bf16.msra.mxu0 %v483
  %582 = vmatprep.subr.bf16.mxu0 %v488
  %583 = vmatpush1.bf16.msra.mxu0 %v487
  %584 = vmatprep.subr.bf16.mxu0 %v492
  %585 = vmatpush1.bf16.msra.mxu0 %v491
  %586 = vmatprep.subr.bf16.mxu0 %v496
  %587 = vmatpush1.bf16.msra.mxu0 %v495
  %588 = vmatprep.subr.bf16.mxu0 %v500
  %589 = vmatpush1.bf16.msra.mxu0 %v499
  %590 = vmatprep.subr.bf16.mxu0 0
  %591 = vmatpush1.bf16.msra.mxu0 0
  %592 = vmatprep.subr.bf16.mxu0 0
  %593 = vmatpush1.bf16.msra.mxu0 0
  %594 = vmatprep.subr.bf16.mxu0 0
  %595 = vmatpush1.bf16.msra.mxu0 0
  %596 = vmatprep.subr.bf16.mxu0 0
  %597 = vmatpush1.bf16.msra.mxu0 0
  %598 = vmatprep.subr.bf16.mxu0 0
  %599 = vmatpush1.bf16.msra.mxu0 0
  %600 = vmatprep.subr.bf16.mxu0 0
  %601 = vmatpush1.bf16.msra.mxu0 0
  %602 = vmatprep.subr.bf16.mxu0 0
  %603 = vmatpush1.bf16.msra.mxu0 0
  %604 = vmatprep.subr.bf16.mxu0 0
  %605 = vmatpush1.bf16.msra.mxu0 0
  %606 = vmatprep.mubr.bf16.mxu0 0
  %607 = vmatmul.mubr.bf16.gmra.mrb[0].mxu0 %v340
  %v608 = vpop.f32.mrb[0].mxu0
  %v609 = vadd.f32 0.0, %v608
  %v610 = vpop.f32.mrb[0].mxu0
  %v611 = vadd.f32 0.0, %v610
  %v612 = vpop.f32.mrb[0].mxu0
  %v613 = vpop.f32.mrb[0].mxu0
  %614 = vdwg.mxu0
  %v615 = vadd.f32 %v336, %v568
  %v616 = vadd.f32 %v337, %v570
  %v617 = vadd.f32 %v338, %v609
  %v618 = vadd.f32 %v339, %v611
  %v619 = vxor.u32 %v615, 2147483648
  %v620 = vmul.f32 %v619, 1.442695
  %v621 = vpow.pop %v620
  %v622 = vadd.f32 %v621, 1.0
  %v623 = vrcp.pop %v622
  %v624 = vmul.f32 1.0, %v623
  %v625 = vxor.u32 %v616, 2147483648
  %v626 = vmul.f32 %v625, 1.442695
  %v627 = vpow.pop %v626
  %v628 = vadd.f32 %v627, 1.0
  %v629 = vrcp.pop %v628
  %v630 = vmul.f32 1.0, %v629
  %v631 = vtanh.pop %v617
  %v632 = vxor.u32 %v618, 2147483648
  %v633 = vmul.f32 %v632, 1.442695
  %v634 = vpow.pop %v633
  %v635 = vadd.f32 %v634, 1.0
  %v636 = vrcp.pop %v635
  %v637 = vmul.f32 1.0, %v636
  %v638 = vmul.f32 %v630, %v329
  %v639 = vmul.f32 %v624, %v631
  %v640 = vadd.f32 %v638, %v639
  %v641 = vtanh.pop %v640
  %v642 = vmul.f32 %v637, %v641
  %s643 = scalar_lea.vmem %s2, 8
  %644 = vst [vmem:[%s643] sm:$0xff] %v642
  %s645 = scalar_lea.vmem %s0, 32
  %v646 = vld [vmem:[%s645] sm:$0xff]
  %v647 = vld [vmem:[%s645 + $0x8] sm:$0xff]
  %v648 = vunpack.c.l.bf16 %v646
  %v649 = vunpack.c.h.bf16 %v646
  %v650 = vunpack.c.l.bf16 %v647
  %v651 = vunpack.c.h.bf16 %v647
  %v652 = vpack.c.bf16 %v642, %v642
  %v653 = vld [vmem:[%s1] sm:$0xff]
  %v654 = vld [vmem:[%s1 + $0x8] sm:$0xff]
  %v655 = vld [vmem:[%s1 + $0x10] sm:$0xff]
  %v656 = vld [vmem:[%s1 + $0x18] sm:$0xff]
  %v657 = vld [vmem:[%s1 + $0x20] sm:$0xff]
  %v658 = vld [vmem:[%s1 + $0x28] sm:$0xff]
  %v659 = vld [vmem:[%s1 + $0x30] sm:$0xff]
  %v660 = vld [vmem:[%s1 + $0x38] sm:$0xff]
  %v661 = vld [vmem:[%s1 + $0x40] sm:$0xff]
  %v662 = vld [vmem:[%s1 + $0x48] sm:$0xff]
  %v663 = vld [vmem:[%s1 + $0x50] sm:$0xff]
  %v664 = vld [vmem:[%s1 + $0x58] sm:$0xff]
  %v665 = vld [vmem:[%s1 + $0x60] sm:$0xff]
  %v666 = vld [vmem:[%s1 + $0x68] sm:$0xff]
  %v667 = vld [vmem:[%s1 + $0x70] sm:$0xff]
  %v668 = vld [vmem:[%s1 + $0x78] sm:$0xff]
  %v669 = vld [vmem:[%s1 + $0x80] sm:$0xff]
  %v670 = vld [vmem:[%s1 + $0x88] sm:$0xff]
  %v671 = vld [vmem:[%s1 + $0x90] sm:$0xff]
  %v672 = vld [vmem:[%s1 + $0x98] sm:$0xff]
  %v673 = vld [vmem:[%s1 + $0xa0] sm:$0xff]
  %v674 = vld [vmem:[%s1 + $0xa8] sm:$0xff]
  %v675 = vld [vmem:[%s1 + $0xb0] sm:$0xff]
  %v676 = vld [vmem:[%s1 + $0xb8] sm:$0xff]
  %v677 = vld [vmem:[%s1 + $0xc0] sm:$0xff]
  %v678 = vld [vmem:[%s1 + $0xc8] sm:$0xff]
  %v679 = vld [vmem:[%s1 + $0xd0] sm:$0xff]
  %v680 = vld [vmem:[%s1 + $0xd8] sm:$0xff]
  %v681 = vld [vmem:[%s1 + $0xe0] sm:$0xff]
  %v682 = vld [vmem:[%s1 + $0xe8] sm:$0xff]
  %v683 = vld [vmem:[%s1 + $0xf0] sm:$0xff]
  %v684 = vld [vmem:[%s1 + $0xf8] sm:$0xff]
  %v717 = vunpack.c.l.b16 %v653
  %v718 = vunpack.c.h.b16 %v653
  %v719 = vunpack.c.l.b16 %v654
  %v720 = vunpack.c.h.b16 %v654
  %v721 = vunpack.c.l.b16 %v655
  %v722 = vunpack.c.h.b16 %v655
  %v723 = vunpack.c.l.b16 %v656
  %v724 = vunpack.c.h.b16 %v656
  %v725 = vunpack.c.l.b16 %v657
  %v726 = vunpack.c.h.b16 %v657
  %v727 = vunpack.c.l.b16 %v658
  %v728 = vunpack.c.h.b16 %v658
  %v729 = vunpack.c.l.b16 %v659
  %v730 = vunpack.c.h.b16 %v659
  %v731 = vunpack.c.l.b16 %v660
  %v732 = vunpack.c.h.b16 %v660
  %v733 = vunpack.c.l.b16 %v661
  %v734 = vunpack.c.h.b16 %v661
  %v735 = vunpack.c.l.b16 %v662
  %v736 = vunpack.c.h.b16 %v662
  %v737 = vunpack.c.l.b16 %v663
  %v738 = vunpack.c.h.b16 %v663
  %v739 = vunpack.c.l.b16 %v664
  %v740 = vunpack.c.h.b16 %v664
  %v741 = vunpack.c.l.b16 %v665
  %v742 = vunpack.c.h.b16 %v665
  %v743 = vunpack.c.l.b16 %v666
  %v744 = vunpack.c.h.b16 %v666
  %v745 = vunpack.c.l.b16 %v667
  %v746 = vunpack.c.h.b16 %v667
  %v747 = vunpack.c.l.b16 %v668
  %v748 = vunpack.c.h.b16 %v668
  %v749 = vunpack.c.l.b16 %v669
  %v750 = vunpack.c.h.b16 %v669
  %v751 = vunpack.c.l.b16 %v670
  %v752 = vunpack.c.h.b16 %v670
  %v753 = vunpack.c.l.b16 %v671
  %v754 = vunpack.c.h.b16 %v671
  %v755 = vunpack.c.l.b16 %v672
  %v756 = vunpack.c.h.b16 %v672
  %v757 = vunpack.c.l.b16 %v673
  %v758 = vunpack.c.h.b16 %v673
  %v759 = vunpack.c.l.b16 %v674
  %v760 = vunpack.c.h.b16 %v674
  %v761 = vunpack.c.l.b16 %v675
  %v762 = vunpack.c.h.b16 %v675
  %v763 = vunpack.c.l.b16 %v676
  %v764 = vunpack.c.h.b16 %v676
  %v765 = vunpack.c.l.b16 %v677
  %v766 = vunpack.c.h.b16 %v677
  %v767 = vunpack.c.l.b16 %v678
  %v768 = vunpack.c.h.b16 %v678
  %v769 = vunpack.c.l.b16 %v679
  %v770 = vunpack.c.h.b16 %v679
  %v771 = vunpack.c.l.b16 %v680
  %v772 = vunpack.c.h.b16 %v680
  %v773 = vunpack.c.l.b16 %v681
  %v774 = vunpack.c.h.b16 %v681
  %v775 = vunpack.c.l.b16 %v682
  %v776 = vunpack.c.h.b16 %v682
  %v777 = vunpack.c.l.b16 %v683
  %v778 = vunpack.c.h.b16 %v683
  %v779 = vunpack.c.l.b16 %v684
  %v780 = vunpack.c.h.b16 %v684
  %v781 = vpack.c.b16 %v721, %v717
  %v782 = vpack.c.b16 %v722, %v718
  %v783 = vpack.c.b16 %v723, %v719
  %v784 = vpack.c.b16 %v724, %v720
  %v785 = vpack.c.b16 %v729, %v725
  %v786 = vpack.c.b16 %v730, %v726
  %v787 = vpack.c.b16 %v731, %v727
  %v788 = vpack.c.b16 %v732, %v728
  %v789 = vpack.c.b16 %v737, %v733
  %v790 = vpack.c.b16 %v738, %v734
  %v791 = vpack.c.b16 %v739, %v735
  %v792 = vpack.c.b16 %v740, %v736
  %v793 = vpack.c.b16 %v745, %v741
  %v794 = vpack.c.b16 %v746, %v742
  %v795 = vpack.c.b16 %v747, %v743
  %v796 = vpack.c.b16 %v748, %v744
  %v797 = vpack.c.b16 %v753, %v749
  %v798 = vpack.c.b16 %v754, %v750
  %v799 = vpack.c.b16 %v755, %v751
  %v800 = vpack.c.b16 %v756, %v752
  %v801 = vpack.c.b16 %v761, %v757
  %v802 = vpack.c.b16 %v762, %v758
  %v803 = vpack.c.b16 %v763, %v759
  %v804 = vpack.c.b16 %v764, %v760
  %v805 = vpack.c.b16 %v769, %v765
  %v806 = vpack.c.b16 %v770, %v766
  %v807 = vpack.c.b16 %v771, %v767
  %v808 = vpack.c.b16 %v772, %v768
  %v809 = vpack.c.b16 %v777, %v773
  %v810 = vpack.c.b16 %v778, %v774
  %v811 = vpack.c.b16 %v779, %v775
  %v812 = vpack.c.b16 %v780, %v776
  %845 = vmatprep.subr.bf16.mxu0 %v782
  %846 = vmatpush1.bf16.msra.mxu0 %v781
  %847 = vmatprep.subr.bf16.mxu0 %v786
  %848 = vmatpush1.bf16.msra.mxu0 %v785
  %849 = vmatprep.subr.bf16.mxu0 %v790
  %850 = vmatpush1.bf16.msra.mxu0 %v789
  %851 = vmatprep.subr.bf16.mxu0 %v794
  %852 = vmatpush1.bf16.msra.mxu0 %v793
  %853 = vmatprep.subr.bf16.mxu0 %v798
  %854 = vmatpush1.bf16.msra.mxu0 %v797
  %855 = vmatprep.subr.bf16.mxu0 %v802
  %856 = vmatpush1.bf16.msra.mxu0 %v801
  %857 = vmatprep.subr.bf16.mxu0 %v806
  %858 = vmatpush1.bf16.msra.mxu0 %v805
  %859 = vmatprep.subr.bf16.mxu0 %v810
  %860 = vmatpush1.bf16.msra.mxu0 %v809
  %861 = vmatprep.subr.bf16.mxu0 0
  %862 = vmatpush1.bf16.msra.mxu0 0
  %863 = vmatprep.subr.bf16.mxu0 0
  %864 = vmatpush1.bf16.msra.mxu0 0
  %865 = vmatprep.subr.bf16.mxu0 0
  %866 = vmatpush1.bf16.msra.mxu0 0
  %867 = vmatprep.subr.bf16.mxu0 0
  %868 = vmatpush1.bf16.msra.mxu0 0
  %869 = vmatprep.subr.bf16.mxu0 0
  %870 = vmatpush1.bf16.msra.mxu0 0
  %871 = vmatprep.subr.bf16.mxu0 0
  %872 = vmatpush1.bf16.msra.mxu0 0
  %873 = vmatprep.subr.bf16.mxu0 0
  %874 = vmatpush1.bf16.msra.mxu0 0
  %875 = vmatprep.subr.bf16.mxu0 0
  %876 = vmatpush1.bf16.msra.mxu0 0
  %877 = vmatprep.mubr.bf16.mxu0 0
  %878 = vmatmul.mubr.bf16.gmra.mrb[0].mxu0 %v652
  %v879 = vpop.f32.mrb[0].mxu0
  %v880 = vadd.f32 0.0, %v879
  %v881 = vpop.f32.mrb[0].mxu0
  %v882 = vadd.f32 0.0, %v881
  %v883 = vpop.f32.mrb[0].mxu0
  %v884 = vpop.f32.mrb[0].mxu0
  %885 = vdwg.mxu0
  %886 = vmatprep.subr.bf16.mxu0 %v784
  %887 = vmatpush1.bf16.msra.mxu0 %v783
  %888 = vmatprep.subr.bf16.mxu0 %v788
  %889 = vmatpush1.bf16.msra.mxu0 %v787
  %890 = vmatprep.subr.bf16.mxu0 %v792
  %891 = vmatpush1.bf16.msra.mxu0 %v791
  %892 = vmatprep.subr.bf16.mxu0 %v796
  %893 = vmatpush1.bf16.msra.mxu0 %v795
  %894 = vmatprep.subr.bf16.mxu0 %v800
  %895 = vmatpush1.bf16.msra.mxu0 %v799
  %896 = vmatprep.subr.bf16.mxu0 %v804
  %897 = vmatpush1.bf16.msra.mxu0 %v803
  %898 = vmatprep.subr.bf16.mxu0 %v808
  %899 = vmatpush1.bf16.msra.mxu0 %v807
  %900 = vmatprep.subr.bf16.mxu0 %v812
  %901 = vmatpush1.bf16.msra.mxu0 %v811
  %902 = vmatprep.subr.bf16.mxu0 0
  %903 = vmatpush1.bf16.msra.mxu0 0
  %904 = vmatprep.subr.bf16.mxu0 0
  %905 = vmatpush1.bf16.msra.mxu0 0
  %906 = vmatprep.subr.bf16.mxu0 0
  %907 = vmatpush1.bf16.msra.mxu0 0
  %908 = vmatprep.subr.bf16.mxu0 0
  %909 = vmatpush1.bf16.msra.mxu0 0
  %910 = vmatprep.subr.bf16.mxu0 0
  %911 = vmatpush1.bf16.msra.mxu0 0
  %912 = vmatprep.subr.bf16.mxu0 0
  %913 = vmatpush1.bf16.msra.mxu0 0
  %914 = vmatprep.subr.bf16.mxu0 0
  %915 = vmatpush1.bf16.msra.mxu0 0
  %916 = vmatprep.subr.bf16.mxu0 0
  %917 = vmatpush1.bf16.msra.mxu0 0
  %918 = vmatprep.mubr.bf16.mxu0 0
  %919 = vmatmul.mubr.bf16.gmra.mrb[0].mxu0 %v652
  %v920 = vpop.f32.mrb[0].mxu0
  %v921 = vadd.f32 0.0, %v920
  %v922 = vpop.f32.mrb[0].mxu0
  %v923 = vadd.f32 0.0, %v922
  %v924 = vpop.f32.mrb[0].mxu0
  %v925 = vpop.f32.mrb[0].mxu0
  %926 = vdwg.mxu0
  %v927 = vadd.f32 %v648, %v880
  %v928 = vadd.f32 %v649, %v882
  %v929 = vadd.f32 %v650, %v921
  %v930 = vadd.f32 %v651, %v923
  %v931 = vxor.u32 %v927, 2147483648
  %v932 = vmul.f32 %v931, 1.442695
  %v933 = vpow.pop %v932
  %v934 = vadd.f32 %v933, 1.0
  %v935 = vrcp.pop %v934
  %v936 = vmul.f32 1.0, %v935
  %v937 = vxor.u32 %v928, 2147483648
  %v938 = vmul.f32 %v937, 1.442695
  %v939 = vpow.pop %v938
  %v940 = vadd.f32 %v939, 1.0
  %v941 = vrcp.pop %v940
  %v942 = vmul.f32 1.0, %v941
  %v943 = vtanh.pop %v929
  %v944 = vxor.u32 %v930, 2147483648
  %v945 = vmul.f32 %v944, 1.442695
  %v946 = vpow.pop %v945
  %v947 = vadd.f32 %v946, 1.0
  %v948 = vrcp.pop %v947
  %v949 = vmul.f32 1.0, %v948
  %v950 = vmul.f32 %v942, %v640
  %v951 = vmul.f32 %v936, %v943
  %v952 = vadd.f32 %v950, %v951
  %v953 = vtanh.pop %v952
  %v954 = vmul.f32 %v949, %v953
  %s955 = scalar_lea.vmem %s2, 16
  %956 = vst [vmem:[%s955] sm:$0xff] %v954
  %s957 = scalar_lea.vmem %s0, 48
  %v958 = vld [vmem:[%s957] sm:$0xff]
  %v959 = vld [vmem:[%s957 + $0x8] sm:$0xff]
  %v960 = vunpack.c.l.bf16 %v958
  %v961 = vunpack.c.h.bf16 %v958
  %v962 = vunpack.c.l.bf16 %v959
  %v963 = vunpack.c.h.bf16 %v959
  %v964 = vpack.c.bf16 %v954, %v954
  %v965 = vld [vmem:[%s1] sm:$0xff]
  %v966 = vld [vmem:[%s1 + $0x8] sm:$0xff]
  %v967 = vld [vmem:[%s1 + $0x10] sm:$0xff]
  %v968 = vld [vmem:[%s1 + $0x18] sm:$0xff]
  %v969 = vld [vmem:[%s1 + $0x20] sm:$0xff]
  %v970 = vld [vmem:[%s1 + $0x28] sm:$0xff]
  %v971 = vld [vmem:[%s1 + $0x30] sm:$0xff]
  %v972 = vld [vmem:[%s1 + $0x38] sm:$0xff]
  %v973 = vld [vmem:[%s1 + $0x40] sm:$0xff]
  %v974 = vld [vmem:[%s1 + $0x48] sm:$0xff]
  %v975 = vld [vmem:[%s1 + $0x50] sm:$0xff]
  %v976 = vld [vmem:[%s1 + $0x58] sm:$0xff]
  %v977 = vld [vmem:[%s1 + $0x60] sm:$0xff]
  %v978 = vld [vmem:[%s1 + $0x68] sm:$0xff]
  %v979 = vld [vmem:[%s1 + $0x70] sm:$0xff]
  %v980 = vld [vmem:[%s1 + $0x78] sm:$0xff]
  %v981 = vld [vmem:[%s1 + $0x80] sm:$0xff]
  %v982 = vld [vmem:[%s1 + $0x88] sm:$0xff]
  %v983 = vld [vmem:[%s1 + $0x90] sm:$0xff]
  %v984 = vld [vmem:[%s1 + $0x98] sm:$0xff]
  %v985 = vld [vmem:[%s1 + $0xa0] sm:$0xff]
  %v986 = vld [vmem:[%s1 + $0xa8] sm:$0xff]
  %v987 = vld [vmem:[%s1 + $0xb0] sm:$0xff]
  %v988 = vld [vmem:[%s1 + $0xb8] sm:$0xff]
  %v989 = vld [vmem:[%s1 + $0xc0] sm:$0xff]
  %v990 = vld [vmem:[%s1 + $0xc8] sm:$0xff]
  %v991 = vld [vmem:[%s1 + $0xd0] sm:$0xff]
  %v992 = vld [vmem:[%s1 + $0xd8] sm:$0xff]
  %v993 = vld [vmem:[%s1 + $0xe0] sm:$0xff]
  %v994 = vld [vmem:[%s1 + $0xe8] sm:$0xff]
  %v995 = vld [vmem:[%s1 + $0xf0] sm:$0xff]
  %v996 = vld [vmem:[%s1 + $0xf8] sm:$0xff]
  %v1029 = vunpack.c.l.b16 %v965
  %v1030 = vunpack.c.h.b16 %v965
  %v1031 = vunpack.c.l.b16 %v966
  %v1032 = vunpack.c.h.b16 %v966
  %v1033 = vunpack.c.l.b16 %v967
  %v1034 = vunpack.c.h.b16 %v967
  %v1035 = vunpack.c.l.b16 %v968
  %v1036 = vunpack.c.h.b16 %v968
  %v1037 = vunpack.c.l.b16 %v969
  %v1038 = vunpack.c.h.b16 %v969
  %v1039 = vunpack.c.l.b16 %v970
  %v1040 = vunpack.c.h.b16 %v970
  %v1041 = vunpack.c.l.b16 %v971
  %v1042 = vunpack.c.h.b16 %v971
  %v1043 = vunpack.c.l.b16 %v972
  %v1044 = vunpack.c.h.b16 %v972
  %v1045 = vunpack.c.l.b16 %v973
  %v1046 = vunpack.c.h.b16 %v973
  %v1047 = vunpack.c.l.b16 %v974
  %v1048 = vunpack.c.h.b16 %v974
  %v1049 = vunpack.c.l.b16 %v975
  %v1050 = vunpack.c.h.b16 %v975
  %v1051 = vunpack.c.l.b16 %v976
  %v1052 = vunpack.c.h.b16 %v976
  %v1053 = vunpack.c.l.b16 %v977
  %v1054 = vunpack.c.h.b16 %v977
  %v1055 = vunpack.c.l.b16 %v978
  %v1056 = vunpack.c.h.b16 %v978
  %v1057 = vunpack.c.l.b16 %v979
  %v1058 = vunpack.c.h.b16 %v979
  %v1059 = vunpack.c.l.b16 %v980
  %v1060 = vunpack.c.h.b16 %v980
  %v1061 = vunpack.c.l.b16 %v981
  %v1062 = vunpack.c.h.b16 %v981
  %v1063 = vunpack.c.l.b16 %v982
  %v1064 = vunpack.c.h.b16 %v982
  %v1065 = vunpack.c.l.b16 %v983
  %v1066 = vunpack.c.h.b16 %v983
  %v1067 = vunpack.c.l.b16 %v984
  %v1068 = vunpack.c.h.b16 %v984
  %v1069 = vunpack.c.l.b16 %v985
  %v1070 = vunpack.c.h.b16 %v985
  %v1071 = vunpack.c.l.b16 %v986
  %v1072 = vunpack.c.h.b16 %v986
  %v1073 = vunpack.c.l.b16 %v987
  %v1074 = vunpack.c.h.b16 %v987
  %v1075 = vunpack.c.l.b16 %v988
  %v1076 = vunpack.c.h.b16 %v988
  %v1077 = vunpack.c.l.b16 %v989
  %v1078 = vunpack.c.h.b16 %v989
  %v1079 = vunpack.c.l.b16 %v990
  %v1080 = vunpack.c.h.b16 %v990
  %v1081 = vunpack.c.l.b16 %v991
  %v1082 = vunpack.c.h.b16 %v991
  %v1083 = vunpack.c.l.b16 %v992
  %v1084 = vunpack.c.h.b16 %v992
  %v1085 = vunpack.c.l.b16 %v993
  %v1086 = vunpack.c.h.b16 %v993
  %v1087 = vunpack.c.l.b16 %v994
  %v1088 = vunpack.c.h.b16 %v994
  %v1089 = vunpack.c.l.b16 %v995
  %v1090 = vunpack.c.h.b16 %v995
  %v1091 = vunpack.c.l.b16 %v996
  %v1092 = vunpack.c.h.b16 %v996
  %v1093 = vpack.c.b16 %v1033, %v1029
  %v1094 = vpack.c.b16 %v1034, %v1030
  %v1095 = vpack.c.b16 %v1035, %v1031
  %v1096 = vpack.c.b16 %v1036, %v1032
  %v1097 = vpack.c.b16 %v1041, %v1037
  %v1098 = vpack.c.b16 %v1042, %v1038
  %v1099 = vpack.c.b16 %v1043, %v1039
  %v1100 = vpack.c.b16 %v1044, %v1040
  %v1101 = vpack.c.b16 %v1049, %v1045
  %v1102 = vpack.c.b16 %v1050, %v1046
  %v1103 = vpack.c.b16 %v1051, %v1047
  %v1104 = vpack.c.b16 %v1052, %v1048
  %v1105 = vpack.c.b16 %v1057, %v1053
  %v1106 = vpack.c.b16 %v1058, %v1054
  %v1107 = vpack.c.b16 %v1059, %v1055
  %v1108 = vpack.c.b16 %v1060, %v1056
  %v1109 = vpack.c.b16 %v1065, %v1061
  %v1110 = vpack.c.b16 %v1066, %v1062
  %v1111 = vpack.c.b16 %v1067, %v1063
  %v1112 = vpack.c.b16 %v1068, %v1064
  %v1113 = vpack.c.b16 %v1073, %v1069
  %v1114 = vpack.c.b16 %v1074, %v1070
  %v1115 = vpack.c.b16 %v1075, %v1071
  %v1116 = vpack.c.b16 %v1076, %v1072
  %v1117 = vpack.c.b16 %v1081, %v1077
  %v1118 = vpack.c.b16 %v1082, %v1078
  %v1119 = vpack.c.b16 %v1083, %v1079
  %v1120 = vpack.c.b16 %v1084, %v1080
  %v1121 = vpack.c.b16 %v1089, %v1085
  %v1122 = vpack.c.b16 %v1090, %v1086
  %v1123 = vpack.c.b16 %v1091, %v1087
  %v1124 = vpack.c.b16 %v1092, %v1088
  %1157 = vmatprep.subr.bf16.mxu0 %v1094
  %1158 = vmatpush1.bf16.msra.mxu0 %v1093
  %1159 = vmatprep.subr.bf16.mxu0 %v1098
  %1160 = vmatpush1.bf16.msra.mxu0 %v1097
  %1161 = vmatprep.subr.bf16.mxu0 %v1102
  %1162 = vmatpush1.bf16.msra.mxu0 %v1101
  %1163 = vmatprep.subr.bf16.mxu0 %v1106
  %1164 = vmatpush1.bf16.msra.mxu0 %v1105
  %1165 = vmatprep.subr.bf16.mxu0 %v1110
  %1166 = vmatpush1.bf16.msra.mxu0 %v1109
  %1167 = vmatprep.subr.bf16.mxu0 %v1114
  %1168 = vmatpush1.bf16.msra.mxu0 %v1113
  %1169 = vmatprep.subr.bf16.mxu0 %v1118
  %1170 = vmatpush1.bf16.msra.mxu0 %v1117
  %1171 = vmatprep.subr.bf16.mxu0 %v1122
  %1172 = vmatpush1.bf16.msra.mxu0 %v1121
  %1173 = vmatprep.subr.bf16.mxu0 0
  %1174 = vmatpush1.bf16.msra.mxu0 0
  %1175 = vmatprep.subr.bf16.mxu0 0
  %1176 = vmatpush1.bf16.msra.mxu0 0
  %1177 = vmatprep.subr.bf16.mxu0 0
  %1178 = vmatpush1.bf16.msra.mxu0 0
  %1179 = vmatprep.subr.bf16.mxu0 0
  %1180 = vmatpush1.bf16.msra.mxu0 0
  %1181 = vmatprep.subr.bf16.mxu0 0
  %1182 = vmatpush1.bf16.msra.mxu0 0
  %1183 = vmatprep.subr.bf16.mxu0 0
  %1184 = vmatpush1.bf16.msra.mxu0 0
  %1185 = vmatprep.subr.bf16.mxu0 0
  %1186 = vmatpush1.bf16.msra.mxu0 0
  %1187 = vmatprep.subr.bf16.mxu0 0
  %1188 = vmatpush1.bf16.msra.mxu0 0
  %1189 = vmatprep.mubr.bf16.mxu0 0
  %1190 = vmatmul.mubr.bf16.gmra.mrb[0].mxu0 %v964
  %v1191 = vpop.f32.mrb[0].mxu0
  %v1192 = vadd.f32 0.0, %v1191
  %v1193 = vpop.f32.mrb[0].mxu0
  %v1194 = vadd.f32 0.0, %v1193
  %v1195 = vpop.f32.mrb[0].mxu0
  %v1196 = vpop.f32.mrb[0].mxu0
  %1197 = vdwg.mxu0
  %1198 = vmatprep.subr.bf16.mxu0 %v1096
  %1199 = vmatpush1.bf16.msra.mxu0 %v1095
  %1200 = vmatprep.subr.bf16.mxu0 %v1100
  %1201 = vmatpush1.bf16.msra.mxu0 %v1099
  %1202 = vmatprep.subr.bf16.mxu0 %v1104
  %1203 = vmatpush1.bf16.msra.mxu0 %v1103
  %1204 = vmatprep.subr.bf16.mxu0 %v1108
  %1205 = vmatpush1.bf16.msra.mxu0 %v1107
  %1206 = vmatprep.subr.bf16.mxu0 %v1112
  %1207 = vmatpush1.bf16.msra.mxu0 %v1111
  %1208 = vmatprep.subr.bf16.mxu0 %v1116
  %1209 = vmatpush1.bf16.msra.mxu0 %v1115
  %1210 = vmatprep.subr.bf16.mxu0 %v1120
  %1211 = vmatpush1.bf16.msra.mxu0 %v1119
  %1212 = vmatprep.subr.bf16.mxu0 %v1124
  %1213 = vmatpush1.bf16.msra.mxu0 %v1123
  %1214 = vmatprep.subr.bf16.mxu0 0
  %1215 = vmatpush1.bf16.msra.mxu0 0
  %1216 = vmatprep.subr.bf16.mxu0 0
  %1217 = vmatpush1.bf16.msra.mxu0 0
  %1218 = vmatprep.subr.bf16.mxu0 0
  %1219 = vmatpush1.bf16.msra.mxu0 0
  %1220 = vmatprep.subr.bf16.mxu0 0
  %1221 = vmatpush1.bf16.msra.mxu0 0
  %1222 = vmatprep.subr.bf16.mxu0 0
  %1223 = vmatpush1.bf16.msra.mxu0 0
  %1224 = vmatprep.subr.bf16.mxu0 0
  %1225 = vmatpush1.bf16.msra.mxu0 0
  %1226 = vmatprep.subr.bf16.mxu0 0
  %1227 = vmatpush1.bf16.msra.mxu0 0
  %1228 = vmatprep.subr.bf16.mxu0 0
  %1229 = vmatpush1.bf16.msra.mxu0 0
  %1230 = vmatprep.mubr.bf16.mxu0 0
  %1231 = vmatmul.mubr.bf16.gmra.mrb[0].mxu0 %v964
  %v1232 = vpop.f32.mrb[0].mxu0
  %v1233 = vadd.f32 0.0, %v1232
  %v1234 = vpop.f32.mrb[0].mxu0
  %v1235 = vadd.f32 0.0, %v1234
  %v1236 = vpop.f32.mrb[0].mxu0
  %v1237 = vpop.f32.mrb[0].mxu0
  %1238 = vdwg.mxu0
  %v1239 = vadd.f32 %v960, %v1192
  %v1240 = vadd.f32 %v961, %v1194
  %v1241 = vadd.f32 %v962, %v1233
  %v1242 = vadd.f32 %v963, %v1235
  %v1243 = vxor.u32 %v1239, 2147483648
  %v1244 = vmul.f32 %v1243, 1.442695
  %v1245 = vpow.pop %v1244
  %v1246 = vadd.f32 %v1245, 1.0
  %v1247 = vrcp.pop %v1246
  %v1248 = vmul.f32 1.0, %v1247
  %v1249 = vxor.u32 %v1240, 2147483648
  %v1250 = vmul.f32 %v1249, 1.442695
  %v1251 = vpow.pop %v1250
  %v1252 = vadd.f32 %v1251, 1.0
  %v1253 = vrcp.pop %v1252
  %v1254 = vmul.f32 1.0, %v1253
  %v1255 = vtanh.pop %v1241
  %v1256 = vxor.u32 %v1242, 2147483648
  %v1257 = vmul.f32 %v1256, 1.442695
  %v1258 = vpow.pop %v1257
  %v1259 = vadd.f32 %v1258, 1.0
  %v1260 = vrcp.pop %v1259
  %v1261 = vmul.f32 1.0, %v1260
  %v1262 = vmul.f32 %v1254, %v952
  %v1263 = vmul.f32 %v1248, %v1255
  %v1264 = vadd.f32 %v1262, %v1263
  %v1265 = vtanh.pop %v1264
  %v1266 = vmul.f32 %v1261, %v1265
  %s1267 = scalar_lea.vmem %s2, 24
  %1268 = vst [vmem:[%s1267] sm:$0xff] %v1266
  %s1269 = scalar_lea.vmem %s0, 64
  %v1270 = vld [vmem:[%s1269] sm:$0xff]
  %v1271 = vld [vmem:[%s1269 + $0x8] sm:$0xff]
  %v1272 = vunpack.c.l.bf16 %v1270
  %v1273 = vunpack.c.h.bf16 %v1270
  %v1274 = vunpack.c.l.bf16 %v1271
  %v1275 = vunpack.c.h.bf16 %v1271
  %v1276 = vpack.c.bf16 %v1266, %v1266
  %v1277 = vld [vmem:[%s1] sm:$0xff]
  %v1278 = vld [vmem:[%s1 + $0x8] sm:$0xff]
  %v1279 = vld [vmem:[%s1 + $0x10] sm:$0xff]
  %v1280 = vld [vmem:[%s1 + $0x18] sm:$0xff]
  %v1281 = vld [vmem:[%s1 + $0x20] sm:$0xff]
  %v1282 = vld [vmem:[%s1 + $0x28] sm:$0xff]
  %v1283 = vld [vmem:[%s1 + $0x30] sm:$0xff]
  %v1284 = vld [vmem:[%s1 + $0x38] sm:$0xff]
  %v1285 = vld [vmem:[%s1 + $0x40] sm:$0xff]
  %v1286 = vld [vmem:[%s1 + $0x48] sm:$0xff]
  %v1287 = vld [vmem:[%s1 + $0x50] sm:$0xff]
  %v1288 = vld [vmem:[%s1 + $0x58] sm:$0xff]
  %v1289 = vld [vmem:[%s1 + $0x60] sm:$0xff]
  %v1290 = vld [vmem:[%s1 + $0x68] sm:$0xff]
  %v1291 = vld [vmem:[%s1 + $0x70] sm:$0xff]
  %v1292 = vld [vmem:[%s1 + $0x78] sm:$0xff]
  %v1293 = vld [vmem:[%s1 + $0x80] sm:$0xff]
  %v1294 = vld [vmem:[%s1 + $0x88] sm:$0xff]
  %v1295 = vld [vmem:[%s1 + $0x90] sm:$0xff]
  %v1296 = vld [vmem:[%s1 + $0x98] sm:$0xff]
  %v1297 = vld [vmem:[%s1 + $0xa0] sm:$0xff]
  %v1298 = vld [vmem:[%s1 + $0xa8] sm:$0xff]
  %v1299 = vld [vmem:[%s1 + $0xb0] sm:$0xff]
  %v1300 = vld [vmem:[%s1 + $0xb8] sm:$0xff]
  %v1301 = vld [vmem:[%s1 + $0xc0] sm:$0xff]
  %v1302 = vld [vmem:[%s1 + $0xc8] sm:$0xff]
  %v1303 = vld [vmem:[%s1 + $0xd0] sm:$0xff]
  %v1304 = vld [vmem:[%s1 + $0xd8] sm:$0xff]
  %v1305 = vld [vmem:[%s1 + $0xe0] sm:$0xff]
  %v1306 = vld [vmem:[%s1 + $0xe8] sm:$0xff]
  %v1307 = vld [vmem:[%s1 + $0xf0] sm:$0xff]
  %v1308 = vld [vmem:[%s1 + $0xf8] sm:$0xff]
  %v1341 = vunpack.c.l.b16 %v1277
  %v1342 = vunpack.c.h.b16 %v1277
  %v1343 = vunpack.c.l.b16 %v1278
  %v1344 = vunpack.c.h.b16 %v1278
  %v1345 = vunpack.c.l.b16 %v1279
  %v1346 = vunpack.c.h.b16 %v1279
  %v1347 = vunpack.c.l.b16 %v1280
  %v1348 = vunpack.c.h.b16 %v1280
  %v1349 = vunpack.c.l.b16 %v1281
  %v1350 = vunpack.c.h.b16 %v1281
  %v1351 = vunpack.c.l.b16 %v1282
  %v1352 = vunpack.c.h.b16 %v1282
  %v1353 = vunpack.c.l.b16 %v1283
  %v1354 = vunpack.c.h.b16 %v1283
  %v1355 = vunpack.c.l.b16 %v1284
  %v1356 = vunpack.c.h.b16 %v1284
  %v1357 = vunpack.c.l.b16 %v1285
  %v1358 = vunpack.c.h.b16 %v1285
  %v1359 = vunpack.c.l.b16 %v1286
  %v1360 = vunpack.c.h.b16 %v1286
  %v1361 = vunpack.c.l.b16 %v1287
  %v1362 = vunpack.c.h.b16 %v1287
  %v1363 = vunpack.c.l.b16 %v1288
  %v1364 = vunpack.c.h.b16 %v1288
  %v1365 = vunpack.c.l.b16 %v1289
  %v1366 = vunpack.c.h.b16 %v1289
  %v1367 = vunpack.c.l.b16 %v1290
  %v1368 = vunpack.c.h.b16 %v1290
  %v1369 = vunpack.c.l.b16 %v1291
  %v1370 = vunpack.c.h.b16 %v1291
  %v1371 = vunpack.c.l.b16 %v1292
  %v1372 = vunpack.c.h.b16 %v1292
  %v1373 = vunpack.c.l.b16 %v1293
  %v1374 = vunpack.c.h.b16 %v1293
  %v1375 = vunpack.c.l.b16 %v1294
  %v1376 = vunpack.c.h.b16 %v1294
  %v1377 = vunpack.c.l.b16 %v1295
  %v1378 = vunpack.c.h.b16 %v1295
  %v1379 = vunpack.c.l.b16 %v1296
  %v1380 = vunpack.c.h.b16 %v1296
  %v1381 = vunpack.c.l.b16 %v1297
  %v1382 = vunpack.c.h.b16 %v1297
  %v1383 = vunpack.c.l.b16 %v1298
  %v1384 = vunpack.c.h.b16 %v1298
  %v1385 = vunpack.c.l.b16 %v1299
  %v1386 = vunpack.c.h.b16 %v1299
  %v1387 = vunpack.c.l.b16 %v1300
  %v1388 = vunpack.c.h.b16 %v1300
  %v1389 = vunpack.c.l.b16 %v1301
  %v1390 = vunpack.c.h.b16 %v1301
  %v1391 = vunpack.c.l.b16 %v1302
  %v1392 = vunpack.c.h.b16 %v1302
  %v1393 = vunpack.c.l.b16 %v1303
  %v1394 = vunpack.c.h.b16 %v1303
  %v1395 = vunpack.c.l.b16 %v1304
  %v1396 = vunpack.c.h.b16 %v1304
  %v1397 = vunpack.c.l.b16 %v1305
  %v1398 = vunpack.c.h.b16 %v1305
  %v1399 = vunpack.c.l.b16 %v1306
  %v1400 = vunpack.c.h.b16 %v1306
  %v1401 = vunpack.c.l.b16 %v1307
  %v1402 = vunpack.c.h.b16 %v1307
  %v1403 = vunpack.c.l.b16 %v1308
  %v1404 = vunpack.c.h.b16 %v1308
  %v1405 = vpack.c.b16 %v1345, %v1341
  %v1406 = vpack.c.b16 %v1346, %v1342
  %v1407 = vpack.c.b16 %v1347, %v1343
  %v1408 = vpack.c.b16 %v1348, %v1344
  %v1409 = vpack.c.b16 %v1353, %v1349
  %v1410 = vpack.c.b16 %v1354, %v1350
  %v1411 = vpack.c.b16 %v1355, %v1351
  %v1412 = vpack.c.b16 %v1356, %v1352
  %v1413 = vpack.c.b16 %v1361, %v1357
  %v1414 = vpack.c.b16 %v1362, %v1358
  %v1415 = vpack.c.b16 %v1363, %v1359
  %v1416 = vpack.c.b16 %v1364, %v1360
  %v1417 = vpack.c.b16 %v1369, %v1365
  %v1418 = vpack.c.b16 %v1370, %v1366
  %v1419 = vpack.c.b16 %v1371, %v1367
  %v1420 = vpack.c.b16 %v1372, %v1368
  %v1421 = vpack.c.b16 %v1377, %v1373
  %v1422 = vpack.c.b16 %v1378, %v1374
  %v1423 = vpack.c.b16 %v1379, %v1375
  %v1424 = vpack.c.b16 %v1380, %v1376
  %v1425 = vpack.c.b16 %v1385, %v1381
  %v1426 = vpack.c.b16 %v1386, %v1382
  %v1427 = vpack.c.b16 %v1387, %v1383
  %v1428 = vpack.c.b16 %v1388, %v1384
  %v1429 = vpack.c.b16 %v1393, %v1389
  %v1430 = vpack.c.b16 %v1394, %v1390
  %v1431 = vpack.c.b16 %v1395, %v1391
  %v1432 = vpack.c.b16 %v1396, %v1392
  %v1433 = vpack.c.b16 %v1401, %v1397
  %v1434 = vpack.c.b16 %v1402, %v1398
  %v1435 = vpack.c.b16 %v1403, %v1399
  %v1436 = vpack.c.b16 %v1404, %v1400
  %1469 = vmatprep.subr.bf16.mxu0 %v1406
  %1470 = vmatpush1.bf16.msra.mxu0 %v1405
  %1471 = vmatprep.subr.bf16.mxu0 %v1410
  %1472 = vmatpush1.bf16.msra.mxu0 %v1409
  %1473 = vmatprep.subr.bf16.mxu0 %v1414
  %1474 = vmatpush1.bf16.msra.mxu0 %v1413
  %1475 = vmatprep.subr.bf16.mxu0 %v1418
  %1476 = vmatpush1.bf16.msra.mxu0 %v1417
  %1477 = vmatprep.subr.bf16.mxu0 %v1422
  %1478 = vmatpush1.bf16.msra.mxu0 %v1421
  %1479 = vmatprep.subr.bf16.mxu0 %v1426
  %1480 = vmatpush1.bf16.msra.mxu0 %v1425
  %1481 = vmatprep.subr.bf16.mxu0 %v1430
  %1482 = vmatpush1.bf16.msra.mxu0 %v1429
  %1483 = vmatprep.subr.bf16.mxu0 %v1434
  %1484 = vmatpush1.bf16.msra.mxu0 %v1433
  %1485 = vmatprep.subr.bf16.mxu0 0
  %1486 = vmatpush1.bf16.msra.mxu0 0
  %1487 = vmatprep.subr.bf16.mxu0 0
  %1488 = vmatpush1.bf16.msra.mxu0 0
  %1489 = vmatprep.subr.bf16.mxu0 0
  %1490 = vmatpush1.bf16.msra.mxu0 0
  %1491 = vmatprep.subr.bf16.mxu0 0
  %1492 = vmatpush1.bf16.msra.mxu0 0
  %1493 = vmatprep.subr.bf16.mxu0 0
  %1494 = vmatpush1.bf16.msra.mxu0 0
  %1495 = vmatprep.subr.bf16.mxu0 0
  %1496 = vmatpush1.bf16.msra.mxu0 0
  %1497 = vmatprep.subr.bf16.mxu0 0
  %1498 = vmatpush1.bf16.msra.mxu0 0
  %1499 = vmatprep.subr.bf16.mxu0 0
  %1500 = vmatpush1.bf16.msra.mxu0 0
  %1501 = vmatprep.mubr.bf16.mxu0 0
  %1502 = vmatmul.mubr.bf16.gmra.mrb[0].mxu0 %v1276
  %v1503 = vpop.f32.mrb[0].mxu0
  %v1504 = vadd.f32 0.0, %v1503
  %v1505 = vpop.f32.mrb[0].mxu0
  %v1506 = vadd.f32 0.0, %v1505
  %v1507 = vpop.f32.mrb[0].mxu0
  %v1508 = vpop.f32.mrb[0].mxu0
  %1509 = vdwg.mxu0
  %1510 = vmatprep.subr.bf16.mxu0 %v1408
  %1511 = vmatpush1.bf16.msra.mxu0 %v1407
  %1512 = vmatprep.subr.bf16.mxu0 %v1412
  %1513 = vmatpush1.bf16.msra.mxu0 %v1411
  %1514 = vmatprep.subr.bf16.mxu0 %v1416
  %1515 = vmatpush1.bf16.msra.mxu0 %v1415
  %1516 = vmatprep.subr.bf16.mxu0 %v1420
  %1517 = vmatpush1.bf16.msra.mxu0 %v1419
  %1518 = vmatprep.subr.bf16.mxu0 %v1424
  %1519 = vmatpush1.bf16.msra.mxu0 %v1423
  %1520 = vmatprep.subr.bf16.mxu0 %v1428
  %1521 = vmatpush1.bf16.msra.mxu0 %v1427
  %1522 = vmatprep.subr.bf16.mxu0 %v1432
  %1523 = vmatpush1.bf16.msra.mxu0 %v1431
  %1524 = vmatprep.subr.bf16.mxu0 %v1436
  %1525 = vmatpush1.bf16.msra.mxu0 %v1435
  %1526 = vmatprep.subr.bf16.mxu0 0
  %1527 = vmatpush1.bf16.msra.mxu0 0
  %1528 = vmatprep.subr.bf16.mxu0 0
  %1529 = vmatpush1.bf16.msra.mxu0 0
  %1530 = vmatprep.subr.bf16.mxu0 0
  %1531 = vmatpush1.bf16.msra.mxu0 0
  %1532 = vmatprep.subr.bf16.mxu0 0
  %1533 = vmatpush1.bf16.msra.mxu0 0
  %1534 = vmatprep.subr.bf16.mxu0 0
  %1535 = vmatpush1.bf16.msra.mxu0 0
  %1536 = vmatprep.subr.bf16.mxu0 0
  %1537 = vmatpush1.bf16.msra.mxu0 0
  %1538 = vmatprep.subr.bf16.mxu0 0
  %1539 = vmatpush1.bf16.msra.mxu0 0
  %1540 = vmatprep.subr.bf16.mxu0 0
  %1541 = vmatpush1.bf16.msra.mxu0 0
  %1542 = vmatprep.mubr.bf16.mxu0 0
  %1543 = vmatmul.mubr.bf16.gmra.mrb[0].mxu0 %v1276
  %v1544 = vpop.f32.mrb[0].mxu0
  %v1545 = vadd.f32 0.0, %v1544
  %v1546 = vpop.f32.mrb[0].mxu0
  %v1547 = vadd.f32 0.0, %v1546
  %v1548 = vpop.f32.mrb[0].mxu0
  %v1549 = vpop.f32.mrb[0].mxu0
  %1550 = vdwg.mxu0
  %v1551 = vadd.f32 %v1272, %v1504
  %v1552 = vadd.f32 %v1273, %v1506
  %v1553 = vadd.f32 %v1274, %v1545
  %v1554 = vadd.f32 %v1275, %v1547
  %v1555 = vxor.u32 %v1551, 2147483648
  %v1556 = vmul.f32 %v1555, 1.442695
  %v1557 = vpow.pop %v1556
  %v1558 = vadd.f32 %v1557, 1.0
  %v1559 = vrcp.pop %v1558
  %v1560 = vmul.f32 1.0, %v1559
  %v1561 = vxor.u32 %v1552, 2147483648
  %v1562 = vmul.f32 %v1561, 1.442695
  %v1563 = vpow.pop %v1562
  %v1564 = vadd.f32 %v1563, 1.0
  %v1565 = vrcp.pop %v1564
  %v1566 = vmul.f32 1.0, %v1565
  %v1567 = vtanh.pop %v1553
  %v1568 = vxor.u32 %v1554, 2147483648
  %v1569 = vmul.f32 %v1568, 1.442695
  %v1570 = vpow.pop %v1569
  %v1571 = vadd.f32 %v1570, 1.0
  %v1572 = vrcp.pop %v1571
  %v1573 = vmul.f32 1.0, %v1572
  %v1574 = vmul.f32 %v1566, %v1264
  %v1575 = vmul.f32 %v1560, %v1567
  %v1576 = vadd.f32 %v1574, %v1575
  %v1577 = vtanh.pop %v1576
  %v1578 = vmul.f32 %v1573, %v1577
  %s1579 = scalar_lea.vmem %s2, 32
  %1580 = vst [vmem:[%s1579] sm:$0xff] %v1578
  %s1581 = scalar_lea.vmem %s0, 80
  %v1582 = vld [vmem:[%s1581] sm:$0xff]
  %v1583 = vld [vmem:[%s1581 + $0x8] sm:$0xff]
  %v1584 = vunpack.c.l.bf16 %v1582
  %v1585 = vunpack.c.h.bf16 %v1582
  %v1586 = vunpack.c.l.bf16 %v1583
  %v1587 = vunpack.c.h.bf16 %v1583
  %v1588 = vpack.c.bf16 %v1578, %v1578
  %v1589 = vld [vmem:[%s1] sm:$0xff]
  %v1590 = vld [vmem:[%s1 + $0x8] sm:$0xff]
  %v1591 = vld [vmem:[%s1 + $0x10] sm:$0xff]
  %v1592 = vld [vmem:[%s1 + $0x18] sm:$0xff]
  %v1593 = vld [vmem:[%s1 + $0x20] sm:$0xff]
  %v1594 = vld [vmem:[%s1 + $0x28] sm:$0xff]
  %v1595 = vld [vmem:[%s1 + $0x30] sm:$0xff]
  %v1596 = vld [vmem:[%s1 + $0x38] sm:$0xff]
  %v1597 = vld [vmem:[%s1 + $0x40] sm:$0xff]
  %v1598 = vld [vmem:[%s1 + $0x48] sm:$0xff]
  %v1599 = vld [vmem:[%s1 + $0x50] sm:$0xff]
  %v1600 = vld [vmem:[%s1 + $0x58] sm:$0xff]
  %v1601 = vld [vmem:[%s1 + $0x60] sm:$0xff]
  %v1602 = vld [vmem:[%s1 + $0x68] sm:$0xff]
  %v1603 = vld [vmem:[%s1 + $0x70] sm:$0xff]
  %v1604 = vld [vmem:[%s1 + $0x78] sm:$0xff]
  %v1605 = vld [vmem:[%s1 + $0x80] sm:$0xff]
  %v1606 = vld [vmem:[%s1 + $0x88] sm:$0xff]
  %v1607 = vld [vmem:[%s1 + $0x90] sm:$0xff]
  %v1608 = vld [vmem:[%s1 + $0x98] sm:$0xff]
  %v1609 = vld [vmem:[%s1 + $0xa0] sm:$0xff]
  %v1610 = vld [vmem:[%s1 + $0xa8] sm:$0xff]
  %v1611 = vld [vmem:[%s1 + $0xb0] sm:$0xff]
  %v1612 = vld [vmem:[%s1 + $0xb8] sm:$0xff]
  %v1613 = vld [vmem:[%s1 + $0xc0] sm:$0xff]
  %v1614 = vld [vmem:[%s1 + $0xc8] sm:$0xff]
  %v1615 = vld [vmem:[%s1 + $0xd0] sm:$0xff]
  %v1616 = vld [vmem:[%s1 + $0xd8] sm:$0xff]
  %v1617 = vld [vmem:[%s1 + $0xe0] sm:$0xff]
  %v1618 = vld [vmem:[%s1 + $0xe8] sm:$0xff]
  %v1619 = vld [vmem:[%s1 + $0xf0] sm:$0xff]
  %v1620 = vld [vmem:[%s1 + $0xf8] sm:$0xff]
  %v1653 = vunpack.c.l.b16 %v1589
  %v1654 = vunpack.c.h.b16 %v1589
  %v1655 = vunpack.c.l.b16 %v1590
  %v1656 = vunpack.c.h.b16 %v1590
  %v1657 = vunpack.c.l.b16 %v1591
  %v1658 = vunpack.c.h.b16 %v1591
  %v1659 = vunpack.c.l.b16 %v1592
  %v1660 = vunpack.c.h.b16 %v1592
  %v1661 = vunpack.c.l.b16 %v1593
  %v1662 = vunpack.c.h.b16 %v1593
  %v1663 = vunpack.c.l.b16 %v1594
  %v1664 = vunpack.c.h.b16 %v1594
  %v1665 = vunpack.c.l.b16 %v1595
  %v1666 = vunpack.c.h.b16 %v1595
  %v1667 = vunpack.c.l.b16 %v1596
  %v1668 = vunpack.c.h.b16 %v1596
  %v1669 = vunpack.c.l.b16 %v1597
  %v1670 = vunpack.c.h.b16 %v1597
  %v1671 = vunpack.c.l.b16 %v1598
  %v1672 = vunpack.c.h.b16 %v1598
  %v1673 = vunpack.c.l.b16 %v1599
  %v1674 = vunpack.c.h.b16 %v1599
  %v1675 = vunpack.c.l.b16 %v1600
  %v1676 = vunpack.c.h.b16 %v1600
  %v1677 = vunpack.c.l.b16 %v1601
  %v1678 = vunpack.c.h.b16 %v1601
  %v1679 = vunpack.c.l.b16 %v1602
  %v1680 = vunpack.c.h.b16 %v1602
  %v1681 = vunpack.c.l.b16 %v1603
  %v1682 = vunpack.c.h.b16 %v1603
  %v1683 = vunpack.c.l.b16 %v1604
  %v1684 = vunpack.c.h.b16 %v1604
  %v1685 = vunpack.c.l.b16 %v1605
  %v1686 = vunpack.c.h.b16 %v1605
  %v1687 = vunpack.c.l.b16 %v1606
  %v1688 = vunpack.c.h.b16 %v1606
  %v1689 = vunpack.c.l.b16 %v1607
  %v1690 = vunpack.c.h.b16 %v1607
  %v1691 = vunpack.c.l.b16 %v1608
  %v1692 = vunpack.c.h.b16 %v1608
  %v1693 = vunpack.c.l.b16 %v1609
  %v1694 = vunpack.c.h.b16 %v1609
  %v1695 = vunpack.c.l.b16 %v1610
  %v1696 = vunpack.c.h.b16 %v1610
  %v1697 = vunpack.c.l.b16 %v1611
  %v1698 = vunpack.c.h.b16 %v1611
  %v1699 = vunpack.c.l.b16 %v1612
  %v1700 = vunpack.c.h.b16 %v1612
  %v1701 = vunpack.c.l.b16 %v1613
  %v1702 = vunpack.c.h.b16 %v1613
  %v1703 = vunpack.c.l.b16 %v1614
  %v1704 = vunpack.c.h.b16 %v1614
  %v1705 = vunpack.c.l.b16 %v1615
  %v1706 = vunpack.c.h.b16 %v1615
  %v1707 = vunpack.c.l.b16 %v1616
  %v1708 = vunpack.c.h.b16 %v1616
  %v1709 = vunpack.c.l.b16 %v1617
  %v1710 = vunpack.c.h.b16 %v1617
  %v1711 = vunpack.c.l.b16 %v1618
  %v1712 = vunpack.c.h.b16 %v1618
  %v1713 = vunpack.c.l.b16 %v1619
  %v1714 = vunpack.c.h.b16 %v1619
  %v1715 = vunpack.c.l.b16 %v1620
  %v1716 = vunpack.c.h.b16 %v1620
  %v1717 = vpack.c.b16 %v1657, %v1653
  %v1718 = vpack.c.b16 %v1658, %v1654
  %v1719 = vpack.c.b16 %v1659, %v1655
  %v1720 = vpack.c.b16 %v1660, %v1656
  %v1721 = vpack.c.b16 %v1665, %v1661
  %v1722 = vpack.c.b16 %v1666, %v1662
  %v1723 = vpack.c.b16 %v1667, %v1663
  %v1724 = vpack.c.b16 %v1668, %v1664
  %v1725 = vpack.c.b16 %v1673, %v1669
  %v1726 = vpack.c.b16 %v1674, %v1670
  %v1727 = vpack.c.b16 %v1675, %v1671
  %v1728 = vpack.c.b16 %v1676, %v1672
  %v1729 = vpack.c.b16 %v1681, %v1677
  %v1730 = vpack.c.b16 %v1682, %v1678
  %v1731 = vpack.c.b16 %v1683, %v1679
  %v1732 = vpack.c.b16 %v1684, %v1680
  %v1733 = vpack.c.b16 %v1689, %v1685
  %v1734 = vpack.c.b16 %v1690, %v1686
  %v1735 = vpack.c.b16 %v1691, %v1687
  %v1736 = vpack.c.b16 %v1692, %v1688
  %v1737 = vpack.c.b16 %v1697, %v1693
  %v1738 = vpack.c.b16 %v1698, %v1694
  %v1739 = vpack.c.b16 %v1699, %v1695
  %v1740 = vpack.c.b16 %v1700, %v1696
  %v1741 = vpack.c.b16 %v1705, %v1701
  %v1742 = vpack.c.b16 %v1706, %v1702
  %v1743 = vpack.c.b16 %v1707, %v1703
  %v1744 = vpack.c.b16 %v1708, %v1704
  %v1745 = vpack.c.b16 %v1713, %v1709
  %v1746 = vpack.c.b16 %v1714, %v1710
  %v1747 = vpack.c.b16 %v1715, %v1711
  %v1748 = vpack.c.b16 %v1716, %v1712
  %1781 = vmatprep.subr.bf16.mxu0 %v1718
  %1782 = vmatpush1.bf16.msra.mxu0 %v1717
  %1783 = vmatprep.subr.bf16.mxu0 %v1722
  %1784 = vmatpush1.bf16.msra.mxu0 %v1721
  %1785 = vmatprep.subr.bf16.mxu0 %v1726
  %1786 = vmatpush1.bf16.msra.mxu0 %v1725
  %1787 = vmatprep.subr.bf16.mxu0 %v1730
  %1788 = vmatpush1.bf16.msra.mxu0 %v1729
  %1789 = vmatprep.subr.bf16.mxu0 %v1734
  %1790 = vmatpush1.bf16.msra.mxu0 %v1733
  %1791 = vmatprep.subr.bf16.mxu0 %v1738
  %1792 = vmatpush1.bf16.msra.mxu0 %v1737
  %1793 = vmatprep.subr.bf16.mxu0 %v1742
  %1794 = vmatpush1.bf16.msra.mxu0 %v1741
  %1795 = vmatprep.subr.bf16.mxu0 %v1746
  %1796 = vmatpush1.bf16.msra.mxu0 %v1745
  %1797 = vmatprep.subr.bf16.mxu0 0
  %1798 = vmatpush1.bf16.msra.mxu0 0
  %1799 = vmatprep.subr.bf16.mxu0 0
  %1800 = vmatpush1.bf16.msra.mxu0 0
  %1801 = vmatprep.subr.bf16.mxu0 0
  %1802 = vmatpush1.bf16.msra.mxu0 0
  %1803 = vmatprep.subr.bf16.mxu0 0
  %1804 = vmatpush1.bf16.msra.mxu0 0
  %1805 = vmatprep.subr.bf16.mxu0 0
  %1806 = vmatpush1.bf16.msra.mxu0 0
  %1807 = vmatprep.subr.bf16.mxu0 0
  %1808 = vmatpush1.bf16.msra.mxu0 0
  %1809 = vmatprep.subr.bf16.mxu0 0
  %1810 = vmatpush1.bf16.msra.mxu0 0
  %1811 = vmatprep.subr.bf16.mxu0 0
  %1812 = vmatpush1.bf16.msra.mxu0 0
  %1813 = vmatprep.mubr.bf16.mxu0 0
  %1814 = vmatmul.mubr.bf16.gmra.mrb[0].mxu0 %v1588
  %v1815 = vpop.f32.mrb[0].mxu0
  %v1816 = vadd.f32 0.0, %v1815
  %v1817 = vpop.f32.mrb[0].mxu0
  %v1818 = vadd.f32 0.0, %v1817
  %v1819 = vpop.f32.mrb[0].mxu0
  %v1820 = vpop.f32.mrb[0].mxu0
  %1821 = vdwg.mxu0
  %1822 = vmatprep.subr.bf16.mxu0 %v1720
  %1823 = vmatpush1.bf16.msra.mxu0 %v1719
  %1824 = vmatprep.subr.bf16.mxu0 %v1724
  %1825 = vmatpush1.bf16.msra.mxu0 %v1723
  %1826 = vmatprep.subr.bf16.mxu0 %v1728
  %1827 = vmatpush1.bf16.msra.mxu0 %v1727
  %1828 = vmatprep.subr.bf16.mxu0 %v1732
  %1829 = vmatpush1.bf16.msra.mxu0 %v1731
  %1830 = vmatprep.subr.bf16.mxu0 %v1736
  %1831 = vmatpush1.bf16.msra.mxu0 %v1735
  %1832 = vmatprep.subr.bf16.mxu0 %v1740
  %1833 = vmatpush1.bf16.msra.mxu0 %v1739
  %1834 = vmatprep.subr.bf16.mxu0 %v1744
  %1835 = vmatpush1.bf16.msra.mxu0 %v1743
  %1836 = vmatprep.subr.bf16.mxu0 %v1748
  %1837 = vmatpush1.bf16.msra.mxu0 %v1747
  %1838 = vmatprep.subr.bf16.mxu0 0
  %1839 = vmatpush1.bf16.msra.mxu0 0
  %1840 = vmatprep.subr.bf16.mxu0 0
  %1841 = vmatpush1.bf16.msra.mxu0 0
  %1842 = vmatprep.subr.bf16.mxu0 0
  %1843 = vmatpush1.bf16.msra.mxu0 0
  %1844 = vmatprep.subr.bf16.mxu0 0
  %1845 = vmatpush1.bf16.msra.mxu0 0
  %1846 = vmatprep.subr.bf16.mxu0 0
  %1847 = vmatpush1.bf16.msra.mxu0 0
  %1848 = vmatprep.subr.bf16.mxu0 0
  %1849 = vmatpush1.bf16.msra.mxu0 0
  %1850 = vmatprep.subr.bf16.mxu0 0
  %1851 = vmatpush1.bf16.msra.mxu0 0
  %1852 = vmatprep.subr.bf16.mxu0 0
  %1853 = vmatpush1.bf16.msra.mxu0 0
  %1854 = vmatprep.mubr.bf16.mxu0 0
  %1855 = vmatmul.mubr.bf16.gmra.mrb[0].mxu0 %v1588
  %v1856 = vpop.f32.mrb[0].mxu0
  %v1857 = vadd.f32 0.0, %v1856
  %v1858 = vpop.f32.mrb[0].mxu0
  %v1859 = vadd.f32 0.0, %v1858
  %v1860 = vpop.f32.mrb[0].mxu0
  %v1861 = vpop.f32.mrb[0].mxu0
  %1862 = vdwg.mxu0
  %v1863 = vadd.f32 %v1584, %v1816
  %v1864 = vadd.f32 %v1585, %v1818
  %v1865 = vadd.f32 %v1586, %v1857
  %v1866 = vadd.f32 %v1587, %v1859
  %v1867 = vxor.u32 %v1863, 2147483648
  %v1868 = vmul.f32 %v1867, 1.442695
  %v1869 = vpow.pop %v1868
  %v1870 = vadd.f32 %v1869, 1.0
  %v1871 = vrcp.pop %v1870
  %v1872 = vmul.f32 1.0, %v1871
  %v1873 = vxor.u32 %v1864, 2147483648
  %v1874 = vmul.f32 %v1873, 1.442695
  %v1875 = vpow.pop %v1874
  %v1876 = vadd.f32 %v1875, 1.0
  %v1877 = vrcp.pop %v1876
  %v1878 = vmul.f32 1.0, %v1877
  %v1879 = vtanh.pop %v1865
  %v1880 = vxor.u32 %v1866, 2147483648
  %v1881 = vmul.f32 %v1880, 1.442695
  %v1882 = vpow.pop %v1881
  %v1883 = vadd.f32 %v1882, 1.0
  %v1884 = vrcp.pop %v1883
  %v1885 = vmul.f32 1.0, %v1884
  %v1886 = vmul.f32 %v1878, %v1576
  %v1887 = vmul.f32 %v1872, %v1879
  %v1888 = vadd.f32 %v1886, %v1887
  %v1889 = vtanh.pop %v1888
  %v1890 = vmul.f32 %v1885, %v1889
  %s1891 = scalar_lea.vmem %s2, 40
  %1892 = vst [vmem:[%s1891] sm:$0xff] %v1890
  %s1893 = scalar_lea.vmem %s0, 96
  %v1894 = vld [vmem:[%s1893] sm:$0xff]
  %v1895 = vld [vmem:[%s1893 + $0x8] sm:$0xff]
  %v1896 = vunpack.c.l.bf16 %v1894
  %v1897 = vunpack.c.h.bf16 %v1894
  %v1898 = vunpack.c.l.bf16 %v1895
  %v1899 = vunpack.c.h.bf16 %v1895
  %v1900 = vpack.c.bf16 %v1890, %v1890
  %v1901 = vld [vmem:[%s1] sm:$0xff]
  %v1902 = vld [vmem:[%s1 + $0x8] sm:$0xff]
  %v1903 = vld [vmem:[%s1 + $0x10] sm:$0xff]
  %v1904 = vld [vmem:[%s1 + $0x18] sm:$0xff]
  %v1905 = vld [vmem:[%s1 + $0x20] sm:$0xff]
  %v1906 = vld [vmem:[%s1 + $0x28] sm:$0xff]
  %v1907 = vld [vmem:[%s1 + $0x30] sm:$0xff]
  %v1908 = vld [vmem:[%s1 + $0x38] sm:$0xff]
  %v1909 = vld [vmem:[%s1 + $0x40] sm:$0xff]
  %v1910 = vld [vmem:[%s1 + $0x48] sm:$0xff]
  %v1911 = vld [vmem:[%s1 + $0x50] sm:$0xff]
  %v1912 = vld [vmem:[%s1 + $0x58] sm:$0xff]
  %v1913 = vld [vmem:[%s1 + $0x60] sm:$0xff]
  %v1914 = vld [vmem:[%s1 + $0x68] sm:$0xff]
  %v1915 = vld [vmem:[%s1 + $0x70] sm:$0xff]
  %v1916 = vld [vmem:[%s1 + $0x78] sm:$0xff]
  %v1917 = vld [vmem:[%s1 + $0x80] sm:$0xff]
  %v1918 = vld [vmem:[%s1 + $0x88] sm:$0xff]
  %v1919 = vld [vmem:[%s1 + $0x90] sm:$0xff]
  %v1920 = vld [vmem:[%s1 + $0x98] sm:$0xff]
  %v1921 = vld [vmem:[%s1 + $0xa0] sm:$0xff]
  %v1922 = vld [vmem:[%s1 + $0xa8] sm:$0xff]
  %v1923 = vld [vmem:[%s1 + $0xb0] sm:$0xff]
  %v1924 = vld [vmem:[%s1 + $0xb8] sm:$0xff]
  %v1925 = vld [vmem:[%s1 + $0xc0] sm:$0xff]
  %v1926 = vld [vmem:[%s1 + $0xc8] sm:$0xff]
  %v1927 = vld [vmem:[%s1 + $0xd0] sm:$0xff]
  %v1928 = vld [vmem:[%s1 + $0xd8] sm:$0xff]
  %v1929 = vld [vmem:[%s1 + $0xe0] sm:$0xff]
  %v1930 = vld [vmem:[%s1 + $0xe8] sm:$0xff]
  %v1931 = vld [vmem:[%s1 + $0xf0] sm:$0xff]
  %v1932 = vld [vmem:[%s1 + $0xf8] sm:$0xff]
  %v1965 = vunpack.c.l.b16 %v1901
  %v1966 = vunpack.c.h.b16 %v1901
  %v1967 = vunpack.c.l.b16 %v1902
  %v1968 = vunpack.c.h.b16 %v1902
  %v1969 = vunpack.c.l.b16 %v1903
  %v1970 = vunpack.c.h.b16 %v1903
  %v1971 = vunpack.c.l.b16 %v1904
  %v1972 = vunpack.c.h.b16 %v1904
  %v1973 = vunpack.c.l.b16 %v1905
  %v1974 = vunpack.c.h.b16 %v1905
  %v1975 = vunpack.c.l.b16 %v1906
  %v1976 = vunpack.c.h.b16 %v1906
  %v1977 = vunpack.c.l.b16 %v1907
  %v1978 = vunpack.c.h.b16 %v1907
  %v1979 = vunpack.c.l.b16 %v1908
  %v1980 = vunpack.c.h.b16 %v1908
  %v1981 = vunpack.c.l.b16 %v1909
  %v1982 = vunpack.c.h.b16 %v1909
  %v1983 = vunpack.c.l.b16 %v1910
  %v1984 = vunpack.c.h.b16 %v1910
  %v1985 = vunpack.c.l.b16 %v1911
  %v1986 = vunpack.c.h.b16 %v1911
  %v1987 = vunpack.c.l.b16 %v1912
  %v1988 = vunpack.c.h.b16 %v1912
  %v1989 = vunpack.c.l.b16 %v1913
  %v1990 = vunpack.c.h.b16 %v1913
  %v1991 = vunpack.c.l.b16 %v1914
  %v1992 = vunpack.c.h.b16 %v1914
  %v1993 = vunpack.c.l.b16 %v1915
  %v1994 = vunpack.c.h.b16 %v1915
  %v1995 = vunpack.c.l.b16 %v1916
  %v1996 = vunpack.c.h.b16 %v1916
  %v1997 = vunpack.c.l.b16 %v1917
  %v1998 = vunpack.c.h.b16 %v1917
  %v1999 = vunpack.c.l.b16 %v1918
  %v2000 = vunpack.c.h.b16 %v1918
  %v2001 = vunpack.c.l.b16 %v1919
  %v2002 = vunpack.c.h.b16 %v1919
  %v2003 = vunpack.c.l.b16 %v1920
  %v2004 = vunpack.c.h.b16 %v1920
  %v2005 = vunpack.c.l.b16 %v1921
  %v2006 = vunpack.c.h.b16 %v1921
  %v2007 = vunpack.c.l.b16 %v1922
  %v2008 = vunpack.c.h.b16 %v1922
  %v2009 = vunpack.c.l.b16 %v1923
  %v2010 = vunpack.c.h.b16 %v1923
  %v2011 = vunpack.c.l.b16 %v1924
  %v2012 = vunpack.c.h.b16 %v1924
  %v2013 = vunpack.c.l.b16 %v1925
  %v2014 = vunpack.c.h.b16 %v1925
  %v2015 = vunpack.c.l.b16 %v1926
  %v2016 = vunpack.c.h.b16 %v1926
  %v2017 = vunpack.c.l.b16 %v1927
  %v2018 = vunpack.c.h.b16 %v1927
  %v2019 = vunpack.c.l.b16 %v1928
  %v2020 = vunpack.c.h.b16 %v1928
  %v2021 = vunpack.c.l.b16 %v1929
  %v2022 = vunpack.c.h.b16 %v1929
  %v2023 = vunpack.c.l.b16 %v1930
  %v2024 = vunpack.c.h.b16 %v1930
  %v2025 = vunpack.c.l.b16 %v1931
  %v2026 = vunpack.c.h.b16 %v1931
  %v2027 = vunpack.c.l.b16 %v1932
  %v2028 = vunpack.c.h.b16 %v1932
  %v2029 = vpack.c.b16 %v1969, %v1965
  %v2030 = vpack.c.b16 %v1970, %v1966
  %v2031 = vpack.c.b16 %v1971, %v1967
  %v2032 = vpack.c.b16 %v1972, %v1968
  %v2033 = vpack.c.b16 %v1977, %v1973
  %v2034 = vpack.c.b16 %v1978, %v1974
  %v2035 = vpack.c.b16 %v1979, %v1975
  %v2036 = vpack.c.b16 %v1980, %v1976
  %v2037 = vpack.c.b16 %v1985, %v1981
  %v2038 = vpack.c.b16 %v1986, %v1982
  %v2039 = vpack.c.b16 %v1987, %v1983
  %v2040 = vpack.c.b16 %v1988, %v1984
  %v2041 = vpack.c.b16 %v1993, %v1989
  %v2042 = vpack.c.b16 %v1994, %v1990
  %v2043 = vpack.c.b16 %v1995, %v1991
  %v2044 = vpack.c.b16 %v1996, %v1992
  %v2045 = vpack.c.b16 %v2001, %v1997
  %v2046 = vpack.c.b16 %v2002, %v1998
  %v2047 = vpack.c.b16 %v2003, %v1999
  %v2048 = vpack.c.b16 %v2004, %v2000
  %v2049 = vpack.c.b16 %v2009, %v2005
  %v2050 = vpack.c.b16 %v2010, %v2006
  %v2051 = vpack.c.b16 %v2011, %v2007
  %v2052 = vpack.c.b16 %v2012, %v2008
  %v2053 = vpack.c.b16 %v2017, %v2013
  %v2054 = vpack.c.b16 %v2018, %v2014
  %v2055 = vpack.c.b16 %v2019, %v2015
  %v2056 = vpack.c.b16 %v2020, %v2016
  %v2057 = vpack.c.b16 %v2025, %v2021
  %v2058 = vpack.c.b16 %v2026, %v2022
  %v2059 = vpack.c.b16 %v2027, %v2023
  %v2060 = vpack.c.b16 %v2028, %v2024
  %2093 = vmatprep.subr.bf16.mxu0 %v2030
  %2094 = vmatpush1.bf16.msra.mxu0 %v2029
  %2095 = vmatprep.subr.bf16.mxu0 %v2034
  %2096 = vmatpush1.bf16.msra.mxu0 %v2033
  %2097 = vmatprep.subr.bf16.mxu0 %v2038
  %2098 = vmatpush1.bf16.msra.mxu0 %v2037
  %2099 = vmatprep.subr.bf16.mxu0 %v2042
  %2100 = vmatpush1.bf16.msra.mxu0 %v2041
  %2101 = vmatprep.subr.bf16.mxu0 %v2046
  %2102 = vmatpush1.bf16.msra.mxu0 %v2045
  %2103 = vmatprep.subr.bf16.mxu0 %v2050
  %2104 = vmatpush1.bf16.msra.mxu0 %v2049
  %2105 = vmatprep.subr.bf16.mxu0 %v2054
  %2106 = vmatpush1.bf16.msra.mxu0 %v2053
  %2107 = vmatprep.subr.bf16.mxu0 %v2058
  %2108 = vmatpush1.bf16.msra.mxu0 %v2057
  %2109 = vmatprep.subr.bf16.mxu0 0
  %2110 = vmatpush1.bf16.msra.mxu0 0
  %2111 = vmatprep.subr.bf16.mxu0 0
  %2112 = vmatpush1.bf16.msra.mxu0 0
  %2113 = vmatprep.subr.bf16.mxu0 0
  %2114 = vmatpush1.bf16.msra.mxu0 0
  %2115 = vmatprep.subr.bf16.mxu0 0
  %2116 = vmatpush1.bf16.msra.mxu0 0
  %2117 = vmatprep.subr.bf16.mxu0 0
  %2118 = vmatpush1.bf16.msra.mxu0 0
  %2119 = vmatprep.subr.bf16.mxu0 0
  %2120 = vmatpush1.bf16.msra.mxu0 0
  %2121 = vmatprep.subr.bf16.mxu0 0
  %2122 = vmatpush1.bf16.msra.mxu0 0
  %2123 = vmatprep.subr.bf16.mxu0 0
  %2124 = vmatpush1.bf16.msra.mxu0 0
  %2125 = vmatprep.mubr.bf16.mxu0 0
  %2126 = vmatmul.mubr.bf16.gmra.mrb[0].mxu0 %v1900
  %v2127 = vpop.f32.mrb[0].mxu0
  %v2128 = vadd.f32 0.0, %v2127
  %v2129 = vpop.f32.mrb[0].mxu0
  %v2130 = vadd.f32 0.0, %v2129
  %v2131 = vpop.f32.mrb[0].mxu0
  %v2132 = vpop.f32.mrb[0].mxu0
  %2133 = vdwg.mxu0
  %2134 = vmatprep.subr.bf16.mxu0 %v2032
  %2135 = vmatpush1.bf16.msra.mxu0 %v2031
  %2136 = vmatprep.subr.bf16.mxu0 %v2036
  %2137 = vmatpush1.bf16.msra.mxu0 %v2035
  %2138 = vmatprep.subr.bf16.mxu0 %v2040
  %2139 = vmatpush1.bf16.msra.mxu0 %v2039
  %2140 = vmatprep.subr.bf16.mxu0 %v2044
  %2141 = vmatpush1.bf16.msra.mxu0 %v2043
  %2142 = vmatprep.subr.bf16.mxu0 %v2048
  %2143 = vmatpush1.bf16.msra.mxu0 %v2047
  %2144 = vmatprep.subr.bf16.mxu0 %v2052
  %2145 = vmatpush1.bf16.msra.mxu0 %v2051
  %2146 = vmatprep.subr.bf16.mxu0 %v2056
  %2147 = vmatpush1.bf16.msra.mxu0 %v2055
  %2148 = vmatprep.subr.bf16.mxu0 %v2060
  %2149 = vmatpush1.bf16.msra.mxu0 %v2059
  %2150 = vmatprep.subr.bf16.mxu0 0
  %2151 = vmatpush1.bf16.msra.mxu0 0
  %2152 = vmatprep.subr.bf16.mxu0 0
  %2153 = vmatpush1.bf16.msra.mxu0 0
  %2154 = vmatprep.subr.bf16.mxu0 0
  %2155 = vmatpush1.bf16.msra.mxu0 0
  %2156 = vmatprep.subr.bf16.mxu0 0
  %2157 = vmatpush1.bf16.msra.mxu0 0
  %2158 = vmatprep.subr.bf16.mxu0 0
  %2159 = vmatpush1.bf16.msra.mxu0 0
  %2160 = vmatprep.subr.bf16.mxu0 0
  %2161 = vmatpush1.bf16.msra.mxu0 0
  %2162 = vmatprep.subr.bf16.mxu0 0
  %2163 = vmatpush1.bf16.msra.mxu0 0
  %2164 = vmatprep.subr.bf16.mxu0 0
  %2165 = vmatpush1.bf16.msra.mxu0 0
  %2166 = vmatprep.mubr.bf16.mxu0 0
  %2167 = vmatmul.mubr.bf16.gmra.mrb[0].mxu0 %v1900
  %v2168 = vpop.f32.mrb[0].mxu0
  %v2169 = vadd.f32 0.0, %v2168
  %v2170 = vpop.f32.mrb[0].mxu0
  %v2171 = vadd.f32 0.0, %v2170
  %v2172 = vpop.f32.mrb[0].mxu0
  %v2173 = vpop.f32.mrb[0].mxu0
  %2174 = vdwg.mxu0
  %v2175 = vadd.f32 %v1896, %v2128
  %v2176 = vadd.f32 %v1897, %v2130
  %v2177 = vadd.f32 %v1898, %v2169
  %v2178 = vadd.f32 %v1899, %v2171
  %v2179 = vxor.u32 %v2175, 2147483648
  %v2180 = vmul.f32 %v2179, 1.442695
  %v2181 = vpow.pop %v2180
  %v2182 = vadd.f32 %v2181, 1.0
  %v2183 = vrcp.pop %v2182
  %v2184 = vmul.f32 1.0, %v2183
  %v2185 = vxor.u32 %v2176, 2147483648
  %v2186 = vmul.f32 %v2185, 1.442695
  %v2187 = vpow.pop %v2186
  %v2188 = vadd.f32 %v2187, 1.0
  %v2189 = vrcp.pop %v2188
  %v2190 = vmul.f32 1.0, %v2189
  %v2191 = vtanh.pop %v2177
  %v2192 = vxor.u32 %v2178, 2147483648
  %v2193 = vmul.f32 %v2192, 1.442695
  %v2194 = vpow.pop %v2193
  %v2195 = vadd.f32 %v2194, 1.0
  %v2196 = vrcp.pop %v2195
  %v2197 = vmul.f32 1.0, %v2196
  %v2198 = vmul.f32 %v2190, %v1888
  %v2199 = vmul.f32 %v2184, %v2191
  %v2200 = vadd.f32 %v2198, %v2199
  %v2201 = vtanh.pop %v2200
  %v2202 = vmul.f32 %v2197, %v2201
  %s2203 = scalar_lea.vmem %s2, 48
  %2204 = vst [vmem:[%s2203] sm:$0xff] %v2202
  %s2205 = scalar_lea.vmem %s0, 112
  %v2206 = vld [vmem:[%s2205] sm:$0xff]
  %v2207 = vld [vmem:[%s2205 + $0x8] sm:$0xff]
  %v2208 = vunpack.c.l.bf16 %v2206
  %v2209 = vunpack.c.h.bf16 %v2206
  %v2210 = vunpack.c.l.bf16 %v2207
  %v2211 = vunpack.c.h.bf16 %v2207
  %v2212 = vpack.c.bf16 %v2202, %v2202
  %v2213 = vld [vmem:[%s1] sm:$0xff]
  %v2214 = vld [vmem:[%s1 + $0x8] sm:$0xff]
  %v2215 = vld [vmem:[%s1 + $0x10] sm:$0xff]
  %v2216 = vld [vmem:[%s1 + $0x18] sm:$0xff]
  %v2217 = vld [vmem:[%s1 + $0x20] sm:$0xff]
  %v2218 = vld [vmem:[%s1 + $0x28] sm:$0xff]
  %v2219 = vld [vmem:[%s1 + $0x30] sm:$0xff]
  %v2220 = vld [vmem:[%s1 + $0x38] sm:$0xff]
  %v2221 = vld [vmem:[%s1 + $0x40] sm:$0xff]
  %v2222 = vld [vmem:[%s1 + $0x48] sm:$0xff]
  %v2223 = vld [vmem:[%s1 + $0x50] sm:$0xff]
  %v2224 = vld [vmem:[%s1 + $0x58] sm:$0xff]
  %v2225 = vld [vmem:[%s1 + $0x60] sm:$0xff]
  %v2226 = vld [vmem:[%s1 + $0x68] sm:$0xff]
  %v2227 = vld [vmem:[%s1 + $0x70] sm:$0xff]
  %v2228 = vld [vmem:[%s1 + $0x78] sm:$0xff]
  %v2229 = vld [vmem:[%s1 + $0x80] sm:$0xff]
  %v2230 = vld [vmem:[%s1 + $0x88] sm:$0xff]
  %v2231 = vld [vmem:[%s1 + $0x90] sm:$0xff]
  %v2232 = vld [vmem:[%s1 + $0x98] sm:$0xff]
  %v2233 = vld [vmem:[%s1 + $0xa0] sm:$0xff]
  %v2234 = vld [vmem:[%s1 + $0xa8] sm:$0xff]
  %v2235 = vld [vmem:[%s1 + $0xb0] sm:$0xff]
  %v2236 = vld [vmem:[%s1 + $0xb8] sm:$0xff]
  %v2237 = vld [vmem:[%s1 + $0xc0] sm:$0xff]
  %v2238 = vld [vmem:[%s1 + $0xc8] sm:$0xff]
  %v2239 = vld [vmem:[%s1 + $0xd0] sm:$0xff]
  %v2240 = vld [vmem:[%s1 + $0xd8] sm:$0xff]
  %v2241 = vld [vmem:[%s1 + $0xe0] sm:$0xff]
  %v2242 = vld [vmem:[%s1 + $0xe8] sm:$0xff]
  %v2243 = vld [vmem:[%s1 + $0xf0] sm:$0xff]
  %v2244 = vld [vmem:[%s1 + $0xf8] sm:$0xff]
  %v2277 = vunpack.c.l.b16 %v2213
  %v2278 = vunpack.c.h.b16 %v2213
  %v2279 = vunpack.c.l.b16 %v2214
  %v2280 = vunpack.c.h.b16 %v2214
  %v2281 = vunpack.c.l.b16 %v2215
  %v2282 = vunpack.c.h.b16 %v2215
  %v2283 = vunpack.c.l.b16 %v2216
  %v2284 = vunpack.c.h.b16 %v2216
  %v2285 = vunpack.c.l.b16 %v2217
  %v2286 = vunpack.c.h.b16 %v2217
  %v2287 = vunpack.c.l.b16 %v2218
  %v2288 = vunpack.c.h.b16 %v2218
  %v2289 = vunpack.c.l.b16 %v2219
  %v2290 = vunpack.c.h.b16 %v2219
  %v2291 = vunpack.c.l.b16 %v2220
  %v2292 = vunpack.c.h.b16 %v2220
  %v2293 = vunpack.c.l.b16 %v2221
  %v2294 = vunpack.c.h.b16 %v2221
  %v2295 = vunpack.c.l.b16 %v2222
  %v2296 = vunpack.c.h.b16 %v2222
  %v2297 = vunpack.c.l.b16 %v2223
  %v2298 = vunpack.c.h.b16 %v2223
  %v2299 = vunpack.c.l.b16 %v2224
  %v2300 = vunpack.c.h.b16 %v2224
  %v2301 = vunpack.c.l.b16 %v2225
  %v2302 = vunpack.c.h.b16 %v2225
  %v2303 = vunpack.c.l.b16 %v2226
  %v2304 = vunpack.c.h.b16 %v2226
  %v2305 = vunpack.c.l.b16 %v2227
  %v2306 = vunpack.c.h.b16 %v2227
  %v2307 = vunpack.c.l.b16 %v2228
  %v2308 = vunpack.c.h.b16 %v2228
  %v2309 = vunpack.c.l.b16 %v2229
  %v2310 = vunpack.c.h.b16 %v2229
  %v2311 = vunpack.c.l.b16 %v2230
  %v2312 = vunpack.c.h.b16 %v2230
  %v2313 = vunpack.c.l.b16 %v2231
  %v2314 = vunpack.c.h.b16 %v2231
  %v2315 = vunpack.c.l.b16 %v2232
  %v2316 = vunpack.c.h.b16 %v2232
  %v2317 = vunpack.c.l.b16 %v2233
  %v2318 = vunpack.c.h.b16 %v2233
  %v2319 = vunpack.c.l.b16 %v2234
  %v2320 = vunpack.c.h.b16 %v2234
  %v2321 = vunpack.c.l.b16 %v2235
  %v2322 = vunpack.c.h.b16 %v2235
  %v2323 = vunpack.c.l.b16 %v2236
  %v2324 = vunpack.c.h.b16 %v2236
  %v2325 = vunpack.c.l.b16 %v2237
  %v2326 = vunpack.c.h.b16 %v2237
  %v2327 = vunpack.c.l.b16 %v2238
  %v2328 = vunpack.c.h.b16 %v2238
  %v2329 = vunpack.c.l.b16 %v2239
  %v2330 = vunpack.c.h.b16 %v2239
  %v2331 = vunpack.c.l.b16 %v2240
  %v2332 = vunpack.c.h.b16 %v2240
  %v2333 = vunpack.c.l.b16 %v2241
  %v2334 = vunpack.c.h.b16 %v2241
  %v2335 = vunpack.c.l.b16 %v2242
  %v2336 = vunpack.c.h.b16 %v2242
  %v2337 = vunpack.c.l.b16 %v2243
  %v2338 = vunpack.c.h.b16 %v2243
  %v2339 = vunpack.c.l.b16 %v2244
  %v2340 = vunpack.c.h.b16 %v2244
  %v2341 = vpack.c.b16 %v2281, %v2277
  %v2342 = vpack.c.b16 %v2282, %v2278
  %v2343 = vpack.c.b16 %v2283, %v2279
  %v2344 = vpack.c.b16 %v2284, %v2280
  %v2345 = vpack.c.b16 %v2289, %v2285
  %v2346 = vpack.c.b16 %v2290, %v2286
  %v2347 = vpack.c.b16 %v2291, %v2287
  %v2348 = vpack.c.b16 %v2292, %v2288
  %v2349 = vpack.c.b16 %v2297, %v2293
  %v2350 = vpack.c.b16 %v2298, %v2294
  %v2351 = vpack.c.b16 %v2299, %v2295
  %v2352 = vpack.c.b16 %v2300, %v2296
  %v2353 = vpack.c.b16 %v2305, %v2301
  %v2354 = vpack.c.b16 %v2306, %v2302
  %v2355 = vpack.c.b16 %v2307, %v2303
  %v2356 = vpack.c.b16 %v2308, %v2304
  %v2357 = vpack.c.b16 %v2313, %v2309
  %v2358 = vpack.c.b16 %v2314, %v2310
  %v2359 = vpack.c.b16 %v2315, %v2311
  %v2360 = vpack.c.b16 %v2316, %v2312
  %v2361 = vpack.c.b16 %v2321, %v2317
  %v2362 = vpack.c.b16 %v2322, %v2318
  %v2363 = vpack.c.b16 %v2323, %v2319
  %v2364 = vpack.c.b16 %v2324, %v2320
  %v2365 = vpack.c.b16 %v2329, %v2325
  %v2366 = vpack.c.b16 %v2330, %v2326
  %v2367 = vpack.c.b16 %v2331, %v2327
  %v2368 = vpack.c.b16 %v2332, %v2328
  %v2369 = vpack.c.b16 %v2337, %v2333
  %v2370 = vpack.c.b16 %v2338, %v2334
  %v2371 = vpack.c.b16 %v2339, %v2335
  %v2372 = vpack.c.b16 %v2340, %v2336
  %2405 = vmatprep.subr.bf16.mxu0 %v2342
  %2406 = vmatpush1.bf16.msra.mxu0 %v2341
  %2407 = vmatprep.subr.bf16.mxu0 %v2346
  %2408 = vmatpush1.bf16.msra.mxu0 %v2345
  %2409 = vmatprep.subr.bf16.mxu0 %v2350
  %2410 = vmatpush1.bf16.msra.mxu0 %v2349
  %2411 = vmatprep.subr.bf16.mxu0 %v2354
  %2412 = vmatpush1.bf16.msra.mxu0 %v2353
  %2413 = vmatprep.subr.bf16.mxu0 %v2358
  %2414 = vmatpush1.bf16.msra.mxu0 %v2357
  %2415 = vmatprep.subr.bf16.mxu0 %v2362
  %2416 = vmatpush1.bf16.msra.mxu0 %v2361
  %2417 = vmatprep.subr.bf16.mxu0 %v2366
  %2418 = vmatpush1.bf16.msra.mxu0 %v2365
  %2419 = vmatprep.subr.bf16.mxu0 %v2370
  %2420 = vmatpush1.bf16.msra.mxu0 %v2369
  %2421 = vmatprep.subr.bf16.mxu0 0
  %2422 = vmatpush1.bf16.msra.mxu0 0
  %2423 = vmatprep.subr.bf16.mxu0 0
  %2424 = vmatpush1.bf16.msra.mxu0 0
  %2425 = vmatprep.subr.bf16.mxu0 0
  %2426 = vmatpush1.bf16.msra.mxu0 0
  %2427 = vmatprep.subr.bf16.mxu0 0
  %2428 = vmatpush1.bf16.msra.mxu0 0
  %2429 = vmatprep.subr.bf16.mxu0 0
  %2430 = vmatpush1.bf16.msra.mxu0 0
  %2431 = vmatprep.subr.bf16.mxu0 0
  %2432 = vmatpush1.bf16.msra.mxu0 0
  %2433 = vmatprep.subr.bf16.mxu0 0
  %2434 = vmatpush1.bf16.msra.mxu0 0
  %2435 = vmatprep.subr.bf16.mxu0 0
  %2436 = vmatpush1.bf16.msra.mxu0 0
  %2437 = vmatprep.mubr.bf16.mxu0 0
  %2438 = vmatmul.mubr.bf16.gmra.mrb[0].mxu0 %v2212
  %v2439 = vpop.f32.mrb[0].mxu0
  %v2440 = vadd.f32 0.0, %v2439
  %v2441 = vpop.f32.mrb[0].mxu0
  %v2442 = vadd.f32 0.0, %v2441
  %v2443 = vpop.f32.mrb[0].mxu0
  %v2444 = vpop.f32.mrb[0].mxu0
  %2445 = vdwg.mxu0
  %2446 = vmatprep.subr.bf16.mxu0 %v2344
  %2447 = vmatpush1.bf16.msra.mxu0 %v2343
  %2448 = vmatprep.subr.bf16.mxu0 %v2348
  %2449 = vmatpush1.bf16.msra.mxu0 %v2347
  %2450 = vmatprep.subr.bf16.mxu0 %v2352
  %2451 = vmatpush1.bf16.msra.mxu0 %v2351
  %2452 = vmatprep.subr.bf16.mxu0 %v2356
  %2453 = vmatpush1.bf16.msra.mxu0 %v2355
  %2454 = vmatprep.subr.bf16.mxu0 %v2360
  %2455 = vmatpush1.bf16.msra.mxu0 %v2359
  %2456 = vmatprep.subr.bf16.mxu0 %v2364
  %2457 = vmatpush1.bf16.msra.mxu0 %v2363
  %2458 = vmatprep.subr.bf16.mxu0 %v2368
  %2459 = vmatpush1.bf16.msra.mxu0 %v2367
  %2460 = vmatprep.subr.bf16.mxu0 %v2372
  %2461 = vmatpush1.bf16.msra.mxu0 %v2371
  %2462 = vmatprep.subr.bf16.mxu0 0
  %2463 = vmatpush1.bf16.msra.mxu0 0
  %2464 = vmatprep.subr.bf16.mxu0 0
  %2465 = vmatpush1.bf16.msra.mxu0 0
  %2466 = vmatprep.subr.bf16.mxu0 0
  %2467 = vmatpush1.bf16.msra.mxu0 0
  %2468 = vmatprep.subr.bf16.mxu0 0
  %2469 = vmatpush1.bf16.msra.mxu0 0
  %2470 = vmatprep.subr.bf16.mxu0 0
  %2471 = vmatpush1.bf16.msra.mxu0 0
  %2472 = vmatprep.subr.bf16.mxu0 0
  %2473 = vmatpush1.bf16.msra.mxu0 0
  %2474 = vmatprep.subr.bf16.mxu0 0
  %2475 = vmatpush1.bf16.msra.mxu0 0
  %2476 = vmatprep.subr.bf16.mxu0 0
  %2477 = vmatpush1.bf16.msra.mxu0 0
  %2478 = vmatprep.mubr.bf16.mxu0 0
  %2479 = vmatmul.mubr.bf16.gmra.mrb[0].mxu0 %v2212
  %v2480 = vpop.f32.mrb[0].mxu0
  %v2481 = vadd.f32 0.0, %v2480
  %v2482 = vpop.f32.mrb[0].mxu0
  %v2483 = vadd.f32 0.0, %v2482
  %v2484 = vpop.f32.mrb[0].mxu0
  %v2485 = vpop.f32.mrb[0].mxu0
  %2486 = vdwg.mxu0
  %v2487 = vadd.f32 %v2208, %v2440
  %v2488 = vadd.f32 %v2209, %v2442
  %v2489 = vadd.f32 %v2210, %v2481
  %v2490 = vadd.f32 %v2211, %v2483
  %v2491 = vxor.u32 %v2487, 2147483648
  %v2492 = vmul.f32 %v2491, 1.442695
  %v2493 = vpow.pop %v2492
  %v2494 = vadd.f32 %v2493, 1.0
  %v2495 = vrcp.pop %v2494
  %v2496 = vmul.f32 1.0, %v2495
  %v2497 = vxor.u32 %v2488, 2147483648
  %v2498 = vmul.f32 %v2497, 1.442695
  %v2499 = vpow.pop %v2498
  %v2500 = vadd.f32 %v2499, 1.0
  %v2501 = vrcp.pop %v2500
  %v2502 = vmul.f32 1.0, %v2501
  %v2503 = vtanh.pop %v2489
  %v2504 = vxor.u32 %v2490, 2147483648
  %v2505 = vmul.f32 %v2504, 1.442695
  %v2506 = vpow.pop %v2505
  %v2507 = vadd.f32 %v2506, 1.0
  %v2508 = vrcp.pop %v2507
  %v2509 = vmul.f32 1.0, %v2508
  %v2510 = vmul.f32 %v2502, %v2200
  %v2511 = vmul.f32 %v2496, %v2503
  %v2512 = vadd.f32 %v2510, %v2511
  %v2513 = vtanh.pop %v2512
  %v2514 = vmul.f32 %v2509, %v2513
  %s2515 = scalar_lea.vmem %s2, 56
  %2516 = vst [vmem:[%s2515] sm:$0xff] %v2514
  %2517 = vst [vmem:[#allocation2] sm:$0xff] %v2514
  %2518 = vst [vmem:[#allocation3] sm:$0xff] %v2512
  // Predicated region
  $region14: #{encoder_forward.3} parent=0 // pred_check
    %p2519 = pneg %p15
  $region15: #{encoder_forward.3} parent=0 // pred_check_branch
    %2521 = sbr.rel (%p2519) target = $region17
  $region16: #{encoder_forward.3} parent=0 // pred_region
    %2522 = vst [vmem:[%s3] sm:$0xff] %v2514
    %2523 = vst [vmem:[%s4] sm:$0xff] %v2512
  $region17: #{encoder_forward.3} parent=0 // pred_fallthru
    _
  // Predicated region
  $region18: #{encoder_forward.3} parent=0 // pred_check
    _
  $region19: #{encoder_forward.3} parent=0 // pred_check_branch
    %2525 = sbr.rel (0) target = $region21
  $region20: #{encoder_forward.3} parent=0 // pred_region
    _
  $region21: #{encoder_forward.3} parent=0 // pred_fallthru
    _
  // Predicated region
  $region22: #{encoder_forward.3} parent=0 // pred_check
    _
  $region23: #{encoder_forward.3} parent=0 // pred_check_branch
    %2527 = sbr.rel (0) target = $region25
  $region24: #{encoder_forward.3} parent=0 // pred_region
    _
  $region25: #{encoder_forward.3} parent=0 // pred_fallthru
    _
  // Predicated region
  $region26: #{encoder_forward.3} parent=0 // pred_check
    _
  $region27: #{encoder_forward.3} parent=0 // pred_check_branch
    %2529 = sbr.rel (0) target = $region29
  $region28: #{encoder_forward.3} parent=0 // pred_region
    _
  $region29: #{encoder_forward.3} parent=0 // pred_fallthru
    _
  // Predicated region
  $region30: #{encoder_forward.3} parent=0 // pred_check
    _
  $region31: #{encoder_forward.3} parent=0 // pred_check_branch
    %2531 = sbr.rel (0) target = $region33
  $region32: #{encoder_forward.3} parent=0 // pred_region
    _
  $region33: #{encoder_forward.3} parent=0 // pred_fallthru
    _
  // Predicated region
  $region34: #{encoder_forward.3} parent=0 // pred_check
    _
  $region35: #{encoder_forward.3} parent=0 // pred_check_branch
    %2533 = sbr.rel (0) target = $region37
  $region36: #{encoder_forward.3} parent=0 // pred_region
    _
  $region37: #{encoder_forward.3} parent=0 // pred_fallthru
    _
  // Predicated region
  $region38: #{encoder_forward.3} parent=0 // pred_check
    _
  $region39: #{encoder_forward.3} parent=0 // pred_check_branch
    %2535 = sbr.rel (0) target = $region41
  $region40: #{encoder_forward.3} parent=0 // pred_region
    _
  $region41: #{encoder_forward.3} parent=0 // pred_fallthru
    _

</llo_original>
